<compile_context>
chip_gen: v7x
topology: tpu7x:2x2x1
jax: 0.10.0
libtpu: 0.0.40
codegen_flags: <defaults>
</compile_context>

<pallas_src>
import math
import functools

import jax
import jax.numpy as jnp
from jax.experimental import pallas as pl
from jax.experimental.pallas import tpu as pltpu  # noqa: F401  (kept for TPU backend)

# Model hyper-parameters (small, consistent with the module's __init__).
BATCH = 2
SEQ = 8
HIDDEN = 32
MLP_DIM = 64
HEADS = 4
DH = HIDDEN // HEADS
EPS = 1e-5  # nn.LayerNorm default


def _layernorm(x, w, b):
    mu = jnp.mean(x, axis=-1, keepdims=True)
    var = jnp.mean((x - mu) ** 2, axis=-1, keepdims=True)
    return (x - mu) * jax.lax.rsqrt(var + EPS) * w + b


def _gelu_tanh(x):
    c = math.sqrt(2.0 / math.pi)
    return x * 0.5 * (1.0 + jnp.tanh(c * (x + 0.044715 * x * x * x)))


def encoder_block_kernel(x_ref,        # (B*N, C)
                         wqkv_ref,     # (3, H, C, DH)   -- scale folded into [0]
                         bqkv_ref,     # (3, H, 1, DH)   -- scale folded into [0]
                         wo_ref,       # (H, DH, C)
                         w1_ref,       # (C, MLP)
                         w2_ref,       # (MLP, C)
                         vec_ref,      # (7, max(C, MLP)) packed LN/bias slab
                         o_ref,        # (B*N, C)
                         *, batch, seq):
    BN, C = x_ref.shape
    xt = x_ref[...]                                   # (B*N, C)

    ln1w = vec_ref[0, :C]
    ln1b = vec_ref[1, :C]
    b_out = vec_ref[2, :C]
    ln2w = vec_ref[3, :C]
    ln2b = vec_ref[4, :C]
    b_mlp1 = vec_ref[5, :MLP_DIM]
    b_mlp2 = vec_ref[6, :C]

    # --- norm1 + multi-head self-attention (head-batched, no lane shuffles) ---
    h = _layernorm(xt, ln1w, ln1b)                    # (B*N, C)

    wq, wk, wv = wqkv_ref[0], wqkv_ref[1], wqkv_ref[2]    # (H, C, DH) each
    bq, bk, bv = bqkv_ref[0], bqkv_ref[1], bqkv_ref[2]    # (H, 1, DH) each
    wo = wo_ref[...]                                      # (H, DH, C)
    H = wq.shape[0]

    attn_rows = []
    for b in range(batch):                            # B=2, unrolled at trace time
        hb = h[b * seq:(b + 1) * seq, :]              # (N, C), static sublane slice
        hb_h = jnp.broadcast_to(hb, (H, seq, C))      # heads on leading batch axis

        q = jnp.einsum('hnc,hcd->hnd', hb_h, wq,
                       preferred_element_type=jnp.float32) + bq   # scale pre-folded
        k = jnp.einsum('hnc,hcd->hnd', hb_h, wk,
                       preferred_element_type=jnp.float32) + bk
        v = jnp.einsum('hnc,hcd->hnd', hb_h, wv,
                       preferred_element_type=jnp.float32) + bv

        s = jnp.einsum('hnd,hmd->hnm', q, k,
                       preferred_element_type=jnp.float32)        # (H, N, N)
        s = s - jnp.max(s, axis=-1, keepdims=True)
        p = jnp.exp(s)
        p = p * pl.reciprocal(jnp.sum(p, axis=-1, keepdims=True), approx=True)

        ctx = jnp.einsum('hnm,hmd->hnd', p, v,
                         preferred_element_type=jnp.float32)      # (H, N, DH)
        # Output projection: contract head axis directly (no lane concat).
        ob = jnp.einsum('hnd,hdc->hnc', ctx, wo,
                        preferred_element_type=jnp.float32).sum(axis=0)  # (N, C)
        attn_rows.append(ob)

    attn_out = jnp.concatenate(attn_rows, axis=0) + b_out         # (B*N, C)
    x1 = xt + attn_out

    # --- norm2 + feed-forward (tanh-approx GELU) ---
    y = _layernorm(x1, ln2w, ln2b)
    y = jnp.dot(y, w1_ref[...], preferred_element_type=jnp.float32) + b_mlp1
    y = _gelu_tanh(y)
    y = jnp.dot(y, w2_ref[...], preferred_element_type=jnp.float32) + b_mlp2

    o_ref[...] = x1 + y


@jax.jit
def encoder_block(x, packed):
    B, N, C = x.shape
    xt = x.reshape(B * N, C)        # wrapper-side layout plumbing (free XLA reshape)
    kernel = functools.partial(encoder_block_kernel, batch=B, seq=N)
    out = pl.pallas_call(
        kernel,
        out_shape=jax.ShapeDtypeStruct((B * N, C), jnp.float32),
    )(xt,
      packed["w_qkv_h"], packed["b_qkv_h"], packed["w_out_h"],
      packed["w_mlp1"], packed["w_mlp2"], packed["vec"])
    return out.reshape(B, N, C)


def make_params(key):
    ks = jax.random.split(key, 8)
    scale = 0.02
    # Weights stored as (in_features, out_features), i.e. already transposed
    # relative to PyTorch's nn.Linear weight (out, in).
    return {
        "ln1_w": jnp.ones((1, HIDDEN), jnp.float32),
        "ln1_b": jnp.zeros((1, HIDDEN), jnp.float32),
        "w_qkv": scale * jax.random.normal(ks[0], (HIDDEN, 3 * HIDDEN), jnp.float32),
        "b_qkv": scale * jax.random.normal(ks[1], (1, 3 * HIDDEN), jnp.float32),
        "w_out": scale * jax.random.normal(ks[2], (HIDDEN, HIDDEN), jnp.float32),
        "b_out": scale * jax.random.normal(ks[3], (1, HIDDEN), jnp.float32),
        "ln2_w": jnp.ones((1, HIDDEN), jnp.float32),
        "ln2_b": jnp.zeros((1, HIDDEN), jnp.float32),
        "w_mlp1": scale * jax.random.normal(ks[4], (HIDDEN, MLP_DIM), jnp.float32),
        "b_mlp1": scale * jax.random.normal(ks[5], (1, MLP_DIM), jnp.float32),
        "w_mlp2": scale * jax.random.normal(ks[6], (MLP_DIM, HIDDEN), jnp.float32),
        "b_mlp2": scale * jax.random.normal(ks[7], (1, HIDDEN), jnp.float32),
    }


def prepack_params(p):
    """One-time parameter transform (done at construction time, not per call):
    head-major QKV/out weights, attention scale folded into Wq/bq, and all
    1-D LN weights / biases packed into a single (7, 64) slab."""
    C, H, D, M = HIDDEN, HEADS, DH, MLP_DIM
    scale = D ** (-0.5)

    wqkv = p["w_qkv"].reshape(C, 3, H, D).transpose(1, 2, 0, 3)   # (3, H, C, DH)
    bqkv = p["b_qkv"][0].reshape(3, H, D)[:, :, None, :]          # (3, H, 1, DH)
    wqkv = wqkv.at[0].multiply(scale)                             # fold softmax scale
    bqkv = bqkv.at[0].multiply(scale)
    wo = p["w_out"].reshape(H, D, C)                              # (H, DH, C)

    width = max(C, M)
    vec = jnp.zeros((7, width), jnp.float32)
    vec = vec.at[0, :C].set(p["ln1_w"][0])
    vec = vec.at[1, :C].set(p["ln1_b"][0])
    vec = vec.at[2, :C].set(p["b_out"][0])
    vec = vec.at[3, :C].set(p["ln2_w"][0])
    vec = vec.at[4, :C].set(p["ln2_b"][0])
    vec = vec.at[5, :M].set(p["b_mlp1"][0])
    vec = vec.at[6, :C].set(p["b_mlp2"][0])

    return {
        "w_qkv_h": wqkv,
        "b_qkv_h": bqkv,
        "w_out_h": wo,
        "w_mlp1": p["w_mlp1"],
        "w_mlp2": p["w_mlp2"],
        "vec": vec,
    }


def reference(x, p):
    """Pure-JAX reference mirroring the PyTorch forward (eval mode)."""
    def ln(v, w, b):
        mu = jnp.mean(v, axis=-1, keepdims=True)
        var = jnp.mean((v - mu) ** 2, axis=-1, keepdims=True)
        return (v - mu) * jax.lax.rsqrt(var + EPS) * w[0] + b[0]

    B, N, C = x.shape
    residual = x
    h = ln(x, p["ln1_w"], p["ln1_b"])
    qkv = h @ p["w_qkv"] + p["b_qkv"][0]
    qkv = qkv.reshape(B, N, 3, HEADS, DH).transpose(2, 0, 3, 1, 4)
    q, k, v = qkv[0], qkv[1], qkv[2]
    attn = jnp.einsum("bhnd,bhmd->bhnm", q, k) * (DH ** -0.5)
    attn = jax.nn.softmax(attn, axis=-1)
    o = jnp.einsum("bhnm,bhmd->bhnd", attn, v).transpose(0, 2, 1, 3).reshape(B, N, C)
    o = o @ p["w_out"] + p["b_out"][0]
    x1 = o + residual
    y = ln(x1, p["ln2_w"], p["ln2_b"])
    y = y @ p["w_mlp1"] + p["b_mlp1"][0]
    y = _gelu_tanh(y)
    y = y @ p["w_mlp2"] + p["b_mlp2"][0]
    return x1 + y


if __name__ == "__main__":
    key = jax.random.PRNGKey(0)
    kx, kp = jax.random.split(key)
    x = jax.random.normal(kx, (BATCH, SEQ, HIDDEN), jnp.float32)
    params = make_params(kp)
    packed = prepack_params(params)

    out = jax.block_until_ready(encoder_block(x, packed))
    ref = jax.block_until_ready(reference(x, params))

    assert out.shape == (BATCH, SEQ, HIDDEN)
    # slightly looser than 1e-4 to allow the EUP approx-reciprocal in softmax
    assert jnp.allclose(out, ref, atol=2e-4, rtol=2e-4), \
        f"max abs diff {jnp.max(jnp.abs(out - ref))}"
    print("KERNEL_OK")
</pallas_src>

<mosaic_0001>
module attributes {stable_mosaic.version = 11 : i64} {
  func.func @encoder_block_kernel(%arg0: memref<16x32xf32, #tpu.memory_space<vmem>>, %arg1: memref<3x4x32x8xf32, #tpu.memory_space<vmem>>, %arg2: memref<3x4x1x8xf32, #tpu.memory_space<vmem>>, %arg3: memref<4x8x32xf32, #tpu.memory_space<vmem>>, %arg4: memref<32x64xf32, #tpu.memory_space<vmem>>, %arg5: memref<64x32xf32, #tpu.memory_space<vmem>>, %arg6: memref<7x64xf32, #tpu.memory_space<vmem>>, %arg7: memref<16x32xf32, #tpu.memory_space<vmem>>) attributes {dimension_semantics = [], scalar_prefetch = 0 : i64, scratch_operands = 0 : i64, tpu.core_type = #tpu.core_type<tc>} {
    %c0 = arith.constant 0 : index
    %c0_0 = arith.constant 0 : index
    %0 = vector.load %arg0[%c0, %c0_0] : memref<16x32xf32, #tpu.memory_space<vmem>>, vector<16x32xf32>
    %c0_1 = arith.constant 0 : index
    %c0_2 = arith.constant 0 : index
    %1 = vector.load %arg6[%c0_1, %c0_2] : memref<7x64xf32, #tpu.memory_space<vmem>>, vector<1x32xf32>
    %2 = vector.shape_cast %1 : vector<1x32xf32> to vector<32xf32>
    %c1 = arith.constant 1 : index
    %c0_3 = arith.constant 0 : index
    %3 = vector.load %arg6[%c1, %c0_3] : memref<7x64xf32, #tpu.memory_space<vmem>>, vector<1x32xf32>
    %4 = vector.shape_cast %3 : vector<1x32xf32> to vector<32xf32>
    %c2 = arith.constant 2 : index
    %c0_4 = arith.constant 0 : index
    %5 = vector.load %arg6[%c2, %c0_4] : memref<7x64xf32, #tpu.memory_space<vmem>>, vector<1x32xf32>
    %6 = vector.shape_cast %5 : vector<1x32xf32> to vector<32xf32>
    %c3 = arith.constant 3 : index
    %c0_5 = arith.constant 0 : index
    %7 = vector.load %arg6[%c3, %c0_5] : memref<7x64xf32, #tpu.memory_space<vmem>>, vector<1x32xf32>
    %8 = vector.shape_cast %7 : vector<1x32xf32> to vector<32xf32>
    %c4 = arith.constant 4 : index
    %c0_6 = arith.constant 0 : index
    %9 = vector.load %arg6[%c4, %c0_6] : memref<7x64xf32, #tpu.memory_space<vmem>>, vector<1x32xf32>
    %10 = vector.shape_cast %9 : vector<1x32xf32> to vector<32xf32>
    %c5 = arith.constant 5 : index
    %c0_7 = arith.constant 0 : index
    %11 = vector.load %arg6[%c5, %c0_7] : memref<7x64xf32, #tpu.memory_space<vmem>>, vector<1x64xf32>
    %12 = vector.shape_cast %11 : vector<1x64xf32> to vector<64xf32>
    %c6 = arith.constant 6 : index
    %c0_8 = arith.constant 0 : index
    %13 = vector.load %arg6[%c6, %c0_8] : memref<7x64xf32, #tpu.memory_space<vmem>>, vector<1x32xf32>
    %14 = vector.shape_cast %13 : vector<1x32xf32> to vector<32xf32>
    %cst = arith.constant dense<0.000000e+00> : vector<16xf32>
    %15 = vector.multi_reduction <add>, %0, %cst [1] : vector<16x32xf32> to vector<16xf32>
    %16 = vector.shape_cast %15 : vector<16xf32> to vector<16x1xf32>
    %cst_9 = arith.constant 3.200000e+01 : f32
    %17 = vector.broadcast %cst_9 : f32 to vector<16x1xf32>
    %18 = arith.divf %16, %17 : vector<16x1xf32>
    %19 = vector.broadcast %18 : vector<16x1xf32> to vector<16x32xf32>
    %20 = arith.subf %0, %19 : vector<16x32xf32>
    %21 = arith.mulf %20, %20 : vector<16x32xf32>
    %cst_10 = arith.constant dense<0.000000e+00> : vector<16xf32>
    %22 = vector.multi_reduction <add>, %21, %cst_10 [1] : vector<16x32xf32> to vector<16xf32>
    %23 = vector.shape_cast %22 : vector<16xf32> to vector<16x1xf32>
    %cst_11 = arith.constant 3.200000e+01 : f32
    %24 = vector.broadcast %cst_11 : f32 to vector<16x1xf32>
    %25 = arith.divf %23, %24 : vector<16x1xf32>
    %26 = vector.broadcast %18 : vector<16x1xf32> to vector<16x32xf32>
    %27 = arith.subf %0, %26 : vector<16x32xf32>
    %cst_12 = arith.constant 9.99999974E-6 : f32
    %28 = vector.broadcast %cst_12 : f32 to vector<16x1xf32>
    %29 = arith.addf %25, %28 : vector<16x1xf32>
    %30 = math.rsqrt %29 : vector<16x1xf32>
    %31 = vector.broadcast %30 : vector<16x1xf32> to vector<16x32xf32>
    %32 = arith.mulf %27, %31 : vector<16x32xf32>
    %33 = vector.shape_cast %2 : vector<32xf32> to vector<1x32xf32>
    %34 = vector.broadcast %33 : vector<1x32xf32> to vector<16x32xf32>
    %35 = arith.mulf %32, %34 : vector<16x32xf32>
    %36 = vector.shape_cast %4 : vector<32xf32> to vector<1x32xf32>
    %37 = vector.broadcast %36 : vector<1x32xf32> to vector<16x32xf32>
    %38 = arith.addf %35, %37 : vector<16x32xf32>
    %c0_13 = arith.constant 0 : index
    %c0_14 = arith.constant 0 : index
    %c0_15 = arith.constant 0 : index
    %c0_16 = arith.constant 0 : index
    %39 = vector.load %arg1[%c0_13, %c0_14, %c0_15, %c0_16] : memref<3x4x32x8xf32, #tpu.memory_space<vmem>>, vector<1x4x32x8xf32>
    %40 = vector.shape_cast %39 : vector<1x4x32x8xf32> to vector<4x32x8xf32>
    %c1_17 = arith.constant 1 : index
    %c0_18 = arith.constant 0 : index
    %c0_19 = arith.constant 0 : index
    %c0_20 = arith.constant 0 : index
    %41 = vector.load %arg1[%c1_17, %c0_18, %c0_19, %c0_20] : memref<3x4x32x8xf32, #tpu.memory_space<vmem>>, vector<1x4x32x8xf32>
    %42 = vector.shape_cast %41 : vector<1x4x32x8xf32> to vector<4x32x8xf32>
    %c2_21 = arith.constant 2 : index
    %c0_22 = arith.constant 0 : index
    %c0_23 = arith.constant 0 : index
    %c0_24 = arith.constant 0 : index
    %43 = vector.load %arg1[%c2_21, %c0_22, %c0_23, %c0_24] : memref<3x4x32x8xf32, #tpu.memory_space<vmem>>, vector<1x4x32x8xf32>
    %44 = vector.shape_cast %43 : vector<1x4x32x8xf32> to vector<4x32x8xf32>
    %c0_25 = arith.constant 0 : index
    %c0_26 = arith.constant 0 : index
    %c0_27 = arith.constant 0 : index
    %c0_28 = arith.constant 0 : index
    %45 = vector.load %arg2[%c0_25, %c0_26, %c0_27, %c0_28] : memref<3x4x1x8xf32, #tpu.memory_space<vmem>>, vector<1x4x1x8xf32>
    %46 = vector.shape_cast %45 : vector<1x4x1x8xf32> to vector<4x1x8xf32>
    %c1_29 = arith.constant 1 : index
    %c0_30 = arith.constant 0 : index
    %c0_31 = arith.constant 0 : index
    %c0_32 = arith.constant 0 : index
    %47 = vector.load %arg2[%c1_29, %c0_30, %c0_31, %c0_32] : memref<3x4x1x8xf32, #tpu.memory_space<vmem>>, vector<1x4x1x8xf32>
    %48 = vector.shape_cast %47 : vector<1x4x1x8xf32> to vector<4x1x8xf32>
    %c2_33 = arith.constant 2 : index
    %c0_34 = arith.constant 0 : index
    %c0_35 = arith.constant 0 : index
    %c0_36 = arith.constant 0 : index
    %49 = vector.load %arg2[%c2_33, %c0_34, %c0_35, %c0_36] : memref<3x4x1x8xf32, #tpu.memory_space<vmem>>, vector<1x4x1x8xf32>
    %50 = vector.shape_cast %49 : vector<1x4x1x8xf32> to vector<4x1x8xf32>
    %c0_37 = arith.constant 0 : index
    %c0_38 = arith.constant 0 : index
    %c0_39 = arith.constant 0 : index
    %51 = vector.load %arg3[%c0_37, %c0_38, %c0_39] : memref<4x8x32xf32, #tpu.memory_space<vmem>>, vector<4x8x32xf32>
    %52 = vector.extract_strided_slice %38 {offsets = [0, 0], sizes = [8, 32], strides = [1, 1]} : vector<16x32xf32> to vector<8x32xf32>
    %53 = vector.shape_cast %52 : vector<8x32xf32> to vector<1x8x32xf32>
    %54 = vector.broadcast %53 : vector<1x8x32xf32> to vector<4x8x32xf32>
    "tpu.trace_start"() <{level = 10 : i32, message = "hnc,hcd->hnd"}> : () -> ()
    %cst_40 = arith.constant dense<0.000000e+00> : vector<4x8x8xf32>
    %55 = tpu.matmul %54, %40, %cst_40 {dimension_numbers = #tpu.dot_dimension_numbers<[2], [1], [1], [2], [0, 0, 0, 1, 1, 2], [0], [0]>} : vector<4x8x32xf32>, vector<4x32x8xf32>, vector<4x8x8xf32> -> vector<4x8x8xf32>
    "tpu.trace_stop"() : () -> ()
    %56 = vector.broadcast %46 : vector<4x1x8xf32> to vector<4x8x8xf32>
    %57 = arith.addf %55, %56 : vector<4x8x8xf32>
    "tpu.trace_start"() <{level = 10 : i32, message = "hnc,hcd->hnd"}> : () -> ()
    %cst_41 = arith.constant dense<0.000000e+00> : vector<4x8x8xf32>
    %58 = tpu.matmul %54, %42, %cst_41 {dimension_numbers = #tpu.dot_dimension_numbers<[2], [1], [1], [2], [0, 0, 0, 1, 1, 2], [0], [0]>} : vector<4x8x32xf32>, vector<4x32x8xf32>, vector<4x8x8xf32> -> vector<4x8x8xf32>
    "tpu.trace_stop"() : () -> ()
    %59 = vector.broadcast %48 : vector<4x1x8xf32> to vector<4x8x8xf32>
    %60 = arith.addf %58, %59 : vector<4x8x8xf32>
    "tpu.trace_start"() <{level = 10 : i32, message = "hnc,hcd->hnd"}> : () -> ()
    %cst_42 = arith.constant dense<0.000000e+00> : vector<4x8x8xf32>
    %61 = tpu.matmul %54, %44, %cst_42 {dimension_numbers = #tpu.dot_dimension_numbers<[2], [1], [1], [2], [0, 0, 0, 1, 1, 2], [0], [0]>} : vector<4x8x32xf32>, vector<4x32x8xf32>, vector<4x8x8xf32> -> vector<4x8x8xf32>
    "tpu.trace_stop"() : () -> ()
    %62 = vector.broadcast %50 : vector<4x1x8xf32> to vector<4x8x8xf32>
    %63 = arith.addf %61, %62 : vector<4x8x8xf32>
    "tpu.trace_start"() <{level = 10 : i32, message = "hnd,hmd->hnm"}> : () -> ()
    %cst_43 = arith.constant dense<0.000000e+00> : vector<4x8x8xf32>
    %64 = tpu.matmul %57, %60, %cst_43 {dimension_numbers = #tpu.dot_dimension_numbers<[2], [2], [1], [1], [0, 0, 0, 1, 1, 1], [0], [0]>} : vector<4x8x8xf32>, vector<4x8x8xf32>, vector<4x8x8xf32> -> vector<4x8x8xf32>
    "tpu.trace_stop"() : () -> ()
    %cst_44 = arith.constant dense<0xFF800000> : vector<4x8xf32>
    %65 = vector.multi_reduction <maximumf>, %64, %cst_44 [2] : vector<4x8x8xf32> to vector<4x8xf32>
    %66 = vector.shape_cast %65 : vector<4x8xf32> to vector<4x8x1xf32>
    %67 = vector.broadcast %66 : vector<4x8x1xf32> to vector<4x8x8xf32>
    %68 = arith.subf %64, %67 : vector<4x8x8xf32>
    %69 = math.exp %68 : vector<4x8x8xf32>
    %cst_45 = arith.constant dense<0.000000e+00> : vector<4x8xf32>
    %70 = vector.multi_reduction <add>, %69, %cst_45 [2] : vector<4x8x8xf32> to vector<4x8xf32>
    %71 = vector.shape_cast %70 : vector<4x8xf32> to vector<4x8x1xf32>
    %72 = tpu.reciprocal %71 {approx = true} : vector<4x8x1xf32> -> vector<4x8x1xf32>
    %73 = vector.broadcast %72 : vector<4x8x1xf32> to vector<4x8x8xf32>
    %74 = arith.mulf %69, %73 : vector<4x8x8xf32>
    "tpu.trace_start"() <{level = 10 : i32, message = "hnm,hmd->hnd"}> : () -> ()
    %cst_46 = arith.constant dense<0.000000e+00> : vector<4x8x8xf32>
    %75 = tpu.matmul %74, %63, %cst_46 {dimension_numbers = #tpu.dot_dimension_numbers<[2], [1], [1], [2], [0, 0, 0, 1, 1, 2], [0], [0]>} : vector<4x8x8xf32>, vector<4x8x8xf32>, vector<4x8x8xf32> -> vector<4x8x8xf32>
    "tpu.trace_stop"() : () -> ()
    "tpu.trace_start"() <{level = 10 : i32, message = "hnd,hdc->hnc"}> : () -> ()
    %cst_47 = arith.constant dense<0.000000e+00> : vector<4x8x32xf32>
    %76 = tpu.matmul %75, %51, %cst_47 {dimension_numbers = #tpu.dot_dimension_numbers<[2], [1], [1], [2], [0, 0, 0, 1, 1, 2], [0], [0]>} : vector<4x8x8xf32>, vector<4x8x32xf32>, vector<4x8x32xf32> -> vector<4x8x32xf32>
    "tpu.trace_stop"() : () -> ()
    %cst_48 = arith.constant dense<0.000000e+00> : vector<8x32xf32>
    %77 = vector.multi_reduction <add>, %76, %cst_48 [0] : vector<4x8x32xf32> to vector<8x32xf32>
    %78 = vector.extract_strided_slice %38 {offsets = [8, 0], sizes = [8, 32], strides = [1, 1]} : vector<16x32xf32> to vector<8x32xf32>
    %79 = vector.shape_cast %78 : vector<8x32xf32> to vector<1x8x32xf32>
    %80 = vector.broadcast %79 : vector<1x8x32xf32> to vector<4x8x32xf32>
    "tpu.trace_start"() <{level = 10 : i32, message = "hnc,hcd->hnd"}> : () -> ()
    %cst_49 = arith.constant dense<0.000000e+00> : vector<4x8x8xf32>
    %81 = tpu.matmul %80, %40, %cst_49 {dimension_numbers = #tpu.dot_dimension_numbers<[2], [1], [1], [2], [0, 0, 0, 1, 1, 2], [0], [0]>} : vector<4x8x32xf32>, vector<4x32x8xf32>, vector<4x8x8xf32> -> vector<4x8x8xf32>
    "tpu.trace_stop"() : () -> ()
    %82 = vector.broadcast %46 : vector<4x1x8xf32> to vector<4x8x8xf32>
    %83 = arith.addf %81, %82 : vector<4x8x8xf32>
    "tpu.trace_start"() <{level = 10 : i32, message = "hnc,hcd->hnd"}> : () -> ()
    %cst_50 = arith.constant dense<0.000000e+00> : vector<4x8x8xf32>
    %84 = tpu.matmul %80, %42, %cst_50 {dimension_numbers = #tpu.dot_dimension_numbers<[2], [1], [1], [2], [0, 0, 0, 1, 1, 2], [0], [0]>} : vector<4x8x32xf32>, vector<4x32x8xf32>, vector<4x8x8xf32> -> vector<4x8x8xf32>
    "tpu.trace_stop"() : () -> ()
    %85 = vector.broadcast %48 : vector<4x1x8xf32> to vector<4x8x8xf32>
    %86 = arith.addf %84, %85 : vector<4x8x8xf32>
    "tpu.trace_start"() <{level = 10 : i32, message = "hnc,hcd->hnd"}> : () -> ()
    %cst_51 = arith.constant dense<0.000000e+00> : vector<4x8x8xf32>
    %87 = tpu.matmul %80, %44, %cst_51 {dimension_numbers = #tpu.dot_dimension_numbers<[2], [1], [1], [2], [0, 0, 0, 1, 1, 2], [0], [0]>} : vector<4x8x32xf32>, vector<4x32x8xf32>, vector<4x8x8xf32> -> vector<4x8x8xf32>
    "tpu.trace_stop"() : () -> ()
    %88 = vector.broadcast %50 : vector<4x1x8xf32> to vector<4x8x8xf32>
    %89 = arith.addf %87, %88 : vector<4x8x8xf32>
    "tpu.trace_start"() <{level = 10 : i32, message = "hnd,hmd->hnm"}> : () -> ()
    %cst_52 = arith.constant dense<0.000000e+00> : vector<4x8x8xf32>
    %90 = tpu.matmul %83, %86, %cst_52 {dimension_numbers = #tpu.dot_dimension_numbers<[2], [2], [1], [1], [0, 0, 0, 1, 1, 1], [0], [0]>} : vector<4x8x8xf32>, vector<4x8x8xf32>, vector<4x8x8xf32> -> vector<4x8x8xf32>
    "tpu.trace_stop"() : () -> ()
    %cst_53 = arith.constant dense<0xFF800000> : vector<4x8xf32>
    %91 = vector.multi_reduction <maximumf>, %90, %cst_53 [2] : vector<4x8x8xf32> to vector<4x8xf32>
    %92 = vector.shape_cast %91 : vector<4x8xf32> to vector<4x8x1xf32>
    %93 = vector.broadcast %92 : vector<4x8x1xf32> to vector<4x8x8xf32>
    %94 = arith.subf %90, %93 : vector<4x8x8xf32>
    %95 = math.exp %94 : vector<4x8x8xf32>
    %cst_54 = arith.constant dense<0.000000e+00> : vector<4x8xf32>
    %96 = vector.multi_reduction <add>, %95, %cst_54 [2] : vector<4x8x8xf32> to vector<4x8xf32>
    %97 = vector.shape_cast %96 : vector<4x8xf32> to vector<4x8x1xf32>
    %98 = tpu.reciprocal %97 {approx = true} : vector<4x8x1xf32> -> vector<4x8x1xf32>
    %99 = vector.broadcast %98 : vector<4x8x1xf32> to vector<4x8x8xf32>
    %100 = arith.mulf %95, %99 : vector<4x8x8xf32>
    "tpu.trace_start"() <{level = 10 : i32, message = "hnm,hmd->hnd"}> : () -> ()
    %cst_55 = arith.constant dense<0.000000e+00> : vector<4x8x8xf32>
    %101 = tpu.matmul %100, %89, %cst_55 {dimension_numbers = #tpu.dot_dimension_numbers<[2], [1], [1], [2], [0, 0, 0, 1, 1, 2], [0], [0]>} : vector<4x8x8xf32>, vector<4x8x8xf32>, vector<4x8x8xf32> -> vector<4x8x8xf32>
    "tpu.trace_stop"() : () -> ()
    "tpu.trace_start"() <{level = 10 : i32, message = "hnd,hdc->hnc"}> : () -> ()
    %cst_56 = arith.constant dense<0.000000e+00> : vector<4x8x32xf32>
    %102 = tpu.matmul %101, %51, %cst_56 {dimension_numbers = #tpu.dot_dimension_numbers<[2], [1], [1], [2], [0, 0, 0, 1, 1, 2], [0], [0]>} : vector<4x8x8xf32>, vector<4x8x32xf32>, vector<4x8x32xf32> -> vector<4x8x32xf32>
    "tpu.trace_stop"() : () -> ()
    %cst_57 = arith.constant dense<0.000000e+00> : vector<8x32xf32>
    %103 = vector.multi_reduction <add>, %102, %cst_57 [0] : vector<4x8x32xf32> to vector<8x32xf32>
    %104 = tpu.concatenate %77, %103 in 0 : vector<8x32xf32>, vector<8x32xf32> -> vector<16x32xf32>
    %105 = vector.shape_cast %6 : vector<32xf32> to vector<1x32xf32>
    %106 = vector.broadcast %105 : vector<1x32xf32> to vector<16x32xf32>
    %107 = arith.addf %104, %106 : vector<16x32xf32>
    %108 = arith.addf %0, %107 : vector<16x32xf32>
    %cst_58 = arith.constant dense<0.000000e+00> : vector<16xf32>
    %109 = vector.multi_reduction <add>, %108, %cst_58 [1] : vector<16x32xf32> to vector<16xf32>
    %110 = vector.shape_cast %109 : vector<16xf32> to vector<16x1xf32>
    %cst_59 = arith.constant 3.200000e+01 : f32
    %111 = vector.broadcast %cst_59 : f32 to vector<16x1xf32>
    %112 = arith.divf %110, %111 : vector<16x1xf32>
    %113 = vector.broadcast %112 : vector<16x1xf32> to vector<16x32xf32>
    %114 = arith.subf %108, %113 : vector<16x32xf32>
    %115 = arith.mulf %114, %114 : vector<16x32xf32>
    %cst_60 = arith.constant dense<0.000000e+00> : vector<16xf32>
    %116 = vector.multi_reduction <add>, %115, %cst_60 [1] : vector<16x32xf32> to vector<16xf32>
    %117 = vector.shape_cast %116 : vector<16xf32> to vector<16x1xf32>
    %cst_61 = arith.constant 3.200000e+01 : f32
    %118 = vector.broadcast %cst_61 : f32 to vector<16x1xf32>
    %119 = arith.divf %117, %118 : vector<16x1xf32>
    %120 = vector.broadcast %112 : vector<16x1xf32> to vector<16x32xf32>
    %121 = arith.subf %108, %120 : vector<16x32xf32>
    %cst_62 = arith.constant 9.99999974E-6 : f32
    %122 = vector.broadcast %cst_62 : f32 to vector<16x1xf32>
    %123 = arith.addf %119, %122 : vector<16x1xf32>
    %124 = math.rsqrt %123 : vector<16x1xf32>
    %125 = vector.broadcast %124 : vector<16x1xf32> to vector<16x32xf32>
    %126 = arith.mulf %121, %125 : vector<16x32xf32>
    %127 = vector.shape_cast %8 : vector<32xf32> to vector<1x32xf32>
    %128 = vector.broadcast %127 : vector<1x32xf32> to vector<16x32xf32>
    %129 = arith.mulf %126, %128 : vector<16x32xf32>
    %130 = vector.shape_cast %10 : vector<32xf32> to vector<1x32xf32>
    %131 = vector.broadcast %130 : vector<1x32xf32> to vector<16x32xf32>
    %132 = arith.addf %129, %131 : vector<16x32xf32>
    %c0_63 = arith.constant 0 : index
    %c0_64 = arith.constant 0 : index
    %133 = vector.load %arg4[%c0_63, %c0_64] : memref<32x64xf32, #tpu.memory_space<vmem>>, vector<32x64xf32>
    %cst_65 = arith.constant dense<0.000000e+00> : vector<16x64xf32>
    %134 = tpu.matmul %132, %133, %cst_65 {dimension_numbers = #tpu.dot_dimension_numbers<[1], [0], [0], [1], [0, 0, 1, 1], [], []>} : vector<16x32xf32>, vector<32x64xf32>, vector<16x64xf32> -> vector<16x64xf32>
    %135 = vector.shape_cast %12 : vector<64xf32> to vector<1x64xf32>
    %136 = vector.broadcast %135 : vector<1x64xf32> to vector<16x64xf32>
    %137 = arith.addf %134, %136 : vector<16x64xf32>
    %cst_66 = arith.constant 5.000000e-01 : f32
    %138 = vector.broadcast %cst_66 : f32 to vector<16x64xf32>
    %139 = arith.mulf %137, %138 : vector<16x64xf32>
    %cst_67 = arith.constant 4.471500e-02 : f32
    %140 = vector.broadcast %cst_67 : f32 to vector<16x64xf32>
    %141 = arith.mulf %140, %137 : vector<16x64xf32>
    %142 = arith.mulf %141, %137 : vector<16x64xf32>
    %143 = arith.mulf %142, %137 : vector<16x64xf32>
    %144 = arith.addf %137, %143 : vector<16x64xf32>
    %cst_68 = arith.constant 0.797884583 : f32
    %145 = vector.broadcast %cst_68 : f32 to vector<16x64xf32>
    %146 = arith.mulf %145, %144 : vector<16x64xf32>
    %147 = math.tanh %146 : vector<16x64xf32>
    %cst_69 = arith.constant 1.000000e+00 : f32
    %148 = vector.broadcast %cst_69 : f32 to vector<16x64xf32>
    %149 = arith.addf %148, %147 : vector<16x64xf32>
    %150 = arith.mulf %139, %149 : vector<16x64xf32>
    %c0_70 = arith.constant 0 : index
    %c0_71 = arith.constant 0 : index
    %151 = vector.load %arg5[%c0_70, %c0_71] : memref<64x32xf32, #tpu.memory_space<vmem>>, vector<64x32xf32>
    %cst_72 = arith.constant dense<0.000000e+00> : vector<16x32xf32>
    %152 = tpu.matmul %150, %151, %cst_72 {dimension_numbers = #tpu.dot_dimension_numbers<[1], [0], [0], [1], [0, 0, 1, 1], [], []>} : vector<16x64xf32>, vector<64x32xf32>, vector<16x32xf32> -> vector<16x32xf32>
    %153 = vector.shape_cast %14 : vector<32xf32> to vector<1x32xf32>
    %154 = vector.broadcast %153 : vector<1x32xf32> to vector<16x32xf32>
    %155 = arith.addf %152, %154 : vector<16x32xf32>
    %156 = arith.addf %108, %155 : vector<16x32xf32>
    %c0_73 = arith.constant 0 : index
    %c0_74 = arith.constant 0 : index
    %157 = vector.load %arg7[%c0_73, %c0_74] : memref<16x32xf32, #tpu.memory_space<vmem>>, vector<16x32xf32>
    tpu.vector_store %arg7[%c0_73, %c0_74], %156 {strides = array<i32>} : memref<16x32xf32, #tpu.memory_space<vmem>>, vector<16x32xf32>,
    return
  }
}

</mosaic_0001>

<llo_original>
// kernel: encoder_block.1
$region0: #{encoder_block.1}
  #allocation0 [shape = 'u32[]', space=smem, size = 0x4, offset = 0x4, fixed_abs, tag = 'smem constant byte address 0x4 - core index']
  #allocation1 [shape = 'u32[144,128]{1,0:T(1,128)}', space=vmem, size = 0x12000, scoped, tag = 'internal scratch']
  %s0 = inlined_call_operand.vmem [shape: f32[16,32], index: 0, kind: input, shape index: {}]
  %s1 = inlined_call_operand.vmem [shape: f32[3,4,32,8], index: 1, kind: input, shape index: {}]
  %s2 = inlined_call_operand.vmem [shape: f32[3,4,1,8], index: 2, kind: input, shape index: {}]
  %s3 = inlined_call_operand.vmem [shape: f32[4,8,32], index: 3, kind: input, shape index: {}]
  %s4 = inlined_call_operand.vmem [shape: f32[32,64], index: 4, kind: input, shape index: {}]
  %s5 = inlined_call_operand.vmem [shape: f32[64,32], index: 5, kind: input, shape index: {}]
  %s6 = inlined_call_operand.vmem [shape: f32[7,64], index: 6, kind: input, shape index: {}]
  %s7 = inlined_call_operand.hbm [shape: f32[16,32], index: 7, kind: output, shape index: {}]
  %s8 = sld [smem:[#allocation0]]
  $region38: #{encoder_block.1} parent=0
    _
  %s10 = ssub.s32 1, %s8
  %s11 = scalar_select 0, %s10, %s8
  $region1: #{encoder_block.1} parent=0
    #allocation2 [shape = 'u8[8192]{0}', space=vmem, size = 0x2000, scoped, tag = 'output window, operand 0, single buffered']
    #allocation3 [shape = 's32[1]{0}', space=sflag, size = 0x4, scoped, tag = 'scoped memory for encoder_block.1']
    %12 = vsyncpa [#allocation3], 0
    // Predicated region
    $region2: #{encoder_block.1} parent=1 // pred_check
      _
    $region3: #{encoder_block.1} parent=1 // pred_check_branch
      %14 = sbr.rel (0) target = $region5
    $region4: #{encoder_block.1} parent=1 // pred_region
      _
    $region5: #{encoder_block.1} parent=1 // pred_fallthru
      _
    // Predicated region
    $region6: #{encoder_block.1} parent=1 // pred_check
      _
    $region7: #{encoder_block.1} parent=1 // pred_check_branch
      %16 = sbr.rel (0) target = $region9
    $region8: #{encoder_block.1} parent=1 // pred_region
      _
    $region9: #{encoder_block.1} parent=1 // pred_fallthru
      _
    // Predicated region
    $region10: #{encoder_block.1} parent=1 // pred_check
      _
    $region11: #{encoder_block.1} parent=1 // pred_check_branch
      %18 = sbr.rel (0) target = $region13
    $region12: #{encoder_block.1} parent=1 // pred_region
      _
    $region13: #{encoder_block.1} parent=1 // pred_fallthru
      _
    // Predicated region
    $region14: #{encoder_block.1} parent=1 // pred_check
      _
    $region15: #{encoder_block.1} parent=1 // pred_check_branch
      %20 = sbr.rel (0) target = $region17
    $region16: #{encoder_block.1} parent=1 // pred_region
      _
    $region17: #{encoder_block.1} parent=1 // pred_fallthru
      _
    // Predicated region
    $region18: #{encoder_block.1} parent=1 // pred_check
      _
    $region19: #{encoder_block.1} parent=1 // pred_check_branch
      %22 = sbr.rel (0) target = $region21
    $region20: #{encoder_block.1} parent=1 // pred_region
      _
    $region21: #{encoder_block.1} parent=1 // pred_fallthru
      _
    // Predicated region
    $region22: #{encoder_block.1} parent=1 // pred_check
      _
    $region23: #{encoder_block.1} parent=1 // pred_check_branch
      %24 = sbr.rel (0) target = $region25
    $region24: #{encoder_block.1} parent=1 // pred_region
      _
    $region25: #{encoder_block.1} parent=1 // pred_fallthru
      _
    // Predicated region
    $region26: #{encoder_block.1} parent=1 // pred_check
      _
    $region27: #{encoder_block.1} parent=1 // pred_check_branch
      %26 = sbr.rel (0) target = $region29
    $region28: #{encoder_block.1} parent=1 // pred_region
      _
    $region29: #{encoder_block.1} parent=1 // pred_fallthru
      _
    %v27 = vld [vmem:[%s0] sm:$0xff]
    %v28 = vld [vmem:[%s0 + $0x8] sm:$0xff]
    %v29 = vld [vmem:[%s6] sm:$0x1]
    %v30 = vld [vmem:[%s6 + $0x1] sm:$0x1]
    %v31 = vld [vmem:[%s6 + $0x2] sm:$0x1]
    %v32 = vld [vmem:[%s6 + $0x3] sm:$0x1]
    %v33 = vld [vmem:[%s6 + $0x4] sm:$0x1]
    %v34 = vld [vmem:[%s6 + $0x5] sm:$0x1]
    %v35 = vld [vmem:[%s6 + $0x6] sm:$0x1]
    %vm36 = vcmask 261120
    %v37 = vsel %vm36, %v27, 0.0
    %38 = vadd.xlane.f32.xlu0 %v37
    %v39 = vpop.xlane.xlu0 %38
    %v40 = vsel %vm36, %v28, 0.0
    %41 = vadd.xlane.f32.xlu0 %v40
    %v42 = vpop.xlane.xlu0 %41
    %v43 = vrcp.pop 32.0
    %v44 = vmul.f32 %v39, %v43
    %v45 = vmul.f32 %v42, %v43
    %v46 = vsub.f32 %v27, %v44
    %v47 = vsub.f32 %v28, %v45
    %v48 = vmul.f32 %v46, %v46
    %v49 = vmul.f32 %v47, %v47
    %v50 = vsel %vm36, %v48, 0.0
    %51 = vadd.xlane.f32.xlu0 %v50
    %v52 = vpop.xlane.xlu0 %51
    %v53 = vsel %vm36, %v49, 0.0
    %54 = vadd.xlane.f32.xlu0 %v53
    %v55 = vpop.xlane.xlu0 %54
    %v56 = vmul.f32 %v52, %v43
    %v57 = vmul.f32 %v55, %v43
    %v58 = vadd.f32 %v56, 1e-05
    %v59 = vadd.f32 %v57, 1e-05
    %v60 = vrsqrt.pop %v58
    %v61 = vrsqrt.pop %v59
    %v62 = vmul.f32 %v46, %v60
    %v63 = vmul.f32 %v47, %v61
    %v64 = vlaneseq
    %v65 = vshrl.u32 %v64, 7
    %v66 = vsub.s32 0, %v65
    %v67 = vrot.slane %v29, %v66
    %v68 = vmul.f32 %v62, %v67
    %v69 = vmul.f32 %v63, %v67
    %v70 = vlaneseq
    %v71 = vshrl.u32 %v70, 7
    %v72 = vsub.s32 0, %v71
    %v73 = vrot.slane %v30, %v72
    %v74 = vadd.f32 %v68, %v73
    %v75 = vadd.f32 %v69, %v73
    %v76 = vld [vmem:[%s1] sm:$0xff]
    %v77 = vld [vmem:[%s1 + $0x8] sm:$0xff]
    %v78 = vld [vmem:[%s1 + $0x10] sm:$0xff]
    %v79 = vld [vmem:[%s1 + $0x18] sm:$0xff]
    %v80 = vld [vmem:[%s1 + $0x20] sm:$0xff]
    %v81 = vld [vmem:[%s1 + $0x28] sm:$0xff]
    %v82 = vld [vmem:[%s1 + $0x30] sm:$0xff]
    %v83 = vld [vmem:[%s1 + $0x38] sm:$0xff]
    %v84 = vld [vmem:[%s1 + $0x40] sm:$0xff]
    %v85 = vld [vmem:[%s1 + $0x48] sm:$0xff]
    %v86 = vld [vmem:[%s1 + $0x50] sm:$0xff]
    %v87 = vld [vmem:[%s1 + $0x58] sm:$0xff]
    %v88 = vld [vmem:[%s1 + $0x60] sm:$0xff]
    %v89 = vld [vmem:[%s1 + $0x68] sm:$0xff]
    %v90 = vld [vmem:[%s1 + $0x70] sm:$0xff]
    %v91 = vld [vmem:[%s1 + $0x78] sm:$0xff]
    %s92 = scalar_lea.vmem %s1, 128
    %v93 = vld [vmem:[%s92] sm:$0xff]
    %v94 = vld [vmem:[%s92 + $0x8] sm:$0xff]
    %v95 = vld [vmem:[%s92 + $0x10] sm:$0xff]
    %v96 = vld [vmem:[%s92 + $0x18] sm:$0xff]
    %v97 = vld [vmem:[%s92 + $0x20] sm:$0xff]
    %v98 = vld [vmem:[%s92 + $0x28] sm:$0xff]
    %v99 = vld [vmem:[%s92 + $0x30] sm:$0xff]
    %v100 = vld [vmem:[%s92 + $0x38] sm:$0xff]
    %v101 = vld [vmem:[%s92 + $0x40] sm:$0xff]
    %v102 = vld [vmem:[%s92 + $0x48] sm:$0xff]
    %v103 = vld [vmem:[%s92 + $0x50] sm:$0xff]
    %v104 = vld [vmem:[%s92 + $0x58] sm:$0xff]
    %v105 = vld [vmem:[%s92 + $0x60] sm:$0xff]
    %v106 = vld [vmem:[%s92 + $0x68] sm:$0xff]
    %v107 = vld [vmem:[%s92 + $0x70] sm:$0xff]
    %v108 = vld [vmem:[%s92 + $0x78] sm:$0xff]
    %s109 = scalar_lea.vmem %s1, 256
    %v110 = vld [vmem:[%s109] sm:$0xff]
    %v111 = vld [vmem:[%s109 + $0x8] sm:$0xff]
    %v112 = vld [vmem:[%s109 + $0x10] sm:$0xff]
    %v113 = vld [vmem:[%s109 + $0x18] sm:$0xff]
    %v114 = vld [vmem:[%s109 + $0x20] sm:$0xff]
    %v115 = vld [vmem:[%s109 + $0x28] sm:$0xff]
    %v116 = vld [vmem:[%s109 + $0x30] sm:$0xff]
    %v117 = vld [vmem:[%s109 + $0x38] sm:$0xff]
    %v118 = vld [vmem:[%s109 + $0x40] sm:$0xff]
    %v119 = vld [vmem:[%s109 + $0x48] sm:$0xff]
    %v120 = vld [vmem:[%s109 + $0x50] sm:$0xff]
    %v121 = vld [vmem:[%s109 + $0x58] sm:$0xff]
    %v122 = vld [vmem:[%s109 + $0x60] sm:$0xff]
    %v123 = vld [vmem:[%s109 + $0x68] sm:$0xff]
    %v124 = vld [vmem:[%s109 + $0x70] sm:$0xff]
    %v125 = vld [vmem:[%s109 + $0x78] sm:$0xff]
    %v126 = vld [vmem:[%s2] sm:$0x1]
    %v127 = vld [vmem:[%s2 + $0x1] sm:$0x1]
    %v128 = vld [vmem:[%s2 + $0x2] sm:$0x1]
    %v129 = vld [vmem:[%s2 + $0x3] sm:$0x1]
    %s130 = scalar_lea.vmem %s2, 4
    %v131 = vld [vmem:[%s130] sm:$0x1]
    %v132 = vld [vmem:[%s130 + $0x1] sm:$0x1]
    %v133 = vld [vmem:[%s130 + $0x2] sm:$0x1]
    %v134 = vld [vmem:[%s130 + $0x3] sm:$0x1]
    %s135 = scalar_lea.vmem %s2, 8
    %v136 = vld [vmem:[%s135] sm:$0x1]
    %v137 = vld [vmem:[%s135 + $0x1] sm:$0x1]
    %v138 = vld [vmem:[%s135 + $0x2] sm:$0x1]
    %v139 = vld [vmem:[%s135 + $0x3] sm:$0x1]
    %v140 = vld [vmem:[%s3] sm:$0xff]
    %v141 = vld [vmem:[%s3 + $0x8] sm:$0xff]
    %v142 = vld [vmem:[%s3 + $0x10] sm:$0xff]
    %v143 = vld [vmem:[%s3 + $0x18] sm:$0xff]
    %v148 = vlaneseq
    %v149 = vshrl.u32 %v148, 7
    %v150 = vsub.s32 0, %v149
    %v151 = vrot.slane %v126, %v150
    %v152 = vlaneseq
    %v153 = vshrl.u32 %v152, 7
    %v154 = vsub.s32 0, %v153
    %v155 = vrot.slane %v127, %v154
    %v156 = vlaneseq
    %v157 = vshrl.u32 %v156, 7
    %v158 = vsub.s32 0, %v157
    %v159 = vrot.slane %v128, %v158
    %v160 = vlaneseq
    %v161 = vshrl.u32 %v160, 7
    %v162 = vsub.s32 0, %v161
    %v163 = vrot.slane %v129, %v162
    %v169 = vsel %vm36, %v74, 0
    %171 = vmatprep.subr.mxu0 0.0
    %172 = vmatpush1.msra.mxu0 %v76
    %173 = vmatprep.subr.mxu0 0.0
    %174 = vmatpush1.msra.mxu0 %v77
    %175 = vmatprep.subr.mxu0 0.0
    %176 = vmatpush1.msra.mxu0 %v78
    %177 = vmatprep.subr.mxu0 0.0
    %178 = vmatpush1.msra.mxu0 %v79
    %179 = vmatprep.subr.mxu0 0.0
    %180 = vmatpush1.msra.mxu0 0.0
    %181 = vmatprep.subr.mxu0 0.0
    %182 = vmatpush1.msra.mxu0 0.0
    %183 = vmatprep.subr.mxu0 0.0
    %184 = vmatpush1.msra.mxu0 0.0
    %185 = vmatprep.subr.mxu0 0.0
    %186 = vmatpush1.msra.mxu0 0.0
    %187 = vmatprep.subr.mxu0 0.0
    %188 = vmatpush1.msra.mxu0 0.0
    %189 = vmatprep.subr.mxu0 0.0
    %190 = vmatpush1.msra.mxu0 0.0
    %191 = vmatprep.subr.mxu0 0.0
    %192 = vmatpush1.msra.mxu0 0.0
    %193 = vmatprep.subr.mxu0 0.0
    %194 = vmatpush1.msra.mxu0 0.0
    %195 = vmatprep.subr.mxu0 0.0
    %196 = vmatpush1.msra.mxu0 0.0
    %197 = vmatprep.subr.mxu0 0.0
    %198 = vmatpush1.msra.mxu0 0.0
    %199 = vmatprep.subr.mxu0 0.0
    %200 = vmatpush1.msra.mxu0 0.0
    %201 = vmatprep.subr.mxu0 0.0
    %202 = vmatpush1.msra.mxu0 0.0
    %203 = vmatprep.subr.mxu0 0.0
    %204 = vmatpush1.msra.mxu0 0.0
    %205 = vmatprep.subr.mxu0 0.0
    %206 = vmatpush1.msra.mxu0 0.0
    %207 = vmatprep.subr.mxu0 0.0
    %208 = vmatpush1.msra.mxu0 0.0
    %209 = vmatprep.subr.mxu0 0.0
    %210 = vmatpush1.msra.mxu0 0.0
    %211 = vmatprep.subr.mxu0 0.0
    %212 = vmatpush1.msra.mxu0 0.0
    %213 = vmatprep.subr.mxu0 0.0
    %214 = vmatpush1.msra.mxu0 0.0
    %215 = vmatprep.subr.mxu0 0.0
    %216 = vmatpush1.msra.mxu0 0.0
    %217 = vmatprep.subr.mxu0 0.0
    %218 = vmatpush1.msra.mxu0 0.0
    %219 = vmatprep.subr.mxu0 0.0
    %220 = vmatpush1.msra.mxu0 0.0
    %221 = vmatprep.subr.mxu0 0.0
    %222 = vmatpush1.msra.mxu0 0.0
    %223 = vmatprep.subr.mxu0 0.0
    %224 = vmatpush1.msra.mxu0 0.0
    %225 = vmatprep.subr.mxu0 0.0
    %226 = vmatpush1.msra.mxu0 0.0
    %227 = vmatprep.subr.mxu0 0.0
    %228 = vmatpush1.msra.mxu0 0.0
    %229 = vmatprep.subr.mxu0 0.0
    %230 = vmatpush1.msra.mxu0 0.0
    %231 = vmatprep.subr.mxu0 0.0
    %232 = vmatpush1.msra.mxu0 0.0
    %233 = vmatprep.subr.mxu0 0.0
    %234 = vmatpush1.msra.mxu0 0.0
    %235 = vmatprep.mubr.f32.mxu0 0.0
    %236 = vmatmul.mubr.f32.gmra.mrb[0].mxu0 %v169
    %v237 = vpop.f32.mrb[0].mxu0
    %v238 = vadd.f32 %v151, %v237
    %v239 = vpop.f32.mrb[0].mxu0
    %240 = vdwg.mxu0
    %241 = vmatprep.subr.mxu0 0.0
    %242 = vmatpush1.msra.mxu0 %v80
    %243 = vmatprep.subr.mxu0 0.0
    %244 = vmatpush1.msra.mxu0 %v81
    %245 = vmatprep.subr.mxu0 0.0
    %246 = vmatpush1.msra.mxu0 %v82
    %247 = vmatprep.subr.mxu0 0.0
    %248 = vmatpush1.msra.mxu0 %v83
    %249 = vmatprep.subr.mxu0 0.0
    %250 = vmatpush1.msra.mxu0 0.0
    %251 = vmatprep.subr.mxu0 0.0
    %252 = vmatpush1.msra.mxu0 0.0
    %253 = vmatprep.subr.mxu0 0.0
    %254 = vmatpush1.msra.mxu0 0.0
    %255 = vmatprep.subr.mxu0 0.0
    %256 = vmatpush1.msra.mxu0 0.0
    %257 = vmatprep.subr.mxu0 0.0
    %258 = vmatpush1.msra.mxu0 0.0
    %259 = vmatprep.subr.mxu0 0.0
    %260 = vmatpush1.msra.mxu0 0.0
    %261 = vmatprep.subr.mxu0 0.0
    %262 = vmatpush1.msra.mxu0 0.0
    %263 = vmatprep.subr.mxu0 0.0
    %264 = vmatpush1.msra.mxu0 0.0
    %265 = vmatprep.subr.mxu0 0.0
    %266 = vmatpush1.msra.mxu0 0.0
    %267 = vmatprep.subr.mxu0 0.0
    %268 = vmatpush1.msra.mxu0 0.0
    %269 = vmatprep.subr.mxu0 0.0
    %270 = vmatpush1.msra.mxu0 0.0
    %271 = vmatprep.subr.mxu0 0.0
    %272 = vmatpush1.msra.mxu0 0.0
    %273 = vmatprep.subr.mxu0 0.0
    %274 = vmatpush1.msra.mxu0 0.0
    %275 = vmatprep.subr.mxu0 0.0
    %276 = vmatpush1.msra.mxu0 0.0
    %277 = vmatprep.subr.mxu0 0.0
    %278 = vmatpush1.msra.mxu0 0.0
    %279 = vmatprep.subr.mxu0 0.0
    %280 = vmatpush1.msra.mxu0 0.0
    %281 = vmatprep.subr.mxu0 0.0
    %282 = vmatpush1.msra.mxu0 0.0
    %283 = vmatprep.subr.mxu0 0.0
    %284 = vmatpush1.msra.mxu0 0.0
    %285 = vmatprep.subr.mxu0 0.0
    %286 = vmatpush1.msra.mxu0 0.0
    %287 = vmatprep.subr.mxu0 0.0
    %288 = vmatpush1.msra.mxu0 0.0
    %289 = vmatprep.subr.mxu0 0.0
    %290 = vmatpush1.msra.mxu0 0.0
    %291 = vmatprep.subr.mxu0 0.0
    %292 = vmatpush1.msra.mxu0 0.0
    %293 = vmatprep.subr.mxu0 0.0
    %294 = vmatpush1.msra.mxu0 0.0
    %295 = vmatprep.subr.mxu0 0.0
    %296 = vmatpush1.msra.mxu0 0.0
    %297 = vmatprep.subr.mxu0 0.0
    %298 = vmatpush1.msra.mxu0 0.0
    %299 = vmatprep.subr.mxu0 0.0
    %300 = vmatpush1.msra.mxu0 0.0
    %301 = vmatprep.subr.mxu0 0.0
    %302 = vmatpush1.msra.mxu0 0.0
    %303 = vmatprep.subr.mxu0 0.0
    %304 = vmatpush1.msra.mxu0 0.0
    %305 = vmatprep.mubr.f32.mxu0 0.0
    %306 = vmatmul.mubr.f32.gmra.mrb[0].mxu0 %v169
    %v307 = vpop.f32.mrb[0].mxu0
    %v308 = vadd.f32 %v155, %v307
    %v309 = vpop.f32.mrb[0].mxu0
    %310 = vdwg.mxu0
    %311 = vmatprep.subr.mxu0 0.0
    %312 = vmatpush1.msra.mxu0 %v84
    %313 = vmatprep.subr.mxu0 0.0
    %314 = vmatpush1.msra.mxu0 %v85
    %315 = vmatprep.subr.mxu0 0.0
    %316 = vmatpush1.msra.mxu0 %v86
    %317 = vmatprep.subr.mxu0 0.0
    %318 = vmatpush1.msra.mxu0 %v87
    %319 = vmatprep.subr.mxu0 0.0
    %320 = vmatpush1.msra.mxu0 0.0
    %321 = vmatprep.subr.mxu0 0.0
    %322 = vmatpush1.msra.mxu0 0.0
    %323 = vmatprep.subr.mxu0 0.0
    %324 = vmatpush1.msra.mxu0 0.0
    %325 = vmatprep.subr.mxu0 0.0
    %326 = vmatpush1.msra.mxu0 0.0
    %327 = vmatprep.subr.mxu0 0.0
    %328 = vmatpush1.msra.mxu0 0.0
    %329 = vmatprep.subr.mxu0 0.0
    %330 = vmatpush1.msra.mxu0 0.0
    %331 = vmatprep.subr.mxu0 0.0
    %332 = vmatpush1.msra.mxu0 0.0
    %333 = vmatprep.subr.mxu0 0.0
    %334 = vmatpush1.msra.mxu0 0.0
    %335 = vmatprep.subr.mxu0 0.0
    %336 = vmatpush1.msra.mxu0 0.0
    %337 = vmatprep.subr.mxu0 0.0
    %338 = vmatpush1.msra.mxu0 0.0
    %339 = vmatprep.subr.mxu0 0.0
    %340 = vmatpush1.msra.mxu0 0.0
    %341 = vmatprep.subr.mxu0 0.0
    %342 = vmatpush1.msra.mxu0 0.0
    %343 = vmatprep.subr.mxu0 0.0
    %344 = vmatpush1.msra.mxu0 0.0
    %345 = vmatprep.subr.mxu0 0.0
    %346 = vmatpush1.msra.mxu0 0.0
    %347 = vmatprep.subr.mxu0 0.0
    %348 = vmatpush1.msra.mxu0 0.0
    %349 = vmatprep.subr.mxu0 0.0
    %350 = vmatpush1.msra.mxu0 0.0
    %351 = vmatprep.subr.mxu0 0.0
    %352 = vmatpush1.msra.mxu0 0.0
    %353 = vmatprep.subr.mxu0 0.0
    %354 = vmatpush1.msra.mxu0 0.0
    %355 = vmatprep.subr.mxu0 0.0
    %356 = vmatpush1.msra.mxu0 0.0
    %357 = vmatprep.subr.mxu0 0.0
    %358 = vmatpush1.msra.mxu0 0.0
    %359 = vmatprep.subr.mxu0 0.0
    %360 = vmatpush1.msra.mxu0 0.0
    %361 = vmatprep.subr.mxu0 0.0
    %362 = vmatpush1.msra.mxu0 0.0
    %363 = vmatprep.subr.mxu0 0.0
    %364 = vmatpush1.msra.mxu0 0.0
    %365 = vmatprep.subr.mxu0 0.0
    %366 = vmatpush1.msra.mxu0 0.0
    %367 = vmatprep.subr.mxu0 0.0
    %368 = vmatpush1.msra.mxu0 0.0
    %369 = vmatprep.subr.mxu0 0.0
    %370 = vmatpush1.msra.mxu0 0.0
    %371 = vmatprep.subr.mxu0 0.0
    %372 = vmatpush1.msra.mxu0 0.0
    %373 = vmatprep.subr.mxu0 0.0
    %374 = vmatpush1.msra.mxu0 0.0
    %375 = vmatprep.mubr.f32.mxu0 0.0
    %376 = vmatmul.mubr.f32.gmra.mrb[0].mxu0 %v169
    %v377 = vpop.f32.mrb[0].mxu0
    %v378 = vadd.f32 %v159, %v377
    %v379 = vpop.f32.mrb[0].mxu0
    %380 = vdwg.mxu0
    %381 = vmatprep.subr.mxu0 0.0
    %382 = vmatpush1.msra.mxu0 %v88
    %383 = vmatprep.subr.mxu0 0.0
    %384 = vmatpush1.msra.mxu0 %v89
    %385 = vmatprep.subr.mxu0 0.0
    %386 = vmatpush1.msra.mxu0 %v90
    %387 = vmatprep.subr.mxu0 0.0
    %388 = vmatpush1.msra.mxu0 %v91
    %389 = vmatprep.subr.mxu0 0.0
    %390 = vmatpush1.msra.mxu0 0.0
    %391 = vmatprep.subr.mxu0 0.0
    %392 = vmatpush1.msra.mxu0 0.0
    %393 = vmatprep.subr.mxu0 0.0
    %394 = vmatpush1.msra.mxu0 0.0
    %395 = vmatprep.subr.mxu0 0.0
    %396 = vmatpush1.msra.mxu0 0.0
    %397 = vmatprep.subr.mxu0 0.0
    %398 = vmatpush1.msra.mxu0 0.0
    %399 = vmatprep.subr.mxu0 0.0
    %400 = vmatpush1.msra.mxu0 0.0
    %401 = vmatprep.subr.mxu0 0.0
    %402 = vmatpush1.msra.mxu0 0.0
    %403 = vmatprep.subr.mxu0 0.0
    %404 = vmatpush1.msra.mxu0 0.0
    %405 = vmatprep.subr.mxu0 0.0
    %406 = vmatpush1.msra.mxu0 0.0
    %407 = vmatprep.subr.mxu0 0.0
    %408 = vmatpush1.msra.mxu0 0.0
    %409 = vmatprep.subr.mxu0 0.0
    %410 = vmatpush1.msra.mxu0 0.0
    %411 = vmatprep.subr.mxu0 0.0
    %412 = vmatpush1.msra.mxu0 0.0
    %413 = vmatprep.subr.mxu0 0.0
    %414 = vmatpush1.msra.mxu0 0.0
    %415 = vmatprep.subr.mxu0 0.0
    %416 = vmatpush1.msra.mxu0 0.0
    %417 = vmatprep.subr.mxu0 0.0
    %418 = vmatpush1.msra.mxu0 0.0
    %419 = vmatprep.subr.mxu0 0.0
    %420 = vmatpush1.msra.mxu0 0.0
    %421 = vmatprep.subr.mxu0 0.0
    %422 = vmatpush1.msra.mxu0 0.0
    %423 = vmatprep.subr.mxu0 0.0
    %424 = vmatpush1.msra.mxu0 0.0
    %425 = vmatprep.subr.mxu0 0.0
    %426 = vmatpush1.msra.mxu0 0.0
    %427 = vmatprep.subr.mxu0 0.0
    %428 = vmatpush1.msra.mxu0 0.0
    %429 = vmatprep.subr.mxu0 0.0
    %430 = vmatpush1.msra.mxu0 0.0
    %431 = vmatprep.subr.mxu0 0.0
    %432 = vmatpush1.msra.mxu0 0.0
    %433 = vmatprep.subr.mxu0 0.0
    %434 = vmatpush1.msra.mxu0 0.0
    %435 = vmatprep.subr.mxu0 0.0
    %436 = vmatpush1.msra.mxu0 0.0
    %437 = vmatprep.subr.mxu0 0.0
    %438 = vmatpush1.msra.mxu0 0.0
    %439 = vmatprep.subr.mxu0 0.0
    %440 = vmatpush1.msra.mxu0 0.0
    %441 = vmatprep.subr.mxu0 0.0
    %442 = vmatpush1.msra.mxu0 0.0
    %443 = vmatprep.subr.mxu0 0.0
    %444 = vmatpush1.msra.mxu0 0.0
    %445 = vmatprep.mubr.f32.mxu0 0.0
    %446 = vmatmul.mubr.f32.gmra.mrb[0].mxu0 %v169
    %v447 = vpop.f32.mrb[0].mxu0
    %v448 = vadd.f32 %v163, %v447
    %v449 = vpop.f32.mrb[0].mxu0
    %450 = vdwg.mxu0
    %v455 = vlaneseq
    %v456 = vshrl.u32 %v455, 7
    %v457 = vsub.s32 0, %v456
    %v458 = vrot.slane %v131, %v457
    %v459 = vlaneseq
    %v460 = vshrl.u32 %v459, 7
    %v461 = vsub.s32 0, %v460
    %v462 = vrot.slane %v132, %v461
    %v463 = vlaneseq
    %v464 = vshrl.u32 %v463, 7
    %v465 = vsub.s32 0, %v464
    %v466 = vrot.slane %v133, %v465
    %v467 = vlaneseq
    %v468 = vshrl.u32 %v467, 7
    %v469 = vsub.s32 0, %v468
    %v470 = vrot.slane %v134, %v469
    %475 = vmatprep.subr.mxu0 0.0
    %476 = vmatpush1.msra.mxu0 %v93
    %477 = vmatprep.subr.mxu0 0.0
    %478 = vmatpush1.msra.mxu0 %v94
    %479 = vmatprep.subr.mxu0 0.0
    %480 = vmatpush1.msra.mxu0 %v95
    %481 = vmatprep.subr.mxu0 0.0
    %482 = vmatpush1.msra.mxu0 %v96
    %483 = vmatprep.subr.mxu0 0.0
    %484 = vmatpush1.msra.mxu0 0.0
    %485 = vmatprep.subr.mxu0 0.0
    %486 = vmatpush1.msra.mxu0 0.0
    %487 = vmatprep.subr.mxu0 0.0
    %488 = vmatpush1.msra.mxu0 0.0
    %489 = vmatprep.subr.mxu0 0.0
    %490 = vmatpush1.msra.mxu0 0.0
    %491 = vmatprep.subr.mxu0 0.0
    %492 = vmatpush1.msra.mxu0 0.0
    %493 = vmatprep.subr.mxu0 0.0
    %494 = vmatpush1.msra.mxu0 0.0
    %495 = vmatprep.subr.mxu0 0.0
    %496 = vmatpush1.msra.mxu0 0.0
    %497 = vmatprep.subr.mxu0 0.0
    %498 = vmatpush1.msra.mxu0 0.0
    %499 = vmatprep.subr.mxu0 0.0
    %500 = vmatpush1.msra.mxu0 0.0
    %501 = vmatprep.subr.mxu0 0.0
    %502 = vmatpush1.msra.mxu0 0.0
    %503 = vmatprep.subr.mxu0 0.0
    %504 = vmatpush1.msra.mxu0 0.0
    %505 = vmatprep.subr.mxu0 0.0
    %506 = vmatpush1.msra.mxu0 0.0
    %507 = vmatprep.subr.mxu0 0.0
    %508 = vmatpush1.msra.mxu0 0.0
    %509 = vmatprep.subr.mxu0 0.0
    %510 = vmatpush1.msra.mxu0 0.0
    %511 = vmatprep.subr.mxu0 0.0
    %512 = vmatpush1.msra.mxu0 0.0
    %513 = vmatprep.subr.mxu0 0.0
    %514 = vmatpush1.msra.mxu0 0.0
    %515 = vmatprep.subr.mxu0 0.0
    %516 = vmatpush1.msra.mxu0 0.0
    %517 = vmatprep.subr.mxu0 0.0
    %518 = vmatpush1.msra.mxu0 0.0
    %519 = vmatprep.subr.mxu0 0.0
    %520 = vmatpush1.msra.mxu0 0.0
    %521 = vmatprep.subr.mxu0 0.0
    %522 = vmatpush1.msra.mxu0 0.0
    %523 = vmatprep.subr.mxu0 0.0
    %524 = vmatpush1.msra.mxu0 0.0
    %525 = vmatprep.subr.mxu0 0.0
    %526 = vmatpush1.msra.mxu0 0.0
    %527 = vmatprep.subr.mxu0 0.0
    %528 = vmatpush1.msra.mxu0 0.0
    %529 = vmatprep.subr.mxu0 0.0
    %530 = vmatpush1.msra.mxu0 0.0
    %531 = vmatprep.subr.mxu0 0.0
    %532 = vmatpush1.msra.mxu0 0.0
    %533 = vmatprep.subr.mxu0 0.0
    %534 = vmatpush1.msra.mxu0 0.0
    %535 = vmatprep.subr.mxu0 0.0
    %536 = vmatpush1.msra.mxu0 0.0
    %537 = vmatprep.subr.mxu0 0.0
    %538 = vmatpush1.msra.mxu0 0.0
    %539 = vmatprep.mubr.f32.mxu0 0.0
    %540 = vmatmul.mubr.f32.gmra.mrb[0].mxu0 %v169
    %v541 = vpop.f32.mrb[0].mxu0
    %v542 = vadd.f32 %v458, %v541
    %v543 = vpop.f32.mrb[0].mxu0
    %544 = vdwg.mxu0
    %545 = vmatprep.subr.mxu0 0.0
    %546 = vmatpush1.msra.mxu0 %v97
    %547 = vmatprep.subr.mxu0 0.0
    %548 = vmatpush1.msra.mxu0 %v98
    %549 = vmatprep.subr.mxu0 0.0
    %550 = vmatpush1.msra.mxu0 %v99
    %551 = vmatprep.subr.mxu0 0.0
    %552 = vmatpush1.msra.mxu0 %v100
    %553 = vmatprep.subr.mxu0 0.0
    %554 = vmatpush1.msra.mxu0 0.0
    %555 = vmatprep.subr.mxu0 0.0
    %556 = vmatpush1.msra.mxu0 0.0
    %557 = vmatprep.subr.mxu0 0.0
    %558 = vmatpush1.msra.mxu0 0.0
    %559 = vmatprep.subr.mxu0 0.0
    %560 = vmatpush1.msra.mxu0 0.0
    %561 = vmatprep.subr.mxu0 0.0
    %562 = vmatpush1.msra.mxu0 0.0
    %563 = vmatprep.subr.mxu0 0.0
    %564 = vmatpush1.msra.mxu0 0.0
    %565 = vmatprep.subr.mxu0 0.0
    %566 = vmatpush1.msra.mxu0 0.0
    %567 = vmatprep.subr.mxu0 0.0
    %568 = vmatpush1.msra.mxu0 0.0
    %569 = vmatprep.subr.mxu0 0.0
    %570 = vmatpush1.msra.mxu0 0.0
    %571 = vmatprep.subr.mxu0 0.0
    %572 = vmatpush1.msra.mxu0 0.0
    %573 = vmatprep.subr.mxu0 0.0
    %574 = vmatpush1.msra.mxu0 0.0
    %575 = vmatprep.subr.mxu0 0.0
    %576 = vmatpush1.msra.mxu0 0.0
    %577 = vmatprep.subr.mxu0 0.0
    %578 = vmatpush1.msra.mxu0 0.0
    %579 = vmatprep.subr.mxu0 0.0
    %580 = vmatpush1.msra.mxu0 0.0
    %581 = vmatprep.subr.mxu0 0.0
    %582 = vmatpush1.msra.mxu0 0.0
    %583 = vmatprep.subr.mxu0 0.0
    %584 = vmatpush1.msra.mxu0 0.0
    %585 = vmatprep.subr.mxu0 0.0
    %586 = vmatpush1.msra.mxu0 0.0
    %587 = vmatprep.subr.mxu0 0.0
    %588 = vmatpush1.msra.mxu0 0.0
    %589 = vmatprep.subr.mxu0 0.0
    %590 = vmatpush1.msra.mxu0 0.0
    %591 = vmatprep.subr.mxu0 0.0
    %592 = vmatpush1.msra.mxu0 0.0
    %593 = vmatprep.subr.mxu0 0.0
    %594 = vmatpush1.msra.mxu0 0.0
    %595 = vmatprep.subr.mxu0 0.0
    %596 = vmatpush1.msra.mxu0 0.0
    %597 = vmatprep.subr.mxu0 0.0
    %598 = vmatpush1.msra.mxu0 0.0
    %599 = vmatprep.subr.mxu0 0.0
    %600 = vmatpush1.msra.mxu0 0.0
    %601 = vmatprep.subr.mxu0 0.0
    %602 = vmatpush1.msra.mxu0 0.0
    %603 = vmatprep.subr.mxu0 0.0
    %604 = vmatpush1.msra.mxu0 0.0
    %605 = vmatprep.subr.mxu0 0.0
    %606 = vmatpush1.msra.mxu0 0.0
    %607 = vmatprep.subr.mxu0 0.0
    %608 = vmatpush1.msra.mxu0 0.0
    %609 = vmatprep.mubr.f32.mxu0 0.0
    %610 = vmatmul.mubr.f32.gmra.mrb[0].mxu0 %v169
    %v611 = vpop.f32.mrb[0].mxu0
    %v612 = vadd.f32 %v462, %v611
    %v613 = vpop.f32.mrb[0].mxu0
    %614 = vdwg.mxu0
    %615 = vmatprep.subr.mxu0 0.0
    %616 = vmatpush1.msra.mxu0 %v101
    %617 = vmatprep.subr.mxu0 0.0
    %618 = vmatpush1.msra.mxu0 %v102
    %619 = vmatprep.subr.mxu0 0.0
    %620 = vmatpush1.msra.mxu0 %v103
    %621 = vmatprep.subr.mxu0 0.0
    %622 = vmatpush1.msra.mxu0 %v104
    %623 = vmatprep.subr.mxu0 0.0
    %624 = vmatpush1.msra.mxu0 0.0
    %625 = vmatprep.subr.mxu0 0.0
    %626 = vmatpush1.msra.mxu0 0.0
    %627 = vmatprep.subr.mxu0 0.0
    %628 = vmatpush1.msra.mxu0 0.0
    %629 = vmatprep.subr.mxu0 0.0
    %630 = vmatpush1.msra.mxu0 0.0
    %631 = vmatprep.subr.mxu0 0.0
    %632 = vmatpush1.msra.mxu0 0.0
    %633 = vmatprep.subr.mxu0 0.0
    %634 = vmatpush1.msra.mxu0 0.0
    %635 = vmatprep.subr.mxu0 0.0
    %636 = vmatpush1.msra.mxu0 0.0
    %637 = vmatprep.subr.mxu0 0.0
    %638 = vmatpush1.msra.mxu0 0.0
    %639 = vmatprep.subr.mxu0 0.0
    %640 = vmatpush1.msra.mxu0 0.0
    %641 = vmatprep.subr.mxu0 0.0
    %642 = vmatpush1.msra.mxu0 0.0
    %643 = vmatprep.subr.mxu0 0.0
    %644 = vmatpush1.msra.mxu0 0.0
    %645 = vmatprep.subr.mxu0 0.0
    %646 = vmatpush1.msra.mxu0 0.0
    %647 = vmatprep.subr.mxu0 0.0
    %648 = vmatpush1.msra.mxu0 0.0
    %649 = vmatprep.subr.mxu0 0.0
    %650 = vmatpush1.msra.mxu0 0.0
    %651 = vmatprep.subr.mxu0 0.0
    %652 = vmatpush1.msra.mxu0 0.0
    %653 = vmatprep.subr.mxu0 0.0
    %654 = vmatpush1.msra.mxu0 0.0
    %655 = vmatprep.subr.mxu0 0.0
    %656 = vmatpush1.msra.mxu0 0.0
    %657 = vmatprep.subr.mxu0 0.0
    %658 = vmatpush1.msra.mxu0 0.0
    %659 = vmatprep.subr.mxu0 0.0
    %660 = vmatpush1.msra.mxu0 0.0
    %661 = vmatprep.subr.mxu0 0.0
    %662 = vmatpush1.msra.mxu0 0.0
    %663 = vmatprep.subr.mxu0 0.0
    %664 = vmatpush1.msra.mxu0 0.0
    %665 = vmatprep.subr.mxu0 0.0
    %666 = vmatpush1.msra.mxu0 0.0
    %667 = vmatprep.subr.mxu0 0.0
    %668 = vmatpush1.msra.mxu0 0.0
    %669 = vmatprep.subr.mxu0 0.0
    %670 = vmatpush1.msra.mxu0 0.0
    %671 = vmatprep.subr.mxu0 0.0
    %672 = vmatpush1.msra.mxu0 0.0
    %673 = vmatprep.subr.mxu0 0.0
    %674 = vmatpush1.msra.mxu0 0.0
    %675 = vmatprep.subr.mxu0 0.0
    %676 = vmatpush1.msra.mxu0 0.0
    %677 = vmatprep.subr.mxu0 0.0
    %678 = vmatpush1.msra.mxu0 0.0
    %679 = vmatprep.mubr.f32.mxu0 0.0
    %680 = vmatmul.mubr.f32.gmra.mrb[0].mxu0 %v169
    %v681 = vpop.f32.mrb[0].mxu0
    %v682 = vadd.f32 %v466, %v681
    %v683 = vpop.f32.mrb[0].mxu0
    %684 = vdwg.mxu0
    %685 = vmatprep.subr.mxu0 0.0
    %686 = vmatpush1.msra.mxu0 %v105
    %687 = vmatprep.subr.mxu0 0.0
    %688 = vmatpush1.msra.mxu0 %v106
    %689 = vmatprep.subr.mxu0 0.0
    %690 = vmatpush1.msra.mxu0 %v107
    %691 = vmatprep.subr.mxu0 0.0
    %692 = vmatpush1.msra.mxu0 %v108
    %693 = vmatprep.subr.mxu0 0.0
    %694 = vmatpush1.msra.mxu0 0.0
    %695 = vmatprep.subr.mxu0 0.0
    %696 = vmatpush1.msra.mxu0 0.0
    %697 = vmatprep.subr.mxu0 0.0
    %698 = vmatpush1.msra.mxu0 0.0
    %699 = vmatprep.subr.mxu0 0.0
    %700 = vmatpush1.msra.mxu0 0.0
    %701 = vmatprep.subr.mxu0 0.0
    %702 = vmatpush1.msra.mxu0 0.0
    %703 = vmatprep.subr.mxu0 0.0
    %704 = vmatpush1.msra.mxu0 0.0
    %705 = vmatprep.subr.mxu0 0.0
    %706 = vmatpush1.msra.mxu0 0.0
    %707 = vmatprep.subr.mxu0 0.0
    %708 = vmatpush1.msra.mxu0 0.0
    %709 = vmatprep.subr.mxu0 0.0
    %710 = vmatpush1.msra.mxu0 0.0
    %711 = vmatprep.subr.mxu0 0.0
    %712 = vmatpush1.msra.mxu0 0.0
    %713 = vmatprep.subr.mxu0 0.0
    %714 = vmatpush1.msra.mxu0 0.0
    %715 = vmatprep.subr.mxu0 0.0
    %716 = vmatpush1.msra.mxu0 0.0
    %717 = vmatprep.subr.mxu0 0.0
    %718 = vmatpush1.msra.mxu0 0.0
    %719 = vmatprep.subr.mxu0 0.0
    %720 = vmatpush1.msra.mxu0 0.0
    %721 = vmatprep.subr.mxu0 0.0
    %722 = vmatpush1.msra.mxu0 0.0
    %723 = vmatprep.subr.mxu0 0.0
    %724 = vmatpush1.msra.mxu0 0.0
    %725 = vmatprep.subr.mxu0 0.0
    %726 = vmatpush1.msra.mxu0 0.0
    %727 = vmatprep.subr.mxu0 0.0
    %728 = vmatpush1.msra.mxu0 0.0
    %729 = vmatprep.subr.mxu0 0.0
    %730 = vmatpush1.msra.mxu0 0.0
    %731 = vmatprep.subr.mxu0 0.0
    %732 = vmatpush1.msra.mxu0 0.0
    %733 = vmatprep.subr.mxu0 0.0
    %734 = vmatpush1.msra.mxu0 0.0
    %735 = vmatprep.subr.mxu0 0.0
    %736 = vmatpush1.msra.mxu0 0.0
    %737 = vmatprep.subr.mxu0 0.0
    %738 = vmatpush1.msra.mxu0 0.0
    %739 = vmatprep.subr.mxu0 0.0
    %740 = vmatpush1.msra.mxu0 0.0
    %741 = vmatprep.subr.mxu0 0.0
    %742 = vmatpush1.msra.mxu0 0.0
    %743 = vmatprep.subr.mxu0 0.0
    %744 = vmatpush1.msra.mxu0 0.0
    %745 = vmatprep.subr.mxu0 0.0
    %746 = vmatpush1.msra.mxu0 0.0
    %747 = vmatprep.subr.mxu0 0.0
    %748 = vmatpush1.msra.mxu0 0.0
    %749 = vmatprep.mubr.f32.mxu0 0.0
    %750 = vmatmul.mubr.f32.gmra.mrb[0].mxu0 %v169
    %v751 = vpop.f32.mrb[0].mxu0
    %v752 = vadd.f32 %v470, %v751
    %v753 = vpop.f32.mrb[0].mxu0
    %754 = vdwg.mxu0
    %v759 = vlaneseq
    %v760 = vshrl.u32 %v759, 7
    %v761 = vsub.s32 0, %v760
    %v762 = vrot.slane %v136, %v761
    %v763 = vlaneseq
    %v764 = vshrl.u32 %v763, 7
    %v765 = vsub.s32 0, %v764
    %v766 = vrot.slane %v137, %v765
    %v767 = vlaneseq
    %v768 = vshrl.u32 %v767, 7
    %v769 = vsub.s32 0, %v768
    %v770 = vrot.slane %v138, %v769
    %v771 = vlaneseq
    %v772 = vshrl.u32 %v771, 7
    %v773 = vsub.s32 0, %v772
    %v774 = vrot.slane %v139, %v773
    %779 = vmatprep.subr.mxu0 0.0
    %780 = vmatpush1.msra.mxu0 %v110
    %781 = vmatprep.subr.mxu0 0.0
    %782 = vmatpush1.msra.mxu0 %v111
    %783 = vmatprep.subr.mxu0 0.0
    %784 = vmatpush1.msra.mxu0 %v112
    %785 = vmatprep.subr.mxu0 0.0
    %786 = vmatpush1.msra.mxu0 %v113
    %787 = vmatprep.subr.mxu0 0.0
    %788 = vmatpush1.msra.mxu0 0.0
    %789 = vmatprep.subr.mxu0 0.0
    %790 = vmatpush1.msra.mxu0 0.0
    %791 = vmatprep.subr.mxu0 0.0
    %792 = vmatpush1.msra.mxu0 0.0
    %793 = vmatprep.subr.mxu0 0.0
    %794 = vmatpush1.msra.mxu0 0.0
    %795 = vmatprep.subr.mxu0 0.0
    %796 = vmatpush1.msra.mxu0 0.0
    %797 = vmatprep.subr.mxu0 0.0
    %798 = vmatpush1.msra.mxu0 0.0
    %799 = vmatprep.subr.mxu0 0.0
    %800 = vmatpush1.msra.mxu0 0.0
    %801 = vmatprep.subr.mxu0 0.0
    %802 = vmatpush1.msra.mxu0 0.0
    %803 = vmatprep.subr.mxu0 0.0
    %804 = vmatpush1.msra.mxu0 0.0
    %805 = vmatprep.subr.mxu0 0.0
    %806 = vmatpush1.msra.mxu0 0.0
    %807 = vmatprep.subr.mxu0 0.0
    %808 = vmatpush1.msra.mxu0 0.0
    %809 = vmatprep.subr.mxu0 0.0
    %810 = vmatpush1.msra.mxu0 0.0
    %811 = vmatprep.subr.mxu0 0.0
    %812 = vmatpush1.msra.mxu0 0.0
    %813 = vmatprep.subr.mxu0 0.0
    %814 = vmatpush1.msra.mxu0 0.0
    %815 = vmatprep.subr.mxu0 0.0
    %816 = vmatpush1.msra.mxu0 0.0
    %817 = vmatprep.subr.mxu0 0.0
    %818 = vmatpush1.msra.mxu0 0.0
    %819 = vmatprep.subr.mxu0 0.0
    %820 = vmatpush1.msra.mxu0 0.0
    %821 = vmatprep.subr.mxu0 0.0
    %822 = vmatpush1.msra.mxu0 0.0
    %823 = vmatprep.subr.mxu0 0.0
    %824 = vmatpush1.msra.mxu0 0.0
    %825 = vmatprep.subr.mxu0 0.0
    %826 = vmatpush1.msra.mxu0 0.0
    %827 = vmatprep.subr.mxu0 0.0
    %828 = vmatpush1.msra.mxu0 0.0
    %829 = vmatprep.subr.mxu0 0.0
    %830 = vmatpush1.msra.mxu0 0.0
    %831 = vmatprep.subr.mxu0 0.0
    %832 = vmatpush1.msra.mxu0 0.0
    %833 = vmatprep.subr.mxu0 0.0
    %834 = vmatpush1.msra.mxu0 0.0
    %835 = vmatprep.subr.mxu0 0.0
    %836 = vmatpush1.msra.mxu0 0.0
    %837 = vmatprep.subr.mxu0 0.0
    %838 = vmatpush1.msra.mxu0 0.0
    %839 = vmatprep.subr.mxu0 0.0
    %840 = vmatpush1.msra.mxu0 0.0
    %841 = vmatprep.subr.mxu0 0.0
    %842 = vmatpush1.msra.mxu0 0.0
    %843 = vmatprep.mubr.f32.mxu0 0.0
    %844 = vmatmul.mubr.f32.gmra.mrb[0].mxu0 %v169
    %v845 = vpop.f32.mrb[0].mxu0
    %v846 = vadd.f32 %v762, %v845
    %v847 = vpop.f32.mrb[0].mxu0
    %848 = vdwg.mxu0
    %849 = vmatprep.subr.mxu0 0.0
    %850 = vmatpush1.msra.mxu0 %v114
    %851 = vmatprep.subr.mxu0 0.0
    %852 = vmatpush1.msra.mxu0 %v115
    %853 = vmatprep.subr.mxu0 0.0
    %854 = vmatpush1.msra.mxu0 %v116
    %855 = vmatprep.subr.mxu0 0.0
    %856 = vmatpush1.msra.mxu0 %v117
    %857 = vmatprep.subr.mxu0 0.0
    %858 = vmatpush1.msra.mxu0 0.0
    %859 = vmatprep.subr.mxu0 0.0
    %860 = vmatpush1.msra.mxu0 0.0
    %861 = vmatprep.subr.mxu0 0.0
    %862 = vmatpush1.msra.mxu0 0.0
    %863 = vmatprep.subr.mxu0 0.0
    %864 = vmatpush1.msra.mxu0 0.0
    %865 = vmatprep.subr.mxu0 0.0
    %866 = vmatpush1.msra.mxu0 0.0
    %867 = vmatprep.subr.mxu0 0.0
    %868 = vmatpush1.msra.mxu0 0.0
    %869 = vmatprep.subr.mxu0 0.0
    %870 = vmatpush1.msra.mxu0 0.0
    %871 = vmatprep.subr.mxu0 0.0
    %872 = vmatpush1.msra.mxu0 0.0
    %873 = vmatprep.subr.mxu0 0.0
    %874 = vmatpush1.msra.mxu0 0.0
    %875 = vmatprep.subr.mxu0 0.0
    %876 = vmatpush1.msra.mxu0 0.0
    %877 = vmatprep.subr.mxu0 0.0
    %878 = vmatpush1.msra.mxu0 0.0
    %879 = vmatprep.subr.mxu0 0.0
    %880 = vmatpush1.msra.mxu0 0.0
    %881 = vmatprep.subr.mxu0 0.0
    %882 = vmatpush1.msra.mxu0 0.0
    %883 = vmatprep.subr.mxu0 0.0
    %884 = vmatpush1.msra.mxu0 0.0
    %885 = vmatprep.subr.mxu0 0.0
    %886 = vmatpush1.msra.mxu0 0.0
    %887 = vmatprep.subr.mxu0 0.0
    %888 = vmatpush1.msra.mxu0 0.0
    %889 = vmatprep.subr.mxu0 0.0
    %890 = vmatpush1.msra.mxu0 0.0
    %891 = vmatprep.subr.mxu0 0.0
    %892 = vmatpush1.msra.mxu0 0.0
    %893 = vmatprep.subr.mxu0 0.0
    %894 = vmatpush1.msra.mxu0 0.0
    %895 = vmatprep.subr.mxu0 0.0
    %896 = vmatpush1.msra.mxu0 0.0
    %897 = vmatprep.subr.mxu0 0.0
    %898 = vmatpush1.msra.mxu0 0.0
    %899 = vmatprep.subr.mxu0 0.0
    %900 = vmatpush1.msra.mxu0 0.0
    %901 = vmatprep.subr.mxu0 0.0
    %902 = vmatpush1.msra.mxu0 0.0
    %903 = vmatprep.subr.mxu0 0.0
    %904 = vmatpush1.msra.mxu0 0.0
    %905 = vmatprep.subr.mxu0 0.0
    %906 = vmatpush1.msra.mxu0 0.0
    %907 = vmatprep.subr.mxu0 0.0
    %908 = vmatpush1.msra.mxu0 0.0
    %909 = vmatprep.subr.mxu0 0.0
    %910 = vmatpush1.msra.mxu0 0.0
    %911 = vmatprep.subr.mxu0 0.0
    %912 = vmatpush1.msra.mxu0 0.0
    %913 = vmatprep.mubr.f32.mxu0 0.0
    %914 = vmatmul.mubr.f32.gmra.mrb[0].mxu0 %v169
    %v915 = vpop.f32.mrb[0].mxu0
    %v916 = vadd.f32 %v766, %v915
    %v917 = vpop.f32.mrb[0].mxu0
    %918 = vdwg.mxu0
    %919 = vmatprep.subr.mxu0 0.0
    %920 = vmatpush1.msra.mxu0 %v118
    %921 = vmatprep.subr.mxu0 0.0
    %922 = vmatpush1.msra.mxu0 %v119
    %923 = vmatprep.subr.mxu0 0.0
    %924 = vmatpush1.msra.mxu0 %v120
    %925 = vmatprep.subr.mxu0 0.0
    %926 = vmatpush1.msra.mxu0 %v121
    %927 = vmatprep.subr.mxu0 0.0
    %928 = vmatpush1.msra.mxu0 0.0
    %929 = vmatprep.subr.mxu0 0.0
    %930 = vmatpush1.msra.mxu0 0.0
    %931 = vmatprep.subr.mxu0 0.0
    %932 = vmatpush1.msra.mxu0 0.0
    %933 = vmatprep.subr.mxu0 0.0
    %934 = vmatpush1.msra.mxu0 0.0
    %935 = vmatprep.subr.mxu0 0.0
    %936 = vmatpush1.msra.mxu0 0.0
    %937 = vmatprep.subr.mxu0 0.0
    %938 = vmatpush1.msra.mxu0 0.0
    %939 = vmatprep.subr.mxu0 0.0
    %940 = vmatpush1.msra.mxu0 0.0
    %941 = vmatprep.subr.mxu0 0.0
    %942 = vmatpush1.msra.mxu0 0.0
    %943 = vmatprep.subr.mxu0 0.0
    %944 = vmatpush1.msra.mxu0 0.0
    %945 = vmatprep.subr.mxu0 0.0
    %946 = vmatpush1.msra.mxu0 0.0
    %947 = vmatprep.subr.mxu0 0.0
    %948 = vmatpush1.msra.mxu0 0.0
    %949 = vmatprep.subr.mxu0 0.0
    %950 = vmatpush1.msra.mxu0 0.0
    %951 = vmatprep.subr.mxu0 0.0
    %952 = vmatpush1.msra.mxu0 0.0
    %953 = vmatprep.subr.mxu0 0.0
    %954 = vmatpush1.msra.mxu0 0.0
    %955 = vmatprep.subr.mxu0 0.0
    %956 = vmatpush1.msra.mxu0 0.0
    %957 = vmatprep.subr.mxu0 0.0
    %958 = vmatpush1.msra.mxu0 0.0
    %959 = vmatprep.subr.mxu0 0.0
    %960 = vmatpush1.msra.mxu0 0.0
    %961 = vmatprep.subr.mxu0 0.0
    %962 = vmatpush1.msra.mxu0 0.0
    %963 = vmatprep.subr.mxu0 0.0
    %964 = vmatpush1.msra.mxu0 0.0
    %965 = vmatprep.subr.mxu0 0.0
    %966 = vmatpush1.msra.mxu0 0.0
    %967 = vmatprep.subr.mxu0 0.0
    %968 = vmatpush1.msra.mxu0 0.0
    %969 = vmatprep.subr.mxu0 0.0
    %970 = vmatpush1.msra.mxu0 0.0
    %971 = vmatprep.subr.mxu0 0.0
    %972 = vmatpush1.msra.mxu0 0.0
    %973 = vmatprep.subr.mxu0 0.0
    %974 = vmatpush1.msra.mxu0 0.0
    %975 = vmatprep.subr.mxu0 0.0
    %976 = vmatpush1.msra.mxu0 0.0
    %977 = vmatprep.subr.mxu0 0.0
    %978 = vmatpush1.msra.mxu0 0.0
    %979 = vmatprep.subr.mxu0 0.0
    %980 = vmatpush1.msra.mxu0 0.0
    %981 = vmatprep.subr.mxu0 0.0
    %982 = vmatpush1.msra.mxu0 0.0
    %983 = vmatprep.mubr.f32.mxu0 0.0
    %984 = vmatmul.mubr.f32.gmra.mrb[0].mxu0 %v169
    %v985 = vpop.f32.mrb[0].mxu0
    %v986 = vadd.f32 %v770, %v985
    %v987 = vpop.f32.mrb[0].mxu0
    %988 = vdwg.mxu0
    %989 = vmatprep.subr.mxu0 0.0
    %990 = vmatpush1.msra.mxu0 %v122
    %991 = vmatprep.subr.mxu0 0.0
    %992 = vmatpush1.msra.mxu0 %v123
    %993 = vmatprep.subr.mxu0 0.0
    %994 = vmatpush1.msra.mxu0 %v124
    %995 = vmatprep.subr.mxu0 0.0
    %996 = vmatpush1.msra.mxu0 %v125
    %997 = vmatprep.subr.mxu0 0.0
    %998 = vmatpush1.msra.mxu0 0.0
    %999 = vmatprep.subr.mxu0 0.0
    %1000 = vmatpush1.msra.mxu0 0.0
    %1001 = vmatprep.subr.mxu0 0.0
    %1002 = vmatpush1.msra.mxu0 0.0
    %1003 = vmatprep.subr.mxu0 0.0
    %1004 = vmatpush1.msra.mxu0 0.0
    %1005 = vmatprep.subr.mxu0 0.0
    %1006 = vmatpush1.msra.mxu0 0.0
    %1007 = vmatprep.subr.mxu0 0.0
    %1008 = vmatpush1.msra.mxu0 0.0
    %1009 = vmatprep.subr.mxu0 0.0
    %1010 = vmatpush1.msra.mxu0 0.0
    %1011 = vmatprep.subr.mxu0 0.0
    %1012 = vmatpush1.msra.mxu0 0.0
    %1013 = vmatprep.subr.mxu0 0.0
    %1014 = vmatpush1.msra.mxu0 0.0
    %1015 = vmatprep.subr.mxu0 0.0
    %1016 = vmatpush1.msra.mxu0 0.0
    %1017 = vmatprep.subr.mxu0 0.0
    %1018 = vmatpush1.msra.mxu0 0.0
    %1019 = vmatprep.subr.mxu0 0.0
    %1020 = vmatpush1.msra.mxu0 0.0
    %1021 = vmatprep.subr.mxu0 0.0
    %1022 = vmatpush1.msra.mxu0 0.0
    %1023 = vmatprep.subr.mxu0 0.0
    %1024 = vmatpush1.msra.mxu0 0.0
    %1025 = vmatprep.subr.mxu0 0.0
    %1026 = vmatpush1.msra.mxu0 0.0
    %1027 = vmatprep.subr.mxu0 0.0
    %1028 = vmatpush1.msra.mxu0 0.0
    %1029 = vmatprep.subr.mxu0 0.0
    %1030 = vmatpush1.msra.mxu0 0.0
    %1031 = vmatprep.subr.mxu0 0.0
    %1032 = vmatpush1.msra.mxu0 0.0
    %1033 = vmatprep.subr.mxu0 0.0
    %1034 = vmatpush1.msra.mxu0 0.0
    %1035 = vmatprep.subr.mxu0 0.0
    %1036 = vmatpush1.msra.mxu0 0.0
    %1037 = vmatprep.subr.mxu0 0.0
    %1038 = vmatpush1.msra.mxu0 0.0
    %1039 = vmatprep.subr.mxu0 0.0
    %1040 = vmatpush1.msra.mxu0 0.0
    %1041 = vmatprep.subr.mxu0 0.0
    %1042 = vmatpush1.msra.mxu0 0.0
    %1043 = vmatprep.subr.mxu0 0.0
    %1044 = vmatpush1.msra.mxu0 0.0
    %1045 = vmatprep.subr.mxu0 0.0
    %1046 = vmatpush1.msra.mxu0 0.0
    %1047 = vmatprep.subr.mxu0 0.0
    %1048 = vmatpush1.msra.mxu0 0.0
    %1049 = vmatprep.subr.mxu0 0.0
    %1050 = vmatpush1.msra.mxu0 0.0
    %1051 = vmatprep.subr.mxu0 0.0
    %1052 = vmatpush1.msra.mxu0 0.0
    %1053 = vmatprep.mubr.f32.mxu0 0.0
    %1054 = vmatmul.mubr.f32.gmra.mrb[0].mxu0 %v169
    %v1055 = vpop.f32.mrb[0].mxu0
    %v1056 = vadd.f32 %v774, %v1055
    %v1057 = vpop.f32.mrb[0].mxu0
    %1058 = vdwg.mxu0
    %vm1059 = vcmask 64512
    %v1061 = vsel %vm1059, %v238, 0
    %v1064 = vsel %vm1059, %v542, 0
    %1066 = vmatprep.subr.mxu0 0.0
    %1067 = vmatpush1.xpose.msra.mxu0 %v1064
    %1068 = vmatprep.subr.mxu0 0.0
    %1069 = vmatpush1.xpose.msra.mxu0 0.0
    %1070 = vmatprep.subr.mxu0 0.0
    %1071 = vmatpush1.xpose.msra.mxu0 0.0
    %1072 = vmatprep.subr.mxu0 0.0
    %1073 = vmatpush1.xpose.msra.mxu0 0.0
    %1074 = vmatprep.subr.mxu0 0.0
    %1075 = vmatpush1.xpose.msra.mxu0 0.0
    %1076 = vmatprep.subr.mxu0 0.0
    %1077 = vmatpush1.xpose.msra.mxu0 0.0
    %1078 = vmatprep.subr.mxu0 0.0
    %1079 = vmatpush1.xpose.msra.mxu0 0.0
    %1080 = vmatprep.subr.mxu0 0.0
    %1081 = vmatpush1.xpose.msra.mxu0 0.0
    %1082 = vmatprep.subr.mxu0 0.0
    %1083 = vmatpush1.xpose.msra.mxu0 0.0
    %1084 = vmatprep.subr.mxu0 0.0
    %1085 = vmatpush1.xpose.msra.mxu0 0.0
    %1086 = vmatprep.subr.mxu0 0.0
    %1087 = vmatpush1.xpose.msra.mxu0 0.0
    %1088 = vmatprep.subr.mxu0 0.0
    %1089 = vmatpush1.xpose.msra.mxu0 0.0
    %1090 = vmatprep.subr.mxu0 0.0
    %1091 = vmatpush1.xpose.msra.mxu0 0.0
    %1092 = vmatprep.subr.mxu0 0.0
    %1093 = vmatpush1.xpose.msra.mxu0 0.0
    %1094 = vmatprep.subr.mxu0 0.0
    %1095 = vmatpush1.xpose.msra.mxu0 0.0
    %1096 = vmatprep.subr.mxu0 0.0
    %1097 = vmatpush1.xpose.msra.mxu0 0.0
    %1098 = vmatprep.subr.mxu0 0.0
    %1099 = vmatpush1.xpose.msra.mxu0 0.0
    %1100 = vmatprep.subr.mxu0 0.0
    %1101 = vmatpush1.xpose.msra.mxu0 0.0
    %1102 = vmatprep.subr.mxu0 0.0
    %1103 = vmatpush1.xpose.msra.mxu0 0.0
    %1104 = vmatprep.subr.mxu0 0.0
    %1105 = vmatpush1.xpose.msra.mxu0 0.0
    %1106 = vmatprep.subr.mxu0 0.0
    %1107 = vmatpush1.xpose.msra.mxu0 0.0
    %1108 = vmatprep.subr.mxu0 0.0
    %1109 = vmatpush1.xpose.msra.mxu0 0.0
    %1110 = vmatprep.subr.mxu0 0.0
    %1111 = vmatpush1.xpose.msra.mxu0 0.0
    %1112 = vmatprep.subr.mxu0 0.0
    %1113 = vmatpush1.xpose.msra.mxu0 0.0
    %1114 = vmatprep.subr.mxu0 0.0
    %1115 = vmatpush1.xpose.msra.mxu0 0.0
    %1116 = vmatprep.subr.mxu0 0.0
    %1117 = vmatpush1.xpose.msra.mxu0 0.0
    %1118 = vmatprep.subr.mxu0 0.0
    %1119 = vmatpush1.xpose.msra.mxu0 0.0
    %1120 = vmatprep.subr.mxu0 0.0
    %1121 = vmatpush1.xpose.msra.mxu0 0.0
    %1122 = vmatprep.subr.mxu0 0.0
    %1123 = vmatpush1.xpose.msra.mxu0 0.0
    %1124 = vmatprep.subr.mxu0 0.0
    %1125 = vmatpush1.xpose.msra.mxu0 0.0
    %1126 = vmatprep.subr.mxu0 0.0
    %1127 = vmatpush1.xpose.msra.mxu0 0.0
    %1128 = vmatprep.subr.mxu0 0.0
    %1129 = vmatpush1.xpose.msra.mxu0 0.0
    %1130 = vmatprep.mubr.f32.mxu0 0.0
    %1131 = vmatmul.mubr.f32.gmra.mrb[0].mxu0 %v1061
    %v1132 = vpop.f32.mrb[0].mxu0
    %v1133 = vadd.f32 0.0, %v1132
    %v1134 = vpop.f32.mrb[0].mxu0
    %1135 = vdwg.mxu0
    %v1137 = vsel %vm1059, %v308, 0
    %v1140 = vsel %vm1059, %v612, 0
    %1142 = vmatprep.subr.mxu0 0.0
    %1143 = vmatpush1.xpose.msra.mxu0 %v1140
    %1144 = vmatprep.subr.mxu0 0.0
    %1145 = vmatpush1.xpose.msra.mxu0 0.0
    %1146 = vmatprep.subr.mxu0 0.0
    %1147 = vmatpush1.xpose.msra.mxu0 0.0
    %1148 = vmatprep.subr.mxu0 0.0
    %1149 = vmatpush1.xpose.msra.mxu0 0.0
    %1150 = vmatprep.subr.mxu0 0.0
    %1151 = vmatpush1.xpose.msra.mxu0 0.0
    %1152 = vmatprep.subr.mxu0 0.0
    %1153 = vmatpush1.xpose.msra.mxu0 0.0
    %1154 = vmatprep.subr.mxu0 0.0
    %1155 = vmatpush1.xpose.msra.mxu0 0.0
    %1156 = vmatprep.subr.mxu0 0.0
    %1157 = vmatpush1.xpose.msra.mxu0 0.0
    %1158 = vmatprep.subr.mxu0 0.0
    %1159 = vmatpush1.xpose.msra.mxu0 0.0
    %1160 = vmatprep.subr.mxu0 0.0
    %1161 = vmatpush1.xpose.msra.mxu0 0.0
    %1162 = vmatprep.subr.mxu0 0.0
    %1163 = vmatpush1.xpose.msra.mxu0 0.0
    %1164 = vmatprep.subr.mxu0 0.0
    %1165 = vmatpush1.xpose.msra.mxu0 0.0
    %1166 = vmatprep.subr.mxu0 0.0
    %1167 = vmatpush1.xpose.msra.mxu0 0.0
    %1168 = vmatprep.subr.mxu0 0.0
    %1169 = vmatpush1.xpose.msra.mxu0 0.0
    %1170 = vmatprep.subr.mxu0 0.0
    %1171 = vmatpush1.xpose.msra.mxu0 0.0
    %1172 = vmatprep.subr.mxu0 0.0
    %1173 = vmatpush1.xpose.msra.mxu0 0.0
    %1174 = vmatprep.subr.mxu0 0.0
    %1175 = vmatpush1.xpose.msra.mxu0 0.0
    %1176 = vmatprep.subr.mxu0 0.0
    %1177 = vmatpush1.xpose.msra.mxu0 0.0
    %1178 = vmatprep.subr.mxu0 0.0
    %1179 = vmatpush1.xpose.msra.mxu0 0.0
    %1180 = vmatprep.subr.mxu0 0.0
    %1181 = vmatpush1.xpose.msra.mxu0 0.0
    %1182 = vmatprep.subr.mxu0 0.0
    %1183 = vmatpush1.xpose.msra.mxu0 0.0
    %1184 = vmatprep.subr.mxu0 0.0
    %1185 = vmatpush1.xpose.msra.mxu0 0.0
    %1186 = vmatprep.subr.mxu0 0.0
    %1187 = vmatpush1.xpose.msra.mxu0 0.0
    %1188 = vmatprep.subr.mxu0 0.0
    %1189 = vmatpush1.xpose.msra.mxu0 0.0
    %1190 = vmatprep.subr.mxu0 0.0
    %1191 = vmatpush1.xpose.msra.mxu0 0.0
    %1192 = vmatprep.subr.mxu0 0.0
    %1193 = vmatpush1.xpose.msra.mxu0 0.0
    %1194 = vmatprep.subr.mxu0 0.0
    %1195 = vmatpush1.xpose.msra.mxu0 0.0
    %1196 = vmatprep.subr.mxu0 0.0
    %1197 = vmatpush1.xpose.msra.mxu0 0.0
    %1198 = vmatprep.subr.mxu0 0.0
    %1199 = vmatpush1.xpose.msra.mxu0 0.0
    %1200 = vmatprep.subr.mxu0 0.0
    %1201 = vmatpush1.xpose.msra.mxu0 0.0
    %1202 = vmatprep.subr.mxu0 0.0
    %1203 = vmatpush1.xpose.msra.mxu0 0.0
    %1204 = vmatprep.subr.mxu0 0.0
    %1205 = vmatpush1.xpose.msra.mxu0 0.0
    %1206 = vmatprep.mubr.f32.mxu0 0.0
    %1207 = vmatmul.mubr.f32.gmra.mrb[0].mxu0 %v1137
    %v1208 = vpop.f32.mrb[0].mxu0
    %v1209 = vadd.f32 0.0, %v1208
    %v1210 = vpop.f32.mrb[0].mxu0
    %1211 = vdwg.mxu0
    %v1213 = vsel %vm1059, %v378, 0
    %v1216 = vsel %vm1059, %v682, 0
    %1218 = vmatprep.subr.mxu0 0.0
    %1219 = vmatpush1.xpose.msra.mxu0 %v1216
    %1220 = vmatprep.subr.mxu0 0.0
    %1221 = vmatpush1.xpose.msra.mxu0 0.0
    %1222 = vmatprep.subr.mxu0 0.0
    %1223 = vmatpush1.xpose.msra.mxu0 0.0
    %1224 = vmatprep.subr.mxu0 0.0
    %1225 = vmatpush1.xpose.msra.mxu0 0.0
    %1226 = vmatprep.subr.mxu0 0.0
    %1227 = vmatpush1.xpose.msra.mxu0 0.0
    %1228 = vmatprep.subr.mxu0 0.0
    %1229 = vmatpush1.xpose.msra.mxu0 0.0
    %1230 = vmatprep.subr.mxu0 0.0
    %1231 = vmatpush1.xpose.msra.mxu0 0.0
    %1232 = vmatprep.subr.mxu0 0.0
    %1233 = vmatpush1.xpose.msra.mxu0 0.0
    %1234 = vmatprep.subr.mxu0 0.0
    %1235 = vmatpush1.xpose.msra.mxu0 0.0
    %1236 = vmatprep.subr.mxu0 0.0
    %1237 = vmatpush1.xpose.msra.mxu0 0.0
    %1238 = vmatprep.subr.mxu0 0.0
    %1239 = vmatpush1.xpose.msra.mxu0 0.0
    %1240 = vmatprep.subr.mxu0 0.0
    %1241 = vmatpush1.xpose.msra.mxu0 0.0
    %1242 = vmatprep.subr.mxu0 0.0
    %1243 = vmatpush1.xpose.msra.mxu0 0.0
    %1244 = vmatprep.subr.mxu0 0.0
    %1245 = vmatpush1.xpose.msra.mxu0 0.0
    %1246 = vmatprep.subr.mxu0 0.0
    %1247 = vmatpush1.xpose.msra.mxu0 0.0
    %1248 = vmatprep.subr.mxu0 0.0
    %1249 = vmatpush1.xpose.msra.mxu0 0.0
    %1250 = vmatprep.subr.mxu0 0.0
    %1251 = vmatpush1.xpose.msra.mxu0 0.0
    %1252 = vmatprep.subr.mxu0 0.0
    %1253 = vmatpush1.xpose.msra.mxu0 0.0
    %1254 = vmatprep.subr.mxu0 0.0
    %1255 = vmatpush1.xpose.msra.mxu0 0.0
    %1256 = vmatprep.subr.mxu0 0.0
    %1257 = vmatpush1.xpose.msra.mxu0 0.0
    %1258 = vmatprep.subr.mxu0 0.0
    %1259 = vmatpush1.xpose.msra.mxu0 0.0
    %1260 = vmatprep.subr.mxu0 0.0
    %1261 = vmatpush1.xpose.msra.mxu0 0.0
    %1262 = vmatprep.subr.mxu0 0.0
    %1263 = vmatpush1.xpose.msra.mxu0 0.0
    %1264 = vmatprep.subr.mxu0 0.0
    %1265 = vmatpush1.xpose.msra.mxu0 0.0
    %1266 = vmatprep.subr.mxu0 0.0
    %1267 = vmatpush1.xpose.msra.mxu0 0.0
    %1268 = vmatprep.subr.mxu0 0.0
    %1269 = vmatpush1.xpose.msra.mxu0 0.0
    %1270 = vmatprep.subr.mxu0 0.0
    %1271 = vmatpush1.xpose.msra.mxu0 0.0
    %1272 = vmatprep.subr.mxu0 0.0
    %1273 = vmatpush1.xpose.msra.mxu0 0.0
    %1274 = vmatprep.subr.mxu0 0.0
    %1275 = vmatpush1.xpose.msra.mxu0 0.0
    %1276 = vmatprep.subr.mxu0 0.0
    %1277 = vmatpush1.xpose.msra.mxu0 0.0
    %1278 = vmatprep.subr.mxu0 0.0
    %1279 = vmatpush1.xpose.msra.mxu0 0.0
    %1280 = vmatprep.subr.mxu0 0.0
    %1281 = vmatpush1.xpose.msra.mxu0 0.0
    %1282 = vmatprep.mubr.f32.mxu0 0.0
    %1283 = vmatmul.mubr.f32.gmra.mrb[0].mxu0 %v1213
    %v1284 = vpop.f32.mrb[0].mxu0
    %v1285 = vadd.f32 0.0, %v1284
    %v1286 = vpop.f32.mrb[0].mxu0
    %1287 = vdwg.mxu0
    %v1289 = vsel %vm1059, %v448, 0
    %v1292 = vsel %vm1059, %v752, 0
    %1294 = vmatprep.subr.mxu0 0.0
    %1295 = vmatpush1.xpose.msra.mxu0 %v1292
    %1296 = vmatprep.subr.mxu0 0.0
    %1297 = vmatpush1.xpose.msra.mxu0 0.0
    %1298 = vmatprep.subr.mxu0 0.0
    %1299 = vmatpush1.xpose.msra.mxu0 0.0
    %1300 = vmatprep.subr.mxu0 0.0
    %1301 = vmatpush1.xpose.msra.mxu0 0.0
    %1302 = vmatprep.subr.mxu0 0.0
    %1303 = vmatpush1.xpose.msra.mxu0 0.0
    %1304 = vmatprep.subr.mxu0 0.0
    %1305 = vmatpush1.xpose.msra.mxu0 0.0
    %1306 = vmatprep.subr.mxu0 0.0
    %1307 = vmatpush1.xpose.msra.mxu0 0.0
    %1308 = vmatprep.subr.mxu0 0.0
    %1309 = vmatpush1.xpose.msra.mxu0 0.0
    %1310 = vmatprep.subr.mxu0 0.0
    %1311 = vmatpush1.xpose.msra.mxu0 0.0
    %1312 = vmatprep.subr.mxu0 0.0
    %1313 = vmatpush1.xpose.msra.mxu0 0.0
    %1314 = vmatprep.subr.mxu0 0.0
    %1315 = vmatpush1.xpose.msra.mxu0 0.0
    %1316 = vmatprep.subr.mxu0 0.0
    %1317 = vmatpush1.xpose.msra.mxu0 0.0
    %1318 = vmatprep.subr.mxu0 0.0
    %1319 = vmatpush1.xpose.msra.mxu0 0.0
    %1320 = vmatprep.subr.mxu0 0.0
    %1321 = vmatpush1.xpose.msra.mxu0 0.0
    %1322 = vmatprep.subr.mxu0 0.0
    %1323 = vmatpush1.xpose.msra.mxu0 0.0
    %1324 = vmatprep.subr.mxu0 0.0
    %1325 = vmatpush1.xpose.msra.mxu0 0.0
    %1326 = vmatprep.subr.mxu0 0.0
    %1327 = vmatpush1.xpose.msra.mxu0 0.0
    %1328 = vmatprep.subr.mxu0 0.0
    %1329 = vmatpush1.xpose.msra.mxu0 0.0
    %1330 = vmatprep.subr.mxu0 0.0
    %1331 = vmatpush1.xpose.msra.mxu0 0.0
    %1332 = vmatprep.subr.mxu0 0.0
    %1333 = vmatpush1.xpose.msra.mxu0 0.0
    %1334 = vmatprep.subr.mxu0 0.0
    %1335 = vmatpush1.xpose.msra.mxu0 0.0
    %1336 = vmatprep.subr.mxu0 0.0
    %1337 = vmatpush1.xpose.msra.mxu0 0.0
    %1338 = vmatprep.subr.mxu0 0.0
    %1339 = vmatpush1.xpose.msra.mxu0 0.0
    %1340 = vmatprep.subr.mxu0 0.0
    %1341 = vmatpush1.xpose.msra.mxu0 0.0
    %1342 = vmatprep.subr.mxu0 0.0
    %1343 = vmatpush1.xpose.msra.mxu0 0.0
    %1344 = vmatprep.subr.mxu0 0.0
    %1345 = vmatpush1.xpose.msra.mxu0 0.0
    %1346 = vmatprep.subr.mxu0 0.0
    %1347 = vmatpush1.xpose.msra.mxu0 0.0
    %1348 = vmatprep.subr.mxu0 0.0
    %1349 = vmatpush1.xpose.msra.mxu0 0.0
    %1350 = vmatprep.subr.mxu0 0.0
    %1351 = vmatpush1.xpose.msra.mxu0 0.0
    %1352 = vmatprep.subr.mxu0 0.0
    %1353 = vmatpush1.xpose.msra.mxu0 0.0
    %1354 = vmatprep.subr.mxu0 0.0
    %1355 = vmatpush1.xpose.msra.mxu0 0.0
    %1356 = vmatprep.subr.mxu0 0.0
    %1357 = vmatpush1.xpose.msra.mxu0 0.0
    %1358 = vmatprep.mubr.f32.mxu0 0.0
    %1359 = vmatmul.mubr.f32.gmra.mrb[0].mxu0 %v1289
    %v1360 = vpop.f32.mrb[0].mxu0
    %v1361 = vadd.f32 0.0, %v1360
    %v1362 = vpop.f32.mrb[0].mxu0
    %1363 = vdwg.mxu0
    %v1364 = vsel %vm1059, %v1133, -inf
    %1365 = vmax.xlane.f32.xlu0 %v1364
    %v1366 = vpop.xlane.xlu0 %1365
    %v1367 = vsel %vm1059, %v1209, -inf
    %1368 = vmax.xlane.f32.xlu0 %v1367
    %v1369 = vpop.xlane.xlu0 %1368
    %v1370 = vsel %vm1059, %v1285, -inf
    %1371 = vmax.xlane.f32.xlu0 %v1370
    %v1372 = vpop.xlane.xlu0 %1371
    %v1373 = vsel %vm1059, %v1361, -inf
    %1374 = vmax.xlane.f32.xlu0 %v1373
    %v1375 = vpop.xlane.xlu0 %1374
    %v1376 = vsub.f32 %v1133, %v1366
    %v1377 = vsub.f32 %v1209, %v1369
    %v1378 = vsub.f32 %v1285, %v1372
    %v1379 = vsub.f32 %v1361, %v1375
    %v1380 = vmul.f32 %v1376, 1.442695
    %v1381 = vpow.pop %v1380
    %v1382 = vmul.f32 %v1377, 1.442695
    %v1383 = vpow.pop %v1382
    %v1384 = vmul.f32 %v1378, 1.442695
    %v1385 = vpow.pop %v1384
    %v1386 = vmul.f32 %v1379, 1.442695
    %v1387 = vpow.pop %v1386
    %v1388 = vsel %vm1059, %v1381, 0.0
    %1389 = vadd.xlane.f32.xlu0 %v1388
    %v1390 = vpop.xlane.xlu0 %1389
    %v1391 = vsel %vm1059, %v1383, 0.0
    %1392 = vadd.xlane.f32.xlu0 %v1391
    %v1393 = vpop.xlane.xlu0 %1392
    %v1394 = vsel %vm1059, %v1385, 0.0
    %1395 = vadd.xlane.f32.xlu0 %v1394
    %v1396 = vpop.xlane.xlu0 %1395
    %v1397 = vsel %vm1059, %v1387, 0.0
    %1398 = vadd.xlane.f32.xlu0 %v1397
    %v1399 = vpop.xlane.xlu0 %1398
    %v1400 = vrcp.pop %v1390
    %v1401 = vrcp.pop %v1393
    %v1402 = vrcp.pop %v1396
    %v1403 = vrcp.pop %v1399
    %v1404 = vmul.f32 %v1381, %v1400
    %v1405 = vmul.f32 %v1383, %v1401
    %v1406 = vmul.f32 %v1385, %v1402
    %v1407 = vmul.f32 %v1387, %v1403
    %v1409 = vsel %vm1059, %v1404, 0
    %1411 = vmatprep.subr.mxu0 0.0
    %1412 = vmatpush1.msra.mxu0 %v846
    %1413 = vmatprep.subr.mxu0 0.0
    %1414 = vmatpush1.msra.mxu0 0.0
    %1415 = vmatprep.subr.mxu0 0.0
    %1416 = vmatpush1.msra.mxu0 0.0
    %1417 = vmatprep.subr.mxu0 0.0
    %1418 = vmatpush1.msra.mxu0 0.0
    %1419 = vmatprep.subr.mxu0 0.0
    %1420 = vmatpush1.msra.mxu0 0.0
    %1421 = vmatprep.subr.mxu0 0.0
    %1422 = vmatpush1.msra.mxu0 0.0
    %1423 = vmatprep.subr.mxu0 0.0
    %1424 = vmatpush1.msra.mxu0 0.0
    %1425 = vmatprep.subr.mxu0 0.0
    %1426 = vmatpush1.msra.mxu0 0.0
    %1427 = vmatprep.subr.mxu0 0.0
    %1428 = vmatpush1.msra.mxu0 0.0
    %1429 = vmatprep.subr.mxu0 0.0
    %1430 = vmatpush1.msra.mxu0 0.0
    %1431 = vmatprep.subr.mxu0 0.0
    %1432 = vmatpush1.msra.mxu0 0.0
    %1433 = vmatprep.subr.mxu0 0.0
    %1434 = vmatpush1.msra.mxu0 0.0
    %1435 = vmatprep.subr.mxu0 0.0
    %1436 = vmatpush1.msra.mxu0 0.0
    %1437 = vmatprep.subr.mxu0 0.0
    %1438 = vmatpush1.msra.mxu0 0.0
    %1439 = vmatprep.subr.mxu0 0.0
    %1440 = vmatpush1.msra.mxu0 0.0
    %1441 = vmatprep.subr.mxu0 0.0
    %1442 = vmatpush1.msra.mxu0 0.0
    %1443 = vmatprep.subr.mxu0 0.0
    %1444 = vmatpush1.msra.mxu0 0.0
    %1445 = vmatprep.subr.mxu0 0.0
    %1446 = vmatpush1.msra.mxu0 0.0
    %1447 = vmatprep.subr.mxu0 0.0
    %1448 = vmatpush1.msra.mxu0 0.0
    %1449 = vmatprep.subr.mxu0 0.0
    %1450 = vmatpush1.msra.mxu0 0.0
    %1451 = vmatprep.subr.mxu0 0.0
    %1452 = vmatpush1.msra.mxu0 0.0
    %1453 = vmatprep.subr.mxu0 0.0
    %1454 = vmatpush1.msra.mxu0 0.0
    %1455 = vmatprep.subr.mxu0 0.0
    %1456 = vmatpush1.msra.mxu0 0.0
    %1457 = vmatprep.subr.mxu0 0.0
    %1458 = vmatpush1.msra.mxu0 0.0
    %1459 = vmatprep.subr.mxu0 0.0
    %1460 = vmatpush1.msra.mxu0 0.0
    %1461 = vmatprep.subr.mxu0 0.0
    %1462 = vmatpush1.msra.mxu0 0.0
    %1463 = vmatprep.subr.mxu0 0.0
    %1464 = vmatpush1.msra.mxu0 0.0
    %1465 = vmatprep.subr.mxu0 0.0
    %1466 = vmatpush1.msra.mxu0 0.0
    %1467 = vmatprep.subr.mxu0 0.0
    %1468 = vmatpush1.msra.mxu0 0.0
    %1469 = vmatprep.subr.mxu0 0.0
    %1470 = vmatpush1.msra.mxu0 0.0
    %1471 = vmatprep.subr.mxu0 0.0
    %1472 = vmatpush1.msra.mxu0 0.0
    %1473 = vmatprep.subr.mxu0 0.0
    %1474 = vmatpush1.msra.mxu0 0.0
    %1475 = vmatprep.mubr.f32.mxu0 0.0
    %1476 = vmatmul.mubr.f32.gmra.mrb[0].mxu0 %v1409
    %v1477 = vpop.f32.mrb[0].mxu0
    %v1478 = vadd.f32 0.0, %v1477
    %v1479 = vpop.f32.mrb[0].mxu0
    %1480 = vdwg.mxu0
    %v1482 = vsel %vm1059, %v1405, 0
    %1484 = vmatprep.subr.mxu0 0.0
    %1485 = vmatpush1.msra.mxu0 %v916
    %1486 = vmatprep.subr.mxu0 0.0
    %1487 = vmatpush1.msra.mxu0 0.0
    %1488 = vmatprep.subr.mxu0 0.0
    %1489 = vmatpush1.msra.mxu0 0.0
    %1490 = vmatprep.subr.mxu0 0.0
    %1491 = vmatpush1.msra.mxu0 0.0
    %1492 = vmatprep.subr.mxu0 0.0
    %1493 = vmatpush1.msra.mxu0 0.0
    %1494 = vmatprep.subr.mxu0 0.0
    %1495 = vmatpush1.msra.mxu0 0.0
    %1496 = vmatprep.subr.mxu0 0.0
    %1497 = vmatpush1.msra.mxu0 0.0
    %1498 = vmatprep.subr.mxu0 0.0
    %1499 = vmatpush1.msra.mxu0 0.0
    %1500 = vmatprep.subr.mxu0 0.0
    %1501 = vmatpush1.msra.mxu0 0.0
    %1502 = vmatprep.subr.mxu0 0.0
    %1503 = vmatpush1.msra.mxu0 0.0
    %1504 = vmatprep.subr.mxu0 0.0
    %1505 = vmatpush1.msra.mxu0 0.0
    %1506 = vmatprep.subr.mxu0 0.0
    %1507 = vmatpush1.msra.mxu0 0.0
    %1508 = vmatprep.subr.mxu0 0.0
    %1509 = vmatpush1.msra.mxu0 0.0
    %1510 = vmatprep.subr.mxu0 0.0
    %1511 = vmatpush1.msra.mxu0 0.0
    %1512 = vmatprep.subr.mxu0 0.0
    %1513 = vmatpush1.msra.mxu0 0.0
    %1514 = vmatprep.subr.mxu0 0.0
    %1515 = vmatpush1.msra.mxu0 0.0
    %1516 = vmatprep.subr.mxu0 0.0
    %1517 = vmatpush1.msra.mxu0 0.0
    %1518 = vmatprep.subr.mxu0 0.0
    %1519 = vmatpush1.msra.mxu0 0.0
    %1520 = vmatprep.subr.mxu0 0.0
    %1521 = vmatpush1.msra.mxu0 0.0
    %1522 = vmatprep.subr.mxu0 0.0
    %1523 = vmatpush1.msra.mxu0 0.0
    %1524 = vmatprep.subr.mxu0 0.0
    %1525 = vmatpush1.msra.mxu0 0.0
    %1526 = vmatprep.subr.mxu0 0.0
    %1527 = vmatpush1.msra.mxu0 0.0
    %1528 = vmatprep.subr.mxu0 0.0
    %1529 = vmatpush1.msra.mxu0 0.0
    %1530 = vmatprep.subr.mxu0 0.0
    %1531 = vmatpush1.msra.mxu0 0.0
    %1532 = vmatprep.subr.mxu0 0.0
    %1533 = vmatpush1.msra.mxu0 0.0
    %1534 = vmatprep.subr.mxu0 0.0
    %1535 = vmatpush1.msra.mxu0 0.0
    %1536 = vmatprep.subr.mxu0 0.0
    %1537 = vmatpush1.msra.mxu0 0.0
    %1538 = vmatprep.subr.mxu0 0.0
    %1539 = vmatpush1.msra.mxu0 0.0
    %1540 = vmatprep.subr.mxu0 0.0
    %1541 = vmatpush1.msra.mxu0 0.0
    %1542 = vmatprep.subr.mxu0 0.0
    %1543 = vmatpush1.msra.mxu0 0.0
    %1544 = vmatprep.subr.mxu0 0.0
    %1545 = vmatpush1.msra.mxu0 0.0
    %1546 = vmatprep.subr.mxu0 0.0
    %1547 = vmatpush1.msra.mxu0 0.0
    %1548 = vmatprep.mubr.f32.mxu0 0.0
    %1549 = vmatmul.mubr.f32.gmra.mrb[0].mxu0 %v1482
    %v1550 = vpop.f32.mrb[0].mxu0
    %v1551 = vadd.f32 0.0, %v1550
    %v1552 = vpop.f32.mrb[0].mxu0
    %1553 = vdwg.mxu0
    %v1555 = vsel %vm1059, %v1406, 0
    %1557 = vmatprep.subr.mxu0 0.0
    %1558 = vmatpush1.msra.mxu0 %v986
    %1559 = vmatprep.subr.mxu0 0.0
    %1560 = vmatpush1.msra.mxu0 0.0
    %1561 = vmatprep.subr.mxu0 0.0
    %1562 = vmatpush1.msra.mxu0 0.0
    %1563 = vmatprep.subr.mxu0 0.0
    %1564 = vmatpush1.msra.mxu0 0.0
    %1565 = vmatprep.subr.mxu0 0.0
    %1566 = vmatpush1.msra.mxu0 0.0
    %1567 = vmatprep.subr.mxu0 0.0
    %1568 = vmatpush1.msra.mxu0 0.0
    %1569 = vmatprep.subr.mxu0 0.0
    %1570 = vmatpush1.msra.mxu0 0.0
    %1571 = vmatprep.subr.mxu0 0.0
    %1572 = vmatpush1.msra.mxu0 0.0
    %1573 = vmatprep.subr.mxu0 0.0
    %1574 = vmatpush1.msra.mxu0 0.0
    %1575 = vmatprep.subr.mxu0 0.0
    %1576 = vmatpush1.msra.mxu0 0.0
    %1577 = vmatprep.subr.mxu0 0.0
    %1578 = vmatpush1.msra.mxu0 0.0
    %1579 = vmatprep.subr.mxu0 0.0
    %1580 = vmatpush1.msra.mxu0 0.0
    %1581 = vmatprep.subr.mxu0 0.0
    %1582 = vmatpush1.msra.mxu0 0.0
    %1583 = vmatprep.subr.mxu0 0.0
    %1584 = vmatpush1.msra.mxu0 0.0
    %1585 = vmatprep.subr.mxu0 0.0
    %1586 = vmatpush1.msra.mxu0 0.0
    %1587 = vmatprep.subr.mxu0 0.0
    %1588 = vmatpush1.msra.mxu0 0.0
    %1589 = vmatprep.subr.mxu0 0.0
    %1590 = vmatpush1.msra.mxu0 0.0
    %1591 = vmatprep.subr.mxu0 0.0
    %1592 = vmatpush1.msra.mxu0 0.0
    %1593 = vmatprep.subr.mxu0 0.0
    %1594 = vmatpush1.msra.mxu0 0.0
    %1595 = vmatprep.subr.mxu0 0.0
    %1596 = vmatpush1.msra.mxu0 0.0
    %1597 = vmatprep.subr.mxu0 0.0
    %1598 = vmatpush1.msra.mxu0 0.0
    %1599 = vmatprep.subr.mxu0 0.0
    %1600 = vmatpush1.msra.mxu0 0.0
    %1601 = vmatprep.subr.mxu0 0.0
    %1602 = vmatpush1.msra.mxu0 0.0
    %1603 = vmatprep.subr.mxu0 0.0
    %1604 = vmatpush1.msra.mxu0 0.0
    %1605 = vmatprep.subr.mxu0 0.0
    %1606 = vmatpush1.msra.mxu0 0.0
    %1607 = vmatprep.subr.mxu0 0.0
    %1608 = vmatpush1.msra.mxu0 0.0
    %1609 = vmatprep.subr.mxu0 0.0
    %1610 = vmatpush1.msra.mxu0 0.0
    %1611 = vmatprep.subr.mxu0 0.0
    %1612 = vmatpush1.msra.mxu0 0.0
    %1613 = vmatprep.subr.mxu0 0.0
    %1614 = vmatpush1.msra.mxu0 0.0
    %1615 = vmatprep.subr.mxu0 0.0
    %1616 = vmatpush1.msra.mxu0 0.0
    %1617 = vmatprep.subr.mxu0 0.0
    %1618 = vmatpush1.msra.mxu0 0.0
    %1619 = vmatprep.subr.mxu0 0.0
    %1620 = vmatpush1.msra.mxu0 0.0
    %1621 = vmatprep.mubr.f32.mxu0 0.0
    %1622 = vmatmul.mubr.f32.gmra.mrb[0].mxu0 %v1555
    %v1623 = vpop.f32.mrb[0].mxu0
    %v1624 = vadd.f32 0.0, %v1623
    %v1625 = vpop.f32.mrb[0].mxu0
    %1626 = vdwg.mxu0
    %v1628 = vsel %vm1059, %v1407, 0
    %1630 = vmatprep.subr.mxu0 0.0
    %1631 = vmatpush1.msra.mxu0 %v1056
    %1632 = vmatprep.subr.mxu0 0.0
    %1633 = vmatpush1.msra.mxu0 0.0
    %1634 = vmatprep.subr.mxu0 0.0
    %1635 = vmatpush1.msra.mxu0 0.0
    %1636 = vmatprep.subr.mxu0 0.0
    %1637 = vmatpush1.msra.mxu0 0.0
    %1638 = vmatprep.subr.mxu0 0.0
    %1639 = vmatpush1.msra.mxu0 0.0
    %1640 = vmatprep.subr.mxu0 0.0
    %1641 = vmatpush1.msra.mxu0 0.0
    %1642 = vmatprep.subr.mxu0 0.0
    %1643 = vmatpush1.msra.mxu0 0.0
    %1644 = vmatprep.subr.mxu0 0.0
    %1645 = vmatpush1.msra.mxu0 0.0
    %1646 = vmatprep.subr.mxu0 0.0
    %1647 = vmatpush1.msra.mxu0 0.0
    %1648 = vmatprep.subr.mxu0 0.0
    %1649 = vmatpush1.msra.mxu0 0.0
    %1650 = vmatprep.subr.mxu0 0.0
    %1651 = vmatpush1.msra.mxu0 0.0
    %1652 = vmatprep.subr.mxu0 0.0
    %1653 = vmatpush1.msra.mxu0 0.0
    %1654 = vmatprep.subr.mxu0 0.0
    %1655 = vmatpush1.msra.mxu0 0.0
    %1656 = vmatprep.subr.mxu0 0.0
    %1657 = vmatpush1.msra.mxu0 0.0
    %1658 = vmatprep.subr.mxu0 0.0
    %1659 = vmatpush1.msra.mxu0 0.0
    %1660 = vmatprep.subr.mxu0 0.0
    %1661 = vmatpush1.msra.mxu0 0.0
    %1662 = vmatprep.subr.mxu0 0.0
    %1663 = vmatpush1.msra.mxu0 0.0
    %1664 = vmatprep.subr.mxu0 0.0
    %1665 = vmatpush1.msra.mxu0 0.0
    %1666 = vmatprep.subr.mxu0 0.0
    %1667 = vmatpush1.msra.mxu0 0.0
    %1668 = vmatprep.subr.mxu0 0.0
    %1669 = vmatpush1.msra.mxu0 0.0
    %1670 = vmatprep.subr.mxu0 0.0
    %1671 = vmatpush1.msra.mxu0 0.0
    %1672 = vmatprep.subr.mxu0 0.0
    %1673 = vmatpush1.msra.mxu0 0.0
    %1674 = vmatprep.subr.mxu0 0.0
    %1675 = vmatpush1.msra.mxu0 0.0
    %1676 = vmatprep.subr.mxu0 0.0
    %1677 = vmatpush1.msra.mxu0 0.0
    %1678 = vmatprep.subr.mxu0 0.0
    %1679 = vmatpush1.msra.mxu0 0.0
    %1680 = vmatprep.subr.mxu0 0.0
    %1681 = vmatpush1.msra.mxu0 0.0
    %1682 = vmatprep.subr.mxu0 0.0
    %1683 = vmatpush1.msra.mxu0 0.0
    %1684 = vmatprep.subr.mxu0 0.0
    %1685 = vmatpush1.msra.mxu0 0.0
    %1686 = vmatprep.subr.mxu0 0.0
    %1687 = vmatpush1.msra.mxu0 0.0
    %1688 = vmatprep.subr.mxu0 0.0
    %1689 = vmatpush1.msra.mxu0 0.0
    %1690 = vmatprep.subr.mxu0 0.0
    %1691 = vmatpush1.msra.mxu0 0.0
    %1692 = vmatprep.subr.mxu0 0.0
    %1693 = vmatpush1.msra.mxu0 0.0
    %1694 = vmatprep.mubr.f32.mxu0 0.0
    %1695 = vmatmul.mubr.f32.gmra.mrb[0].mxu0 %v1628
    %v1696 = vpop.f32.mrb[0].mxu0
    %v1697 = vadd.f32 0.0, %v1696
    %v1698 = vpop.f32.mrb[0].mxu0
    %1699 = vdwg.mxu0
    %v1701 = vsel %vm1059, %v1478, 0
    %1703 = vmatprep.subr.mxu0 0.0
    %1704 = vmatpush1.msra.mxu0 %v140
    %1705 = vmatprep.subr.mxu0 0.0
    %1706 = vmatpush1.msra.mxu0 0.0
    %1707 = vmatprep.subr.mxu0 0.0
    %1708 = vmatpush1.msra.mxu0 0.0
    %1709 = vmatprep.subr.mxu0 0.0
    %1710 = vmatpush1.msra.mxu0 0.0
    %1711 = vmatprep.subr.mxu0 0.0
    %1712 = vmatpush1.msra.mxu0 0.0
    %1713 = vmatprep.subr.mxu0 0.0
    %1714 = vmatpush1.msra.mxu0 0.0
    %1715 = vmatprep.subr.mxu0 0.0
    %1716 = vmatpush1.msra.mxu0 0.0
    %1717 = vmatprep.subr.mxu0 0.0
    %1718 = vmatpush1.msra.mxu0 0.0
    %1719 = vmatprep.subr.mxu0 0.0
    %1720 = vmatpush1.msra.mxu0 0.0
    %1721 = vmatprep.subr.mxu0 0.0
    %1722 = vmatpush1.msra.mxu0 0.0
    %1723 = vmatprep.subr.mxu0 0.0
    %1724 = vmatpush1.msra.mxu0 0.0
    %1725 = vmatprep.subr.mxu0 0.0
    %1726 = vmatpush1.msra.mxu0 0.0
    %1727 = vmatprep.subr.mxu0 0.0
    %1728 = vmatpush1.msra.mxu0 0.0
    %1729 = vmatprep.subr.mxu0 0.0
    %1730 = vmatpush1.msra.mxu0 0.0
    %1731 = vmatprep.subr.mxu0 0.0
    %1732 = vmatpush1.msra.mxu0 0.0
    %1733 = vmatprep.subr.mxu0 0.0
    %1734 = vmatpush1.msra.mxu0 0.0
    %1735 = vmatprep.subr.mxu0 0.0
    %1736 = vmatpush1.msra.mxu0 0.0
    %1737 = vmatprep.subr.mxu0 0.0
    %1738 = vmatpush1.msra.mxu0 0.0
    %1739 = vmatprep.subr.mxu0 0.0
    %1740 = vmatpush1.msra.mxu0 0.0
    %1741 = vmatprep.subr.mxu0 0.0
    %1742 = vmatpush1.msra.mxu0 0.0
    %1743 = vmatprep.subr.mxu0 0.0
    %1744 = vmatpush1.msra.mxu0 0.0
    %1745 = vmatprep.subr.mxu0 0.0
    %1746 = vmatpush1.msra.mxu0 0.0
    %1747 = vmatprep.subr.mxu0 0.0
    %1748 = vmatpush1.msra.mxu0 0.0
    %1749 = vmatprep.subr.mxu0 0.0
    %1750 = vmatpush1.msra.mxu0 0.0
    %1751 = vmatprep.subr.mxu0 0.0
    %1752 = vmatpush1.msra.mxu0 0.0
    %1753 = vmatprep.subr.mxu0 0.0
    %1754 = vmatpush1.msra.mxu0 0.0
    %1755 = vmatprep.subr.mxu0 0.0
    %1756 = vmatpush1.msra.mxu0 0.0
    %1757 = vmatprep.subr.mxu0 0.0
    %1758 = vmatpush1.msra.mxu0 0.0
    %1759 = vmatprep.subr.mxu0 0.0
    %1760 = vmatpush1.msra.mxu0 0.0
    %1761 = vmatprep.subr.mxu0 0.0
    %1762 = vmatpush1.msra.mxu0 0.0
    %1763 = vmatprep.subr.mxu0 0.0
    %1764 = vmatpush1.msra.mxu0 0.0
    %1765 = vmatprep.subr.mxu0 0.0
    %1766 = vmatpush1.msra.mxu0 0.0
    %1767 = vmatprep.mubr.f32.mxu0 0.0
    %1768 = vmatmul.mubr.f32.gmra.mrb[0].mxu0 %v1701
    %v1769 = vpop.f32.mrb[0].mxu0
    %v1770 = vadd.f32 0.0, %v1769
    %v1771 = vpop.f32.mrb[0].mxu0
    %1772 = vdwg.mxu0
    %v1774 = vsel %vm1059, %v1551, 0
    %1776 = vmatprep.subr.mxu0 0.0
    %1777 = vmatpush1.msra.mxu0 %v141
    %1778 = vmatprep.subr.mxu0 0.0
    %1779 = vmatpush1.msra.mxu0 0.0
    %1780 = vmatprep.subr.mxu0 0.0
    %1781 = vmatpush1.msra.mxu0 0.0
    %1782 = vmatprep.subr.mxu0 0.0
    %1783 = vmatpush1.msra.mxu0 0.0
    %1784 = vmatprep.subr.mxu0 0.0
    %1785 = vmatpush1.msra.mxu0 0.0
    %1786 = vmatprep.subr.mxu0 0.0
    %1787 = vmatpush1.msra.mxu0 0.0
    %1788 = vmatprep.subr.mxu0 0.0
    %1789 = vmatpush1.msra.mxu0 0.0
    %1790 = vmatprep.subr.mxu0 0.0
    %1791 = vmatpush1.msra.mxu0 0.0
    %1792 = vmatprep.subr.mxu0 0.0
    %1793 = vmatpush1.msra.mxu0 0.0
    %1794 = vmatprep.subr.mxu0 0.0
    %1795 = vmatpush1.msra.mxu0 0.0
    %1796 = vmatprep.subr.mxu0 0.0
    %1797 = vmatpush1.msra.mxu0 0.0
    %1798 = vmatprep.subr.mxu0 0.0
    %1799 = vmatpush1.msra.mxu0 0.0
    %1800 = vmatprep.subr.mxu0 0.0
    %1801 = vmatpush1.msra.mxu0 0.0
    %1802 = vmatprep.subr.mxu0 0.0
    %1803 = vmatpush1.msra.mxu0 0.0
    %1804 = vmatprep.subr.mxu0 0.0
    %1805 = vmatpush1.msra.mxu0 0.0
    %1806 = vmatprep.subr.mxu0 0.0
    %1807 = vmatpush1.msra.mxu0 0.0
    %1808 = vmatprep.subr.mxu0 0.0
    %1809 = vmatpush1.msra.mxu0 0.0
    %1810 = vmatprep.subr.mxu0 0.0
    %1811 = vmatpush1.msra.mxu0 0.0
    %1812 = vmatprep.subr.mxu0 0.0
    %1813 = vmatpush1.msra.mxu0 0.0
    %1814 = vmatprep.subr.mxu0 0.0
    %1815 = vmatpush1.msra.mxu0 0.0
    %1816 = vmatprep.subr.mxu0 0.0
    %1817 = vmatpush1.msra.mxu0 0.0
    %1818 = vmatprep.subr.mxu0 0.0
    %1819 = vmatpush1.msra.mxu0 0.0
    %1820 = vmatprep.subr.mxu0 0.0
    %1821 = vmatpush1.msra.mxu0 0.0
    %1822 = vmatprep.subr.mxu0 0.0
    %1823 = vmatpush1.msra.mxu0 0.0
    %1824 = vmatprep.subr.mxu0 0.0
    %1825 = vmatpush1.msra.mxu0 0.0
    %1826 = vmatprep.subr.mxu0 0.0
    %1827 = vmatpush1.msra.mxu0 0.0
    %1828 = vmatprep.subr.mxu0 0.0
    %1829 = vmatpush1.msra.mxu0 0.0
    %1830 = vmatprep.subr.mxu0 0.0
    %1831 = vmatpush1.msra.mxu0 0.0
    %1832 = vmatprep.subr.mxu0 0.0
    %1833 = vmatpush1.msra.mxu0 0.0
    %1834 = vmatprep.subr.mxu0 0.0
    %1835 = vmatpush1.msra.mxu0 0.0
    %1836 = vmatprep.subr.mxu0 0.0
    %1837 = vmatpush1.msra.mxu0 0.0
    %1838 = vmatprep.subr.mxu0 0.0
    %1839 = vmatpush1.msra.mxu0 0.0
    %1840 = vmatprep.mubr.f32.mxu0 0.0
    %1841 = vmatmul.mubr.f32.gmra.mrb[0].mxu0 %v1774
    %v1842 = vpop.f32.mrb[0].mxu0
    %v1843 = vadd.f32 0.0, %v1842
    %v1844 = vpop.f32.mrb[0].mxu0
    %1845 = vdwg.mxu0
    %v1847 = vsel %vm1059, %v1624, 0
    %1849 = vmatprep.subr.mxu0 0.0
    %1850 = vmatpush1.msra.mxu0 %v142
    %1851 = vmatprep.subr.mxu0 0.0
    %1852 = vmatpush1.msra.mxu0 0.0
    %1853 = vmatprep.subr.mxu0 0.0
    %1854 = vmatpush1.msra.mxu0 0.0
    %1855 = vmatprep.subr.mxu0 0.0
    %1856 = vmatpush1.msra.mxu0 0.0
    %1857 = vmatprep.subr.mxu0 0.0
    %1858 = vmatpush1.msra.mxu0 0.0
    %1859 = vmatprep.subr.mxu0 0.0
    %1860 = vmatpush1.msra.mxu0 0.0
    %1861 = vmatprep.subr.mxu0 0.0
    %1862 = vmatpush1.msra.mxu0 0.0
    %1863 = vmatprep.subr.mxu0 0.0
    %1864 = vmatpush1.msra.mxu0 0.0
    %1865 = vmatprep.subr.mxu0 0.0
    %1866 = vmatpush1.msra.mxu0 0.0
    %1867 = vmatprep.subr.mxu0 0.0
    %1868 = vmatpush1.msra.mxu0 0.0
    %1869 = vmatprep.subr.mxu0 0.0
    %1870 = vmatpush1.msra.mxu0 0.0
    %1871 = vmatprep.subr.mxu0 0.0
    %1872 = vmatpush1.msra.mxu0 0.0
    %1873 = vmatprep.subr.mxu0 0.0
    %1874 = vmatpush1.msra.mxu0 0.0
    %1875 = vmatprep.subr.mxu0 0.0
    %1876 = vmatpush1.msra.mxu0 0.0
    %1877 = vmatprep.subr.mxu0 0.0
    %1878 = vmatpush1.msra.mxu0 0.0
    %1879 = vmatprep.subr.mxu0 0.0
    %1880 = vmatpush1.msra.mxu0 0.0
    %1881 = vmatprep.subr.mxu0 0.0
    %1882 = vmatpush1.msra.mxu0 0.0
    %1883 = vmatprep.subr.mxu0 0.0
    %1884 = vmatpush1.msra.mxu0 0.0
    %1885 = vmatprep.subr.mxu0 0.0
    %1886 = vmatpush1.msra.mxu0 0.0
    %1887 = vmatprep.subr.mxu0 0.0
    %1888 = vmatpush1.msra.mxu0 0.0
    %1889 = vmatprep.subr.mxu0 0.0
    %1890 = vmatpush1.msra.mxu0 0.0
    %1891 = vmatprep.subr.mxu0 0.0
    %1892 = vmatpush1.msra.mxu0 0.0
    %1893 = vmatprep.subr.mxu0 0.0
    %1894 = vmatpush1.msra.mxu0 0.0
    %1895 = vmatprep.subr.mxu0 0.0
    %1896 = vmatpush1.msra.mxu0 0.0
    %1897 = vmatprep.subr.mxu0 0.0
    %1898 = vmatpush1.msra.mxu0 0.0
    %1899 = vmatprep.subr.mxu0 0.0
    %1900 = vmatpush1.msra.mxu0 0.0
    %1901 = vmatprep.subr.mxu0 0.0
    %1902 = vmatpush1.msra.mxu0 0.0
    %1903 = vmatprep.subr.mxu0 0.0
    %1904 = vmatpush1.msra.mxu0 0.0
    %1905 = vmatprep.subr.mxu0 0.0
    %1906 = vmatpush1.msra.mxu0 0.0
    %1907 = vmatprep.subr.mxu0 0.0
    %1908 = vmatpush1.msra.mxu0 0.0
    %1909 = vmatprep.subr.mxu0 0.0
    %1910 = vmatpush1.msra.mxu0 0.0
    %1911 = vmatprep.subr.mxu0 0.0
    %1912 = vmatpush1.msra.mxu0 0.0
    %1913 = vmatprep.mubr.f32.mxu0 0.0
    %1914 = vmatmul.mubr.f32.gmra.mrb[0].mxu0 %v1847
    %v1915 = vpop.f32.mrb[0].mxu0
    %v1916 = vadd.f32 0.0, %v1915
    %v1917 = vpop.f32.mrb[0].mxu0
    %1918 = vdwg.mxu0
    %v1920 = vsel %vm1059, %v1697, 0
    %1922 = vmatprep.subr.mxu0 0.0
    %1923 = vmatpush1.msra.mxu0 %v143
    %1924 = vmatprep.subr.mxu0 0.0
    %1925 = vmatpush1.msra.mxu0 0.0
    %1926 = vmatprep.subr.mxu0 0.0
    %1927 = vmatpush1.msra.mxu0 0.0
    %1928 = vmatprep.subr.mxu0 0.0
    %1929 = vmatpush1.msra.mxu0 0.0
    %1930 = vmatprep.subr.mxu0 0.0
    %1931 = vmatpush1.msra.mxu0 0.0
    %1932 = vmatprep.subr.mxu0 0.0
    %1933 = vmatpush1.msra.mxu0 0.0
    %1934 = vmatprep.subr.mxu0 0.0
    %1935 = vmatpush1.msra.mxu0 0.0
    %1936 = vmatprep.subr.mxu0 0.0
    %1937 = vmatpush1.msra.mxu0 0.0
    %1938 = vmatprep.subr.mxu0 0.0
    %1939 = vmatpush1.msra.mxu0 0.0
    %1940 = vmatprep.subr.mxu0 0.0
    %1941 = vmatpush1.msra.mxu0 0.0
    %1942 = vmatprep.subr.mxu0 0.0
    %1943 = vmatpush1.msra.mxu0 0.0
    %1944 = vmatprep.subr.mxu0 0.0
    %1945 = vmatpush1.msra.mxu0 0.0
    %1946 = vmatprep.subr.mxu0 0.0
    %1947 = vmatpush1.msra.mxu0 0.0
    %1948 = vmatprep.subr.mxu0 0.0
    %1949 = vmatpush1.msra.mxu0 0.0
    %1950 = vmatprep.subr.mxu0 0.0
    %1951 = vmatpush1.msra.mxu0 0.0
    %1952 = vmatprep.subr.mxu0 0.0
    %1953 = vmatpush1.msra.mxu0 0.0
    %1954 = vmatprep.subr.mxu0 0.0
    %1955 = vmatpush1.msra.mxu0 0.0
    %1956 = vmatprep.subr.mxu0 0.0
    %1957 = vmatpush1.msra.mxu0 0.0
    %1958 = vmatprep.subr.mxu0 0.0
    %1959 = vmatpush1.msra.mxu0 0.0
    %1960 = vmatprep.subr.mxu0 0.0
    %1961 = vmatpush1.msra.mxu0 0.0
    %1962 = vmatprep.subr.mxu0 0.0
    %1963 = vmatpush1.msra.mxu0 0.0
    %1964 = vmatprep.subr.mxu0 0.0
    %1965 = vmatpush1.msra.mxu0 0.0
    %1966 = vmatprep.subr.mxu0 0.0
    %1967 = vmatpush1.msra.mxu0 0.0
    %1968 = vmatprep.subr.mxu0 0.0
    %1969 = vmatpush1.msra.mxu0 0.0
    %1970 = vmatprep.subr.mxu0 0.0
    %1971 = vmatpush1.msra.mxu0 0.0
    %1972 = vmatprep.subr.mxu0 0.0
    %1973 = vmatpush1.msra.mxu0 0.0
    %1974 = vmatprep.subr.mxu0 0.0
    %1975 = vmatpush1.msra.mxu0 0.0
    %1976 = vmatprep.subr.mxu0 0.0
    %1977 = vmatpush1.msra.mxu0 0.0
    %1978 = vmatprep.subr.mxu0 0.0
    %1979 = vmatpush1.msra.mxu0 0.0
    %1980 = vmatprep.subr.mxu0 0.0
    %1981 = vmatpush1.msra.mxu0 0.0
    %1982 = vmatprep.subr.mxu0 0.0
    %1983 = vmatpush1.msra.mxu0 0.0
    %1984 = vmatprep.subr.mxu0 0.0
    %1985 = vmatpush1.msra.mxu0 0.0
    %1986 = vmatprep.mubr.f32.mxu0 0.0
    %1987 = vmatmul.mubr.f32.gmra.mrb[0].mxu0 %v1920
    %v1988 = vpop.f32.mrb[0].mxu0
    %v1989 = vadd.f32 0.0, %v1988
    %v1990 = vpop.f32.mrb[0].mxu0
    %1991 = vdwg.mxu0
    %v1992 = vsel %vm36, %v1770, 0.0
    %v1993 = vsel %vm36, %v1843, 0.0
    %v1994 = vadd.f32 %v1992, %v1993
    %v1995 = vsel %vm36, %v1916, 0.0
    %v1996 = vadd.f32 %v1994, %v1995
    %v1997 = vsel %vm36, %v1989, 0.0
    %v1998 = vadd.f32 %v1996, %v1997
    %v2000 = vsel %vm36, %v75, 0
    %2002 = vmatprep.subr.mxu0 0.0
    %2003 = vmatpush1.msra.mxu0 %v76
    %2004 = vmatprep.subr.mxu0 0.0
    %2005 = vmatpush1.msra.mxu0 %v77
    %2006 = vmatprep.subr.mxu0 0.0
    %2007 = vmatpush1.msra.mxu0 %v78
    %2008 = vmatprep.subr.mxu0 0.0
    %2009 = vmatpush1.msra.mxu0 %v79
    %2010 = vmatprep.subr.mxu0 0.0
    %2011 = vmatpush1.msra.mxu0 0.0
    %2012 = vmatprep.subr.mxu0 0.0
    %2013 = vmatpush1.msra.mxu0 0.0
    %2014 = vmatprep.subr.mxu0 0.0
    %2015 = vmatpush1.msra.mxu0 0.0
    %2016 = vmatprep.subr.mxu0 0.0
    %2017 = vmatpush1.msra.mxu0 0.0
    %2018 = vmatprep.subr.mxu0 0.0
    %2019 = vmatpush1.msra.mxu0 0.0
    %2020 = vmatprep.subr.mxu0 0.0
    %2021 = vmatpush1.msra.mxu0 0.0
    %2022 = vmatprep.subr.mxu0 0.0
    %2023 = vmatpush1.msra.mxu0 0.0
    %2024 = vmatprep.subr.mxu0 0.0
    %2025 = vmatpush1.msra.mxu0 0.0
    %2026 = vmatprep.subr.mxu0 0.0
    %2027 = vmatpush1.msra.mxu0 0.0
    %2028 = vmatprep.subr.mxu0 0.0
    %2029 = vmatpush1.msra.mxu0 0.0
    %2030 = vmatprep.subr.mxu0 0.0
    %2031 = vmatpush1.msra.mxu0 0.0
    %2032 = vmatprep.subr.mxu0 0.0
    %2033 = vmatpush1.msra.mxu0 0.0
    %2034 = vmatprep.subr.mxu0 0.0
    %2035 = vmatpush1.msra.mxu0 0.0
    %2036 = vmatprep.subr.mxu0 0.0
    %2037 = vmatpush1.msra.mxu0 0.0
    %2038 = vmatprep.subr.mxu0 0.0
    %2039 = vmatpush1.msra.mxu0 0.0
    %2040 = vmatprep.subr.mxu0 0.0
    %2041 = vmatpush1.msra.mxu0 0.0
    %2042 = vmatprep.subr.mxu0 0.0
    %2043 = vmatpush1.msra.mxu0 0.0
    %2044 = vmatprep.subr.mxu0 0.0
    %2045 = vmatpush1.msra.mxu0 0.0
    %2046 = vmatprep.subr.mxu0 0.0
    %2047 = vmatpush1.msra.mxu0 0.0
    %2048 = vmatprep.subr.mxu0 0.0
    %2049 = vmatpush1.msra.mxu0 0.0
    %2050 = vmatprep.subr.mxu0 0.0
    %2051 = vmatpush1.msra.mxu0 0.0
    %2052 = vmatprep.subr.mxu0 0.0
    %2053 = vmatpush1.msra.mxu0 0.0
    %2054 = vmatprep.subr.mxu0 0.0
    %2055 = vmatpush1.msra.mxu0 0.0
    %2056 = vmatprep.subr.mxu0 0.0
    %2057 = vmatpush1.msra.mxu0 0.0
    %2058 = vmatprep.subr.mxu0 0.0
    %2059 = vmatpush1.msra.mxu0 0.0
    %2060 = vmatprep.subr.mxu0 0.0
    %2061 = vmatpush1.msra.mxu0 0.0
    %2062 = vmatprep.subr.mxu0 0.0
    %2063 = vmatpush1.msra.mxu0 0.0
    %2064 = vmatprep.subr.mxu0 0.0
    %2065 = vmatpush1.msra.mxu0 0.0
    %2066 = vmatprep.mubr.f32.mxu0 0.0
    %2067 = vmatmul.mubr.f32.gmra.mrb[0].mxu0 %v2000
    %v2068 = vpop.f32.mrb[0].mxu0
    %v2069 = vadd.f32 %v151, %v2068
    %v2070 = vpop.f32.mrb[0].mxu0
    %2071 = vdwg.mxu0
    %2072 = vmatprep.subr.mxu0 0.0
    %2073 = vmatpush1.msra.mxu0 %v80
    %2074 = vmatprep.subr.mxu0 0.0
    %2075 = vmatpush1.msra.mxu0 %v81
    %2076 = vmatprep.subr.mxu0 0.0
    %2077 = vmatpush1.msra.mxu0 %v82
    %2078 = vmatprep.subr.mxu0 0.0
    %2079 = vmatpush1.msra.mxu0 %v83
    %2080 = vmatprep.subr.mxu0 0.0
    %2081 = vmatpush1.msra.mxu0 0.0
    %2082 = vmatprep.subr.mxu0 0.0
    %2083 = vmatpush1.msra.mxu0 0.0
    %2084 = vmatprep.subr.mxu0 0.0
    %2085 = vmatpush1.msra.mxu0 0.0
    %2086 = vmatprep.subr.mxu0 0.0
    %2087 = vmatpush1.msra.mxu0 0.0
    %2088 = vmatprep.subr.mxu0 0.0
    %2089 = vmatpush1.msra.mxu0 0.0
    %2090 = vmatprep.subr.mxu0 0.0
    %2091 = vmatpush1.msra.mxu0 0.0
    %2092 = vmatprep.subr.mxu0 0.0
    %2093 = vmatpush1.msra.mxu0 0.0
    %2094 = vmatprep.subr.mxu0 0.0
    %2095 = vmatpush1.msra.mxu0 0.0
    %2096 = vmatprep.subr.mxu0 0.0
    %2097 = vmatpush1.msra.mxu0 0.0
    %2098 = vmatprep.subr.mxu0 0.0
    %2099 = vmatpush1.msra.mxu0 0.0
    %2100 = vmatprep.subr.mxu0 0.0
    %2101 = vmatpush1.msra.mxu0 0.0
    %2102 = vmatprep.subr.mxu0 0.0
    %2103 = vmatpush1.msra.mxu0 0.0
    %2104 = vmatprep.subr.mxu0 0.0
    %2105 = vmatpush1.msra.mxu0 0.0
    %2106 = vmatprep.subr.mxu0 0.0
    %2107 = vmatpush1.msra.mxu0 0.0
    %2108 = vmatprep.subr.mxu0 0.0
    %2109 = vmatpush1.msra.mxu0 0.0
    %2110 = vmatprep.subr.mxu0 0.0
    %2111 = vmatpush1.msra.mxu0 0.0
    %2112 = vmatprep.subr.mxu0 0.0
    %2113 = vmatpush1.msra.mxu0 0.0
    %2114 = vmatprep.subr.mxu0 0.0
    %2115 = vmatpush1.msra.mxu0 0.0
    %2116 = vmatprep.subr.mxu0 0.0
    %2117 = vmatpush1.msra.mxu0 0.0
    %2118 = vmatprep.subr.mxu0 0.0
    %2119 = vmatpush1.msra.mxu0 0.0
    %2120 = vmatprep.subr.mxu0 0.0
    %2121 = vmatpush1.msra.mxu0 0.0
    %2122 = vmatprep.subr.mxu0 0.0
    %2123 = vmatpush1.msra.mxu0 0.0
    %2124 = vmatprep.subr.mxu0 0.0
    %2125 = vmatpush1.msra.mxu0 0.0
    %2126 = vmatprep.subr.mxu0 0.0
    %2127 = vmatpush1.msra.mxu0 0.0
    %2128 = vmatprep.subr.mxu0 0.0
    %2129 = vmatpush1.msra.mxu0 0.0
    %2130 = vmatprep.subr.mxu0 0.0
    %2131 = vmatpush1.msra.mxu0 0.0
    %2132 = vmatprep.subr.mxu0 0.0
    %2133 = vmatpush1.msra.mxu0 0.0
    %2134 = vmatprep.subr.mxu0 0.0
    %2135 = vmatpush1.msra.mxu0 0.0
    %2136 = vmatprep.mubr.f32.mxu0 0.0
    %2137 = vmatmul.mubr.f32.gmra.mrb[0].mxu0 %v2000
    %v2138 = vpop.f32.mrb[0].mxu0
    %v2139 = vadd.f32 %v155, %v2138
    %v2140 = vpop.f32.mrb[0].mxu0
    %2141 = vdwg.mxu0
    %2142 = vmatprep.subr.mxu0 0.0
    %2143 = vmatpush1.msra.mxu0 %v84
    %2144 = vmatprep.subr.mxu0 0.0
    %2145 = vmatpush1.msra.mxu0 %v85
    %2146 = vmatprep.subr.mxu0 0.0
    %2147 = vmatpush1.msra.mxu0 %v86
    %2148 = vmatprep.subr.mxu0 0.0
    %2149 = vmatpush1.msra.mxu0 %v87
    %2150 = vmatprep.subr.mxu0 0.0
    %2151 = vmatpush1.msra.mxu0 0.0
    %2152 = vmatprep.subr.mxu0 0.0
    %2153 = vmatpush1.msra.mxu0 0.0
    %2154 = vmatprep.subr.mxu0 0.0
    %2155 = vmatpush1.msra.mxu0 0.0
    %2156 = vmatprep.subr.mxu0 0.0
    %2157 = vmatpush1.msra.mxu0 0.0
    %2158 = vmatprep.subr.mxu0 0.0
    %2159 = vmatpush1.msra.mxu0 0.0
    %2160 = vmatprep.subr.mxu0 0.0
    %2161 = vmatpush1.msra.mxu0 0.0
    %2162 = vmatprep.subr.mxu0 0.0
    %2163 = vmatpush1.msra.mxu0 0.0
    %2164 = vmatprep.subr.mxu0 0.0
    %2165 = vmatpush1.msra.mxu0 0.0
    %2166 = vmatprep.subr.mxu0 0.0
    %2167 = vmatpush1.msra.mxu0 0.0
    %2168 = vmatprep.subr.mxu0 0.0
    %2169 = vmatpush1.msra.mxu0 0.0
    %2170 = vmatprep.subr.mxu0 0.0
    %2171 = vmatpush1.msra.mxu0 0.0
    %2172 = vmatprep.subr.mxu0 0.0
    %2173 = vmatpush1.msra.mxu0 0.0
    %2174 = vmatprep.subr.mxu0 0.0
    %2175 = vmatpush1.msra.mxu0 0.0
    %2176 = vmatprep.subr.mxu0 0.0
    %2177 = vmatpush1.msra.mxu0 0.0
    %2178 = vmatprep.subr.mxu0 0.0
    %2179 = vmatpush1.msra.mxu0 0.0
    %2180 = vmatprep.subr.mxu0 0.0
    %2181 = vmatpush1.msra.mxu0 0.0
    %2182 = vmatprep.subr.mxu0 0.0
    %2183 = vmatpush1.msra.mxu0 0.0
    %2184 = vmatprep.subr.mxu0 0.0
    %2185 = vmatpush1.msra.mxu0 0.0
    %2186 = vmatprep.subr.mxu0 0.0
    %2187 = vmatpush1.msra.mxu0 0.0
    %2188 = vmatprep.subr.mxu0 0.0
    %2189 = vmatpush1.msra.mxu0 0.0
    %2190 = vmatprep.subr.mxu0 0.0
    %2191 = vmatpush1.msra.mxu0 0.0
    %2192 = vmatprep.subr.mxu0 0.0
    %2193 = vmatpush1.msra.mxu0 0.0
    %2194 = vmatprep.subr.mxu0 0.0
    %2195 = vmatpush1.msra.mxu0 0.0
    %2196 = vmatprep.subr.mxu0 0.0
    %2197 = vmatpush1.msra.mxu0 0.0
    %2198 = vmatprep.subr.mxu0 0.0
    %2199 = vmatpush1.msra.mxu0 0.0
    %2200 = vmatprep.subr.mxu0 0.0
    %2201 = vmatpush1.msra.mxu0 0.0
    %2202 = vmatprep.subr.mxu0 0.0
    %2203 = vmatpush1.msra.mxu0 0.0
    %2204 = vmatprep.subr.mxu0 0.0
    %2205 = vmatpush1.msra.mxu0 0.0
    %2206 = vmatprep.mubr.f32.mxu0 0.0
    %2207 = vmatmul.mubr.f32.gmra.mrb[0].mxu0 %v2000
    %v2208 = vpop.f32.mrb[0].mxu0
    %v2209 = vadd.f32 %v159, %v2208
    %v2210 = vpop.f32.mrb[0].mxu0
    %2211 = vdwg.mxu0
    %2212 = vmatprep.subr.mxu0 0.0
    %2213 = vmatpush1.msra.mxu0 %v88
    %2214 = vmatprep.subr.mxu0 0.0
    %2215 = vmatpush1.msra.mxu0 %v89
    %2216 = vmatprep.subr.mxu0 0.0
    %2217 = vmatpush1.msra.mxu0 %v90
    %2218 = vmatprep.subr.mxu0 0.0
    %2219 = vmatpush1.msra.mxu0 %v91
    %2220 = vmatprep.subr.mxu0 0.0
    %2221 = vmatpush1.msra.mxu0 0.0
    %2222 = vmatprep.subr.mxu0 0.0
    %2223 = vmatpush1.msra.mxu0 0.0
    %2224 = vmatprep.subr.mxu0 0.0
    %2225 = vmatpush1.msra.mxu0 0.0
    %2226 = vmatprep.subr.mxu0 0.0
    %2227 = vmatpush1.msra.mxu0 0.0
    %2228 = vmatprep.subr.mxu0 0.0
    %2229 = vmatpush1.msra.mxu0 0.0
    %2230 = vmatprep.subr.mxu0 0.0
    %2231 = vmatpush1.msra.mxu0 0.0
    %2232 = vmatprep.subr.mxu0 0.0
    %2233 = vmatpush1.msra.mxu0 0.0
    %2234 = vmatprep.subr.mxu0 0.0
    %2235 = vmatpush1.msra.mxu0 0.0
    %2236 = vmatprep.subr.mxu0 0.0
    %2237 = vmatpush1.msra.mxu0 0.0
    %2238 = vmatprep.subr.mxu0 0.0
    %2239 = vmatpush1.msra.mxu0 0.0
    %2240 = vmatprep.subr.mxu0 0.0
    %2241 = vmatpush1.msra.mxu0 0.0
    %2242 = vmatprep.subr.mxu0 0.0
    %2243 = vmatpush1.msra.mxu0 0.0
    %2244 = vmatprep.subr.mxu0 0.0
    %2245 = vmatpush1.msra.mxu0 0.0
    %2246 = vmatprep.subr.mxu0 0.0
    %2247 = vmatpush1.msra.mxu0 0.0
    %2248 = vmatprep.subr.mxu0 0.0
    %2249 = vmatpush1.msra.mxu0 0.0
    %2250 = vmatprep.subr.mxu0 0.0
    %2251 = vmatpush1.msra.mxu0 0.0
    %2252 = vmatprep.subr.mxu0 0.0
    %2253 = vmatpush1.msra.mxu0 0.0
    %2254 = vmatprep.subr.mxu0 0.0
    %2255 = vmatpush1.msra.mxu0 0.0
    %2256 = vmatprep.subr.mxu0 0.0
    %2257 = vmatpush1.msra.mxu0 0.0
    %2258 = vmatprep.subr.mxu0 0.0
    %2259 = vmatpush1.msra.mxu0 0.0
    %2260 = vmatprep.subr.mxu0 0.0
    %2261 = vmatpush1.msra.mxu0 0.0
    %2262 = vmatprep.subr.mxu0 0.0
    %2263 = vmatpush1.msra.mxu0 0.0
    %2264 = vmatprep.subr.mxu0 0.0
    %2265 = vmatpush1.msra.mxu0 0.0
    %2266 = vmatprep.subr.mxu0 0.0
    %2267 = vmatpush1.msra.mxu0 0.0
    %2268 = vmatprep.subr.mxu0 0.0
    %2269 = vmatpush1.msra.mxu0 0.0
    %2270 = vmatprep.subr.mxu0 0.0
    %2271 = vmatpush1.msra.mxu0 0.0
    %2272 = vmatprep.subr.mxu0 0.0
    %2273 = vmatpush1.msra.mxu0 0.0
    %2274 = vmatprep.subr.mxu0 0.0
    %2275 = vmatpush1.msra.mxu0 0.0
    %2276 = vmatprep.mubr.f32.mxu0 0.0
    %2277 = vmatmul.mubr.f32.gmra.mrb[0].mxu0 %v2000
    %v2278 = vpop.f32.mrb[0].mxu0
    %v2279 = vadd.f32 %v163, %v2278
    %v2280 = vpop.f32.mrb[0].mxu0
    %2281 = vdwg.mxu0
    %2282 = vmatprep.subr.mxu0 0.0
    %2283 = vmatpush1.msra.mxu0 %v93
    %2284 = vmatprep.subr.mxu0 0.0
    %2285 = vmatpush1.msra.mxu0 %v94
    %2286 = vmatprep.subr.mxu0 0.0
    %2287 = vmatpush1.msra.mxu0 %v95
    %2288 = vmatprep.subr.mxu0 0.0
    %2289 = vmatpush1.msra.mxu0 %v96
    %2290 = vmatprep.subr.mxu0 0.0
    %2291 = vmatpush1.msra.mxu0 0.0
    %2292 = vmatprep.subr.mxu0 0.0
    %2293 = vmatpush1.msra.mxu0 0.0
    %2294 = vmatprep.subr.mxu0 0.0
    %2295 = vmatpush1.msra.mxu0 0.0
    %2296 = vmatprep.subr.mxu0 0.0
    %2297 = vmatpush1.msra.mxu0 0.0
    %2298 = vmatprep.subr.mxu0 0.0
    %2299 = vmatpush1.msra.mxu0 0.0
    %2300 = vmatprep.subr.mxu0 0.0
    %2301 = vmatpush1.msra.mxu0 0.0
    %2302 = vmatprep.subr.mxu0 0.0
    %2303 = vmatpush1.msra.mxu0 0.0
    %2304 = vmatprep.subr.mxu0 0.0
    %2305 = vmatpush1.msra.mxu0 0.0
    %2306 = vmatprep.subr.mxu0 0.0
    %2307 = vmatpush1.msra.mxu0 0.0
    %2308 = vmatprep.subr.mxu0 0.0
    %2309 = vmatpush1.msra.mxu0 0.0
    %2310 = vmatprep.subr.mxu0 0.0
    %2311 = vmatpush1.msra.mxu0 0.0
    %2312 = vmatprep.subr.mxu0 0.0
    %2313 = vmatpush1.msra.mxu0 0.0
    %2314 = vmatprep.subr.mxu0 0.0
    %2315 = vmatpush1.msra.mxu0 0.0
    %2316 = vmatprep.subr.mxu0 0.0
    %2317 = vmatpush1.msra.mxu0 0.0
    %2318 = vmatprep.subr.mxu0 0.0
    %2319 = vmatpush1.msra.mxu0 0.0
    %2320 = vmatprep.subr.mxu0 0.0
    %2321 = vmatpush1.msra.mxu0 0.0
    %2322 = vmatprep.subr.mxu0 0.0
    %2323 = vmatpush1.msra.mxu0 0.0
    %2324 = vmatprep.subr.mxu0 0.0
    %2325 = vmatpush1.msra.mxu0 0.0
    %2326 = vmatprep.subr.mxu0 0.0
    %2327 = vmatpush1.msra.mxu0 0.0
    %2328 = vmatprep.subr.mxu0 0.0
    %2329 = vmatpush1.msra.mxu0 0.0
    %2330 = vmatprep.subr.mxu0 0.0
    %2331 = vmatpush1.msra.mxu0 0.0
    %2332 = vmatprep.subr.mxu0 0.0
    %2333 = vmatpush1.msra.mxu0 0.0
    %2334 = vmatprep.subr.mxu0 0.0
    %2335 = vmatpush1.msra.mxu0 0.0
    %2336 = vmatprep.subr.mxu0 0.0
    %2337 = vmatpush1.msra.mxu0 0.0
    %2338 = vmatprep.subr.mxu0 0.0
    %2339 = vmatpush1.msra.mxu0 0.0
    %2340 = vmatprep.subr.mxu0 0.0
    %2341 = vmatpush1.msra.mxu0 0.0
    %2342 = vmatprep.subr.mxu0 0.0
    %2343 = vmatpush1.msra.mxu0 0.0
    %2344 = vmatprep.subr.mxu0 0.0
    %2345 = vmatpush1.msra.mxu0 0.0
    %2346 = vmatprep.mubr.f32.mxu0 0.0
    %2347 = vmatmul.mubr.f32.gmra.mrb[0].mxu0 %v2000
    %v2348 = vpop.f32.mrb[0].mxu0
    %v2349 = vadd.f32 %v458, %v2348
    %v2350 = vpop.f32.mrb[0].mxu0
    %2351 = vdwg.mxu0
    %2352 = vmatprep.subr.mxu0 0.0
    %2353 = vmatpush1.msra.mxu0 %v97
    %2354 = vmatprep.subr.mxu0 0.0
    %2355 = vmatpush1.msra.mxu0 %v98
    %2356 = vmatprep.subr.mxu0 0.0
    %2357 = vmatpush1.msra.mxu0 %v99
    %2358 = vmatprep.subr.mxu0 0.0
    %2359 = vmatpush1.msra.mxu0 %v100
    %2360 = vmatprep.subr.mxu0 0.0
    %2361 = vmatpush1.msra.mxu0 0.0
    %2362 = vmatprep.subr.mxu0 0.0
    %2363 = vmatpush1.msra.mxu0 0.0
    %2364 = vmatprep.subr.mxu0 0.0
    %2365 = vmatpush1.msra.mxu0 0.0
    %2366 = vmatprep.subr.mxu0 0.0
    %2367 = vmatpush1.msra.mxu0 0.0
    %2368 = vmatprep.subr.mxu0 0.0
    %2369 = vmatpush1.msra.mxu0 0.0
    %2370 = vmatprep.subr.mxu0 0.0
    %2371 = vmatpush1.msra.mxu0 0.0
    %2372 = vmatprep.subr.mxu0 0.0
    %2373 = vmatpush1.msra.mxu0 0.0
    %2374 = vmatprep.subr.mxu0 0.0
    %2375 = vmatpush1.msra.mxu0 0.0
    %2376 = vmatprep.subr.mxu0 0.0
    %2377 = vmatpush1.msra.mxu0 0.0
    %2378 = vmatprep.subr.mxu0 0.0
    %2379 = vmatpush1.msra.mxu0 0.0
    %2380 = vmatprep.subr.mxu0 0.0
    %2381 = vmatpush1.msra.mxu0 0.0
    %2382 = vmatprep.subr.mxu0 0.0
    %2383 = vmatpush1.msra.mxu0 0.0
    %2384 = vmatprep.subr.mxu0 0.0
    %2385 = vmatpush1.msra.mxu0 0.0
    %2386 = vmatprep.subr.mxu0 0.0
    %2387 = vmatpush1.msra.mxu0 0.0
    %2388 = vmatprep.subr.mxu0 0.0
    %2389 = vmatpush1.msra.mxu0 0.0
    %2390 = vmatprep.subr.mxu0 0.0
    %2391 = vmatpush1.msra.mxu0 0.0
    %2392 = vmatprep.subr.mxu0 0.0
    %2393 = vmatpush1.msra.mxu0 0.0
    %2394 = vmatprep.subr.mxu0 0.0
    %2395 = vmatpush1.msra.mxu0 0.0
    %2396 = vmatprep.subr.mxu0 0.0
    %2397 = vmatpush1.msra.mxu0 0.0
    %2398 = vmatprep.subr.mxu0 0.0
    %2399 = vmatpush1.msra.mxu0 0.0
    %2400 = vmatprep.subr.mxu0 0.0
    %2401 = vmatpush1.msra.mxu0 0.0
    %2402 = vmatprep.subr.mxu0 0.0
    %2403 = vmatpush1.msra.mxu0 0.0
    %2404 = vmatprep.subr.mxu0 0.0
    %2405 = vmatpush1.msra.mxu0 0.0
    %2406 = vmatprep.subr.mxu0 0.0
    %2407 = vmatpush1.msra.mxu0 0.0
    %2408 = vmatprep.subr.mxu0 0.0
    %2409 = vmatpush1.msra.mxu0 0.0
    %2410 = vmatprep.subr.mxu0 0.0
    %2411 = vmatpush1.msra.mxu0 0.0
    %2412 = vmatprep.subr.mxu0 0.0
    %2413 = vmatpush1.msra.mxu0 0.0
    %2414 = vmatprep.subr.mxu0 0.0
    %2415 = vmatpush1.msra.mxu0 0.0
    %2416 = vmatprep.mubr.f32.mxu0 0.0
    %2417 = vmatmul.mubr.f32.gmra.mrb[0].mxu0 %v2000
    %v2418 = vpop.f32.mrb[0].mxu0
    %v2419 = vadd.f32 %v462, %v2418
    %v2420 = vpop.f32.mrb[0].mxu0
    %2421 = vdwg.mxu0
    %2422 = vmatprep.subr.mxu0 0.0
    %2423 = vmatpush1.msra.mxu0 %v101
    %2424 = vmatprep.subr.mxu0 0.0
    %2425 = vmatpush1.msra.mxu0 %v102
    %2426 = vmatprep.subr.mxu0 0.0
    %2427 = vmatpush1.msra.mxu0 %v103
    %2428 = vmatprep.subr.mxu0 0.0
    %2429 = vmatpush1.msra.mxu0 %v104
    %2430 = vmatprep.subr.mxu0 0.0
    %2431 = vmatpush1.msra.mxu0 0.0
    %2432 = vmatprep.subr.mxu0 0.0
    %2433 = vmatpush1.msra.mxu0 0.0
    %2434 = vmatprep.subr.mxu0 0.0
    %2435 = vmatpush1.msra.mxu0 0.0
    %2436 = vmatprep.subr.mxu0 0.0
    %2437 = vmatpush1.msra.mxu0 0.0
    %2438 = vmatprep.subr.mxu0 0.0
    %2439 = vmatpush1.msra.mxu0 0.0
    %2440 = vmatprep.subr.mxu0 0.0
    %2441 = vmatpush1.msra.mxu0 0.0
    %2442 = vmatprep.subr.mxu0 0.0
    %2443 = vmatpush1.msra.mxu0 0.0
    %2444 = vmatprep.subr.mxu0 0.0
    %2445 = vmatpush1.msra.mxu0 0.0
    %2446 = vmatprep.subr.mxu0 0.0
    %2447 = vmatpush1.msra.mxu0 0.0
    %2448 = vmatprep.subr.mxu0 0.0
    %2449 = vmatpush1.msra.mxu0 0.0
    %2450 = vmatprep.subr.mxu0 0.0
    %2451 = vmatpush1.msra.mxu0 0.0
    %2452 = vmatprep.subr.mxu0 0.0
    %2453 = vmatpush1.msra.mxu0 0.0
    %2454 = vmatprep.subr.mxu0 0.0
    %2455 = vmatpush1.msra.mxu0 0.0
    %2456 = vmatprep.subr.mxu0 0.0
    %2457 = vmatpush1.msra.mxu0 0.0
    %2458 = vmatprep.subr.mxu0 0.0
    %2459 = vmatpush1.msra.mxu0 0.0
    %2460 = vmatprep.subr.mxu0 0.0
    %2461 = vmatpush1.msra.mxu0 0.0
    %2462 = vmatprep.subr.mxu0 0.0
    %2463 = vmatpush1.msra.mxu0 0.0
    %2464 = vmatprep.subr.mxu0 0.0
    %2465 = vmatpush1.msra.mxu0 0.0
    %2466 = vmatprep.subr.mxu0 0.0
    %2467 = vmatpush1.msra.mxu0 0.0
    %2468 = vmatprep.subr.mxu0 0.0
    %2469 = vmatpush1.msra.mxu0 0.0
    %2470 = vmatprep.subr.mxu0 0.0
    %2471 = vmatpush1.msra.mxu0 0.0
    %2472 = vmatprep.subr.mxu0 0.0
    %2473 = vmatpush1.msra.mxu0 0.0
    %2474 = vmatprep.subr.mxu0 0.0
    %2475 = vmatpush1.msra.mxu0 0.0
    %2476 = vmatprep.subr.mxu0 0.0
    %2477 = vmatpush1.msra.mxu0 0.0
    %2478 = vmatprep.subr.mxu0 0.0
    %2479 = vmatpush1.msra.mxu0 0.0
    %2480 = vmatprep.subr.mxu0 0.0
    %2481 = vmatpush1.msra.mxu0 0.0
    %2482 = vmatprep.subr.mxu0 0.0
    %2483 = vmatpush1.msra.mxu0 0.0
    %2484 = vmatprep.subr.mxu0 0.0
    %2485 = vmatpush1.msra.mxu0 0.0
    %2486 = vmatprep.mubr.f32.mxu0 0.0
    %2487 = vmatmul.mubr.f32.gmra.mrb[0].mxu0 %v2000
    %v2488 = vpop.f32.mrb[0].mxu0
    %v2489 = vadd.f32 %v466, %v2488
    %v2490 = vpop.f32.mrb[0].mxu0
    %2491 = vdwg.mxu0
    %2492 = vmatprep.subr.mxu0 0.0
    %2493 = vmatpush1.msra.mxu0 %v105
    %2494 = vmatprep.subr.mxu0 0.0
    %2495 = vmatpush1.msra.mxu0 %v106
    %2496 = vmatprep.subr.mxu0 0.0
    %2497 = vmatpush1.msra.mxu0 %v107
    %2498 = vmatprep.subr.mxu0 0.0
    %2499 = vmatpush1.msra.mxu0 %v108
    %2500 = vmatprep.subr.mxu0 0.0
    %2501 = vmatpush1.msra.mxu0 0.0
    %2502 = vmatprep.subr.mxu0 0.0
    %2503 = vmatpush1.msra.mxu0 0.0
    %2504 = vmatprep.subr.mxu0 0.0
    %2505 = vmatpush1.msra.mxu0 0.0
    %2506 = vmatprep.subr.mxu0 0.0
    %2507 = vmatpush1.msra.mxu0 0.0
    %2508 = vmatprep.subr.mxu0 0.0
    %2509 = vmatpush1.msra.mxu0 0.0
    %2510 = vmatprep.subr.mxu0 0.0
    %2511 = vmatpush1.msra.mxu0 0.0
    %2512 = vmatprep.subr.mxu0 0.0
    %2513 = vmatpush1.msra.mxu0 0.0
    %2514 = vmatprep.subr.mxu0 0.0
    %2515 = vmatpush1.msra.mxu0 0.0
    %2516 = vmatprep.subr.mxu0 0.0
    %2517 = vmatpush1.msra.mxu0 0.0
    %2518 = vmatprep.subr.mxu0 0.0
    %2519 = vmatpush1.msra.mxu0 0.0
    %2520 = vmatprep.subr.mxu0 0.0
    %2521 = vmatpush1.msra.mxu0 0.0
    %2522 = vmatprep.subr.mxu0 0.0
    %2523 = vmatpush1.msra.mxu0 0.0
    %2524 = vmatprep.subr.mxu0 0.0
    %2525 = vmatpush1.msra.mxu0 0.0
    %2526 = vmatprep.subr.mxu0 0.0
    %2527 = vmatpush1.msra.mxu0 0.0
    %2528 = vmatprep.subr.mxu0 0.0
    %2529 = vmatpush1.msra.mxu0 0.0
    %2530 = vmatprep.subr.mxu0 0.0
    %2531 = vmatpush1.msra.mxu0 0.0
    %2532 = vmatprep.subr.mxu0 0.0
    %2533 = vmatpush1.msra.mxu0 0.0
    %2534 = vmatprep.subr.mxu0 0.0
    %2535 = vmatpush1.msra.mxu0 0.0
    %2536 = vmatprep.subr.mxu0 0.0
    %2537 = vmatpush1.msra.mxu0 0.0
    %2538 = vmatprep.subr.mxu0 0.0
    %2539 = vmatpush1.msra.mxu0 0.0
    %2540 = vmatprep.subr.mxu0 0.0
    %2541 = vmatpush1.msra.mxu0 0.0
    %2542 = vmatprep.subr.mxu0 0.0
    %2543 = vmatpush1.msra.mxu0 0.0
    %2544 = vmatprep.subr.mxu0 0.0
    %2545 = vmatpush1.msra.mxu0 0.0
    %2546 = vmatprep.subr.mxu0 0.0
    %2547 = vmatpush1.msra.mxu0 0.0
    %2548 = vmatprep.subr.mxu0 0.0
    %2549 = vmatpush1.msra.mxu0 0.0
    %2550 = vmatprep.subr.mxu0 0.0
    %2551 = vmatpush1.msra.mxu0 0.0
    %2552 = vmatprep.subr.mxu0 0.0
    %2553 = vmatpush1.msra.mxu0 0.0
    %2554 = vmatprep.subr.mxu0 0.0
    %2555 = vmatpush1.msra.mxu0 0.0
    %2556 = vmatprep.mubr.f32.mxu0 0.0
    %2557 = vmatmul.mubr.f32.gmra.mrb[0].mxu0 %v2000
    %v2558 = vpop.f32.mrb[0].mxu0
    %v2559 = vadd.f32 %v470, %v2558
    %v2560 = vpop.f32.mrb[0].mxu0
    %2561 = vdwg.mxu0
    %2562 = vmatprep.subr.mxu0 0.0
    %2563 = vmatpush1.msra.mxu0 %v110
    %2564 = vmatprep.subr.mxu0 0.0
    %2565 = vmatpush1.msra.mxu0 %v111
    %2566 = vmatprep.subr.mxu0 0.0
    %2567 = vmatpush1.msra.mxu0 %v112
    %2568 = vmatprep.subr.mxu0 0.0
    %2569 = vmatpush1.msra.mxu0 %v113
    %2570 = vmatprep.subr.mxu0 0.0
    %2571 = vmatpush1.msra.mxu0 0.0
    %2572 = vmatprep.subr.mxu0 0.0
    %2573 = vmatpush1.msra.mxu0 0.0
    %2574 = vmatprep.subr.mxu0 0.0
    %2575 = vmatpush1.msra.mxu0 0.0
    %2576 = vmatprep.subr.mxu0 0.0
    %2577 = vmatpush1.msra.mxu0 0.0
    %2578 = vmatprep.subr.mxu0 0.0
    %2579 = vmatpush1.msra.mxu0 0.0
    %2580 = vmatprep.subr.mxu0 0.0
    %2581 = vmatpush1.msra.mxu0 0.0
    %2582 = vmatprep.subr.mxu0 0.0
    %2583 = vmatpush1.msra.mxu0 0.0
    %2584 = vmatprep.subr.mxu0 0.0
    %2585 = vmatpush1.msra.mxu0 0.0
    %2586 = vmatprep.subr.mxu0 0.0
    %2587 = vmatpush1.msra.mxu0 0.0
    %2588 = vmatprep.subr.mxu0 0.0
    %2589 = vmatpush1.msra.mxu0 0.0
    %2590 = vmatprep.subr.mxu0 0.0
    %2591 = vmatpush1.msra.mxu0 0.0
    %2592 = vmatprep.subr.mxu0 0.0
    %2593 = vmatpush1.msra.mxu0 0.0
    %2594 = vmatprep.subr.mxu0 0.0
    %2595 = vmatpush1.msra.mxu0 0.0
    %2596 = vmatprep.subr.mxu0 0.0
    %2597 = vmatpush1.msra.mxu0 0.0
    %2598 = vmatprep.subr.mxu0 0.0
    %2599 = vmatpush1.msra.mxu0 0.0
    %2600 = vmatprep.subr.mxu0 0.0
    %2601 = vmatpush1.msra.mxu0 0.0
    %2602 = vmatprep.subr.mxu0 0.0
    %2603 = vmatpush1.msra.mxu0 0.0
    %2604 = vmatprep.subr.mxu0 0.0
    %2605 = vmatpush1.msra.mxu0 0.0
    %2606 = vmatprep.subr.mxu0 0.0
    %2607 = vmatpush1.msra.mxu0 0.0
    %2608 = vmatprep.subr.mxu0 0.0
    %2609 = vmatpush1.msra.mxu0 0.0
    %2610 = vmatprep.subr.mxu0 0.0
    %2611 = vmatpush1.msra.mxu0 0.0
    %2612 = vmatprep.subr.mxu0 0.0
    %2613 = vmatpush1.msra.mxu0 0.0
    %2614 = vmatprep.subr.mxu0 0.0
    %2615 = vmatpush1.msra.mxu0 0.0
    %2616 = vmatprep.subr.mxu0 0.0
    %2617 = vmatpush1.msra.mxu0 0.0
    %2618 = vmatprep.subr.mxu0 0.0
    %2619 = vmatpush1.msra.mxu0 0.0
    %2620 = vmatprep.subr.mxu0 0.0
    %2621 = vmatpush1.msra.mxu0 0.0
    %2622 = vmatprep.subr.mxu0 0.0
    %2623 = vmatpush1.msra.mxu0 0.0
    %2624 = vmatprep.subr.mxu0 0.0
    %2625 = vmatpush1.msra.mxu0 0.0
    %2626 = vmatprep.mubr.f32.mxu0 0.0
    %2627 = vmatmul.mubr.f32.gmra.mrb[0].mxu0 %v2000
    %v2628 = vpop.f32.mrb[0].mxu0
    %v2629 = vadd.f32 %v762, %v2628
    %v2630 = vpop.f32.mrb[0].mxu0
    %2631 = vdwg.mxu0
    %2632 = vmatprep.subr.mxu0 0.0
    %2633 = vmatpush1.msra.mxu0 %v114
    %2634 = vmatprep.subr.mxu0 0.0
    %2635 = vmatpush1.msra.mxu0 %v115
    %2636 = vmatprep.subr.mxu0 0.0
    %2637 = vmatpush1.msra.mxu0 %v116
    %2638 = vmatprep.subr.mxu0 0.0
    %2639 = vmatpush1.msra.mxu0 %v117
    %2640 = vmatprep.subr.mxu0 0.0
    %2641 = vmatpush1.msra.mxu0 0.0
    %2642 = vmatprep.subr.mxu0 0.0
    %2643 = vmatpush1.msra.mxu0 0.0
    %2644 = vmatprep.subr.mxu0 0.0
    %2645 = vmatpush1.msra.mxu0 0.0
    %2646 = vmatprep.subr.mxu0 0.0
    %2647 = vmatpush1.msra.mxu0 0.0
    %2648 = vmatprep.subr.mxu0 0.0
    %2649 = vmatpush1.msra.mxu0 0.0
    %2650 = vmatprep.subr.mxu0 0.0
    %2651 = vmatpush1.msra.mxu0 0.0
    %2652 = vmatprep.subr.mxu0 0.0
    %2653 = vmatpush1.msra.mxu0 0.0
    %2654 = vmatprep.subr.mxu0 0.0
    %2655 = vmatpush1.msra.mxu0 0.0
    %2656 = vmatprep.subr.mxu0 0.0
    %2657 = vmatpush1.msra.mxu0 0.0
    %2658 = vmatprep.subr.mxu0 0.0
    %2659 = vmatpush1.msra.mxu0 0.0
    %2660 = vmatprep.subr.mxu0 0.0
    %2661 = vmatpush1.msra.mxu0 0.0
    %2662 = vmatprep.subr.mxu0 0.0
    %2663 = vmatpush1.msra.mxu0 0.0
    %2664 = vmatprep.subr.mxu0 0.0
    %2665 = vmatpush1.msra.mxu0 0.0
    %2666 = vmatprep.subr.mxu0 0.0
    %2667 = vmatpush1.msra.mxu0 0.0
    %2668 = vmatprep.subr.mxu0 0.0
    %2669 = vmatpush1.msra.mxu0 0.0
    %2670 = vmatprep.subr.mxu0 0.0
    %2671 = vmatpush1.msra.mxu0 0.0
    %2672 = vmatprep.subr.mxu0 0.0
    %2673 = vmatpush1.msra.mxu0 0.0
    %2674 = vmatprep.subr.mxu0 0.0
    %2675 = vmatpush1.msra.mxu0 0.0
    %2676 = vmatprep.subr.mxu0 0.0
    %2677 = vmatpush1.msra.mxu0 0.0
    %2678 = vmatprep.subr.mxu0 0.0
    %2679 = vmatpush1.msra.mxu0 0.0
    %2680 = vmatprep.subr.mxu0 0.0
    %2681 = vmatpush1.msra.mxu0 0.0
    %2682 = vmatprep.subr.mxu0 0.0
    %2683 = vmatpush1.msra.mxu0 0.0
    %2684 = vmatprep.subr.mxu0 0.0
    %2685 = vmatpush1.msra.mxu0 0.0
    %2686 = vmatprep.subr.mxu0 0.0
    %2687 = vmatpush1.msra.mxu0 0.0
    %2688 = vmatprep.subr.mxu0 0.0
    %2689 = vmatpush1.msra.mxu0 0.0
    %2690 = vmatprep.subr.mxu0 0.0
    %2691 = vmatpush1.msra.mxu0 0.0
    %2692 = vmatprep.subr.mxu0 0.0
    %2693 = vmatpush1.msra.mxu0 0.0
    %2694 = vmatprep.subr.mxu0 0.0
    %2695 = vmatpush1.msra.mxu0 0.0
    %2696 = vmatprep.mubr.f32.mxu0 0.0
    %2697 = vmatmul.mubr.f32.gmra.mrb[0].mxu0 %v2000
    %v2698 = vpop.f32.mrb[0].mxu0
    %v2699 = vadd.f32 %v766, %v2698
    %v2700 = vpop.f32.mrb[0].mxu0
    %2701 = vdwg.mxu0
    %2702 = vmatprep.subr.mxu0 0.0
    %2703 = vmatpush1.msra.mxu0 %v118
    %2704 = vmatprep.subr.mxu0 0.0
    %2705 = vmatpush1.msra.mxu0 %v119
    %2706 = vmatprep.subr.mxu0 0.0
    %2707 = vmatpush1.msra.mxu0 %v120
    %2708 = vmatprep.subr.mxu0 0.0
    %2709 = vmatpush1.msra.mxu0 %v121
    %2710 = vmatprep.subr.mxu0 0.0
    %2711 = vmatpush1.msra.mxu0 0.0
    %2712 = vmatprep.subr.mxu0 0.0
    %2713 = vmatpush1.msra.mxu0 0.0
    %2714 = vmatprep.subr.mxu0 0.0
    %2715 = vmatpush1.msra.mxu0 0.0
    %2716 = vmatprep.subr.mxu0 0.0
    %2717 = vmatpush1.msra.mxu0 0.0
    %2718 = vmatprep.subr.mxu0 0.0
    %2719 = vmatpush1.msra.mxu0 0.0
    %2720 = vmatprep.subr.mxu0 0.0
    %2721 = vmatpush1.msra.mxu0 0.0
    %2722 = vmatprep.subr.mxu0 0.0
    %2723 = vmatpush1.msra.mxu0 0.0
    %2724 = vmatprep.subr.mxu0 0.0
    %2725 = vmatpush1.msra.mxu0 0.0
    %2726 = vmatprep.subr.mxu0 0.0
    %2727 = vmatpush1.msra.mxu0 0.0
    %2728 = vmatprep.subr.mxu0 0.0
    %2729 = vmatpush1.msra.mxu0 0.0
    %2730 = vmatprep.subr.mxu0 0.0
    %2731 = vmatpush1.msra.mxu0 0.0
    %2732 = vmatprep.subr.mxu0 0.0
    %2733 = vmatpush1.msra.mxu0 0.0
    %2734 = vmatprep.subr.mxu0 0.0
    %2735 = vmatpush1.msra.mxu0 0.0
    %2736 = vmatprep.subr.mxu0 0.0
    %2737 = vmatpush1.msra.mxu0 0.0
    %2738 = vmatprep.subr.mxu0 0.0
    %2739 = vmatpush1.msra.mxu0 0.0
    %2740 = vmatprep.subr.mxu0 0.0
    %2741 = vmatpush1.msra.mxu0 0.0
    %2742 = vmatprep.subr.mxu0 0.0
    %2743 = vmatpush1.msra.mxu0 0.0
    %2744 = vmatprep.subr.mxu0 0.0
    %2745 = vmatpush1.msra.mxu0 0.0
    %2746 = vmatprep.subr.mxu0 0.0
    %2747 = vmatpush1.msra.mxu0 0.0
    %2748 = vmatprep.subr.mxu0 0.0
    %2749 = vmatpush1.msra.mxu0 0.0
    %2750 = vmatprep.subr.mxu0 0.0
    %2751 = vmatpush1.msra.mxu0 0.0
    %2752 = vmatprep.subr.mxu0 0.0
    %2753 = vmatpush1.msra.mxu0 0.0
    %2754 = vmatprep.subr.mxu0 0.0
    %2755 = vmatpush1.msra.mxu0 0.0
    %2756 = vmatprep.subr.mxu0 0.0
    %2757 = vmatpush1.msra.mxu0 0.0
    %2758 = vmatprep.subr.mxu0 0.0
    %2759 = vmatpush1.msra.mxu0 0.0
    %2760 = vmatprep.subr.mxu0 0.0
    %2761 = vmatpush1.msra.mxu0 0.0
    %2762 = vmatprep.subr.mxu0 0.0
    %2763 = vmatpush1.msra.mxu0 0.0
    %2764 = vmatprep.subr.mxu0 0.0
    %2765 = vmatpush1.msra.mxu0 0.0
    %2766 = vmatprep.mubr.f32.mxu0 0.0
    %2767 = vmatmul.mubr.f32.gmra.mrb[0].mxu0 %v2000
    %v2768 = vpop.f32.mrb[0].mxu0
    %v2769 = vadd.f32 %v770, %v2768
    %v2770 = vpop.f32.mrb[0].mxu0
    %2771 = vdwg.mxu0
    %2772 = vmatprep.subr.mxu0 0.0
    %2773 = vmatpush1.msra.mxu0 %v122
    %2774 = vmatprep.subr.mxu0 0.0
    %2775 = vmatpush1.msra.mxu0 %v123
    %2776 = vmatprep.subr.mxu0 0.0
    %2777 = vmatpush1.msra.mxu0 %v124
    %2778 = vmatprep.subr.mxu0 0.0
    %2779 = vmatpush1.msra.mxu0 %v125
    %2780 = vmatprep.subr.mxu0 0.0
    %2781 = vmatpush1.msra.mxu0 0.0
    %2782 = vmatprep.subr.mxu0 0.0
    %2783 = vmatpush1.msra.mxu0 0.0
    %2784 = vmatprep.subr.mxu0 0.0
    %2785 = vmatpush1.msra.mxu0 0.0
    %2786 = vmatprep.subr.mxu0 0.0
    %2787 = vmatpush1.msra.mxu0 0.0
    %2788 = vmatprep.subr.mxu0 0.0
    %2789 = vmatpush1.msra.mxu0 0.0
    %2790 = vmatprep.subr.mxu0 0.0
    %2791 = vmatpush1.msra.mxu0 0.0
    %2792 = vmatprep.subr.mxu0 0.0
    %2793 = vmatpush1.msra.mxu0 0.0
    %2794 = vmatprep.subr.mxu0 0.0
    %2795 = vmatpush1.msra.mxu0 0.0
    %2796 = vmatprep.subr.mxu0 0.0
    %2797 = vmatpush1.msra.mxu0 0.0
    %2798 = vmatprep.subr.mxu0 0.0
    %2799 = vmatpush1.msra.mxu0 0.0
    %2800 = vmatprep.subr.mxu0 0.0
    %2801 = vmatpush1.msra.mxu0 0.0
    %2802 = vmatprep.subr.mxu0 0.0
    %2803 = vmatpush1.msra.mxu0 0.0
    %2804 = vmatprep.subr.mxu0 0.0
    %2805 = vmatpush1.msra.mxu0 0.0
    %2806 = vmatprep.subr.mxu0 0.0
    %2807 = vmatpush1.msra.mxu0 0.0
    %2808 = vmatprep.subr.mxu0 0.0
    %2809 = vmatpush1.msra.mxu0 0.0
    %2810 = vmatprep.subr.mxu0 0.0
    %2811 = vmatpush1.msra.mxu0 0.0
    %2812 = vmatprep.subr.mxu0 0.0
    %2813 = vmatpush1.msra.mxu0 0.0
    %2814 = vmatprep.subr.mxu0 0.0
    %2815 = vmatpush1.msra.mxu0 0.0
    %2816 = vmatprep.subr.mxu0 0.0
    %2817 = vmatpush1.msra.mxu0 0.0
    %2818 = vmatprep.subr.mxu0 0.0
    %2819 = vmatpush1.msra.mxu0 0.0
    %2820 = vmatprep.subr.mxu0 0.0
    %2821 = vmatpush1.msra.mxu0 0.0
    %2822 = vmatprep.subr.mxu0 0.0
    %2823 = vmatpush1.msra.mxu0 0.0
    %2824 = vmatprep.subr.mxu0 0.0
    %2825 = vmatpush1.msra.mxu0 0.0
    %2826 = vmatprep.subr.mxu0 0.0
    %2827 = vmatpush1.msra.mxu0 0.0
    %2828 = vmatprep.subr.mxu0 0.0
    %2829 = vmatpush1.msra.mxu0 0.0
    %2830 = vmatprep.subr.mxu0 0.0
    %2831 = vmatpush1.msra.mxu0 0.0
    %2832 = vmatprep.subr.mxu0 0.0
    %2833 = vmatpush1.msra.mxu0 0.0
    %2834 = vmatprep.subr.mxu0 0.0
    %2835 = vmatpush1.msra.mxu0 0.0
    %2836 = vmatprep.mubr.f32.mxu0 0.0
    %2837 = vmatmul.mubr.f32.gmra.mrb[0].mxu0 %v2000
    %v2838 = vpop.f32.mrb[0].mxu0
    %v2839 = vadd.f32 %v774, %v2838
    %v2840 = vpop.f32.mrb[0].mxu0
    %2841 = vdwg.mxu0
    %v2843 = vsel %vm1059, %v2069, 0
    %v2846 = vsel %vm1059, %v2349, 0
    %2848 = vmatprep.subr.mxu0 0.0
    %2849 = vmatpush1.xpose.msra.mxu0 %v2846
    %2850 = vmatprep.subr.mxu0 0.0
    %2851 = vmatpush1.xpose.msra.mxu0 0.0
    %2852 = vmatprep.subr.mxu0 0.0
    %2853 = vmatpush1.xpose.msra.mxu0 0.0
    %2854 = vmatprep.subr.mxu0 0.0
    %2855 = vmatpush1.xpose.msra.mxu0 0.0
    %2856 = vmatprep.subr.mxu0 0.0
    %2857 = vmatpush1.xpose.msra.mxu0 0.0
    %2858 = vmatprep.subr.mxu0 0.0
    %2859 = vmatpush1.xpose.msra.mxu0 0.0
    %2860 = vmatprep.subr.mxu0 0.0
    %2861 = vmatpush1.xpose.msra.mxu0 0.0
    %2862 = vmatprep.subr.mxu0 0.0
    %2863 = vmatpush1.xpose.msra.mxu0 0.0
    %2864 = vmatprep.subr.mxu0 0.0
    %2865 = vmatpush1.xpose.msra.mxu0 0.0
    %2866 = vmatprep.subr.mxu0 0.0
    %2867 = vmatpush1.xpose.msra.mxu0 0.0
    %2868 = vmatprep.subr.mxu0 0.0
    %2869 = vmatpush1.xpose.msra.mxu0 0.0
    %2870 = vmatprep.subr.mxu0 0.0
    %2871 = vmatpush1.xpose.msra.mxu0 0.0
    %2872 = vmatprep.subr.mxu0 0.0
    %2873 = vmatpush1.xpose.msra.mxu0 0.0
    %2874 = vmatprep.subr.mxu0 0.0
    %2875 = vmatpush1.xpose.msra.mxu0 0.0
    %2876 = vmatprep.subr.mxu0 0.0
    %2877 = vmatpush1.xpose.msra.mxu0 0.0
    %2878 = vmatprep.subr.mxu0 0.0
    %2879 = vmatpush1.xpose.msra.mxu0 0.0
    %2880 = vmatprep.subr.mxu0 0.0
    %2881 = vmatpush1.xpose.msra.mxu0 0.0
    %2882 = vmatprep.subr.mxu0 0.0
    %2883 = vmatpush1.xpose.msra.mxu0 0.0
    %2884 = vmatprep.subr.mxu0 0.0
    %2885 = vmatpush1.xpose.msra.mxu0 0.0
    %2886 = vmatprep.subr.mxu0 0.0
    %2887 = vmatpush1.xpose.msra.mxu0 0.0
    %2888 = vmatprep.subr.mxu0 0.0
    %2889 = vmatpush1.xpose.msra.mxu0 0.0
    %2890 = vmatprep.subr.mxu0 0.0
    %2891 = vmatpush1.xpose.msra.mxu0 0.0
    %2892 = vmatprep.subr.mxu0 0.0
    %2893 = vmatpush1.xpose.msra.mxu0 0.0
    %2894 = vmatprep.subr.mxu0 0.0
    %2895 = vmatpush1.xpose.msra.mxu0 0.0
    %2896 = vmatprep.subr.mxu0 0.0
    %2897 = vmatpush1.xpose.msra.mxu0 0.0
    %2898 = vmatprep.subr.mxu0 0.0
    %2899 = vmatpush1.xpose.msra.mxu0 0.0
    %2900 = vmatprep.subr.mxu0 0.0
    %2901 = vmatpush1.xpose.msra.mxu0 0.0
    %2902 = vmatprep.subr.mxu0 0.0
    %2903 = vmatpush1.xpose.msra.mxu0 0.0
    %2904 = vmatprep.subr.mxu0 0.0
    %2905 = vmatpush1.xpose.msra.mxu0 0.0
    %2906 = vmatprep.subr.mxu0 0.0
    %2907 = vmatpush1.xpose.msra.mxu0 0.0
    %2908 = vmatprep.subr.mxu0 0.0
    %2909 = vmatpush1.xpose.msra.mxu0 0.0
    %2910 = vmatprep.subr.mxu0 0.0
    %2911 = vmatpush1.xpose.msra.mxu0 0.0
    %2912 = vmatprep.mubr.f32.mxu0 0.0
    %2913 = vmatmul.mubr.f32.gmra.mrb[0].mxu0 %v2843
    %v2914 = vpop.f32.mrb[0].mxu0
    %v2915 = vadd.f32 0.0, %v2914
    %v2916 = vpop.f32.mrb[0].mxu0
    %2917 = vdwg.mxu0
    %v2919 = vsel %vm1059, %v2139, 0
    %v2922 = vsel %vm1059, %v2419, 0
    %2924 = vmatprep.subr.mxu0 0.0
    %2925 = vmatpush1.xpose.msra.mxu0 %v2922
    %2926 = vmatprep.subr.mxu0 0.0
    %2927 = vmatpush1.xpose.msra.mxu0 0.0
    %2928 = vmatprep.subr.mxu0 0.0
    %2929 = vmatpush1.xpose.msra.mxu0 0.0
    %2930 = vmatprep.subr.mxu0 0.0
    %2931 = vmatpush1.xpose.msra.mxu0 0.0
    %2932 = vmatprep.subr.mxu0 0.0
    %2933 = vmatpush1.xpose.msra.mxu0 0.0
    %2934 = vmatprep.subr.mxu0 0.0
    %2935 = vmatpush1.xpose.msra.mxu0 0.0
    %2936 = vmatprep.subr.mxu0 0.0
    %2937 = vmatpush1.xpose.msra.mxu0 0.0
    %2938 = vmatprep.subr.mxu0 0.0
    %2939 = vmatpush1.xpose.msra.mxu0 0.0
    %2940 = vmatprep.subr.mxu0 0.0
    %2941 = vmatpush1.xpose.msra.mxu0 0.0
    %2942 = vmatprep.subr.mxu0 0.0
    %2943 = vmatpush1.xpose.msra.mxu0 0.0
    %2944 = vmatprep.subr.mxu0 0.0
    %2945 = vmatpush1.xpose.msra.mxu0 0.0
    %2946 = vmatprep.subr.mxu0 0.0
    %2947 = vmatpush1.xpose.msra.mxu0 0.0
    %2948 = vmatprep.subr.mxu0 0.0
    %2949 = vmatpush1.xpose.msra.mxu0 0.0
    %2950 = vmatprep.subr.mxu0 0.0
    %2951 = vmatpush1.xpose.msra.mxu0 0.0
    %2952 = vmatprep.subr.mxu0 0.0
    %2953 = vmatpush1.xpose.msra.mxu0 0.0
    %2954 = vmatprep.subr.mxu0 0.0
    %2955 = vmatpush1.xpose.msra.mxu0 0.0
    %2956 = vmatprep.subr.mxu0 0.0
    %2957 = vmatpush1.xpose.msra.mxu0 0.0
    %2958 = vmatprep.subr.mxu0 0.0
    %2959 = vmatpush1.xpose.msra.mxu0 0.0
    %2960 = vmatprep.subr.mxu0 0.0
    %2961 = vmatpush1.xpose.msra.mxu0 0.0
    %2962 = vmatprep.subr.mxu0 0.0
    %2963 = vmatpush1.xpose.msra.mxu0 0.0
    %2964 = vmatprep.subr.mxu0 0.0
    %2965 = vmatpush1.xpose.msra.mxu0 0.0
    %2966 = vmatprep.subr.mxu0 0.0
    %2967 = vmatpush1.xpose.msra.mxu0 0.0
    %2968 = vmatprep.subr.mxu0 0.0
    %2969 = vmatpush1.xpose.msra.mxu0 0.0
    %2970 = vmatprep.subr.mxu0 0.0
    %2971 = vmatpush1.xpose.msra.mxu0 0.0
    %2972 = vmatprep.subr.mxu0 0.0
    %2973 = vmatpush1.xpose.msra.mxu0 0.0
    %2974 = vmatprep.subr.mxu0 0.0
    %2975 = vmatpush1.xpose.msra.mxu0 0.0
    %2976 = vmatprep.subr.mxu0 0.0
    %2977 = vmatpush1.xpose.msra.mxu0 0.0
    %2978 = vmatprep.subr.mxu0 0.0
    %2979 = vmatpush1.xpose.msra.mxu0 0.0
    %2980 = vmatprep.subr.mxu0 0.0
    %2981 = vmatpush1.xpose.msra.mxu0 0.0
    %2982 = vmatprep.subr.mxu0 0.0
    %2983 = vmatpush1.xpose.msra.mxu0 0.0
    %2984 = vmatprep.subr.mxu0 0.0
    %2985 = vmatpush1.xpose.msra.mxu0 0.0
    %2986 = vmatprep.subr.mxu0 0.0
    %2987 = vmatpush1.xpose.msra.mxu0 0.0
    %2988 = vmatprep.mubr.f32.mxu0 0.0
    %2989 = vmatmul.mubr.f32.gmra.mrb[0].mxu0 %v2919
    %v2990 = vpop.f32.mrb[0].mxu0
    %v2991 = vadd.f32 0.0, %v2990
    %v2992 = vpop.f32.mrb[0].mxu0
    %2993 = vdwg.mxu0
    %v2995 = vsel %vm1059, %v2209, 0
    %v2998 = vsel %vm1059, %v2489, 0
    %3000 = vmatprep.subr.mxu0 0.0
    %3001 = vmatpush1.xpose.msra.mxu0 %v2998
    %3002 = vmatprep.subr.mxu0 0.0
    %3003 = vmatpush1.xpose.msra.mxu0 0.0
    %3004 = vmatprep.subr.mxu0 0.0
    %3005 = vmatpush1.xpose.msra.mxu0 0.0
    %3006 = vmatprep.subr.mxu0 0.0
    %3007 = vmatpush1.xpose.msra.mxu0 0.0
    %3008 = vmatprep.subr.mxu0 0.0
    %3009 = vmatpush1.xpose.msra.mxu0 0.0
    %3010 = vmatprep.subr.mxu0 0.0
    %3011 = vmatpush1.xpose.msra.mxu0 0.0
    %3012 = vmatprep.subr.mxu0 0.0
    %3013 = vmatpush1.xpose.msra.mxu0 0.0
    %3014 = vmatprep.subr.mxu0 0.0
    %3015 = vmatpush1.xpose.msra.mxu0 0.0
    %3016 = vmatprep.subr.mxu0 0.0
    %3017 = vmatpush1.xpose.msra.mxu0 0.0
    %3018 = vmatprep.subr.mxu0 0.0
    %3019 = vmatpush1.xpose.msra.mxu0 0.0
    %3020 = vmatprep.subr.mxu0 0.0
    %3021 = vmatpush1.xpose.msra.mxu0 0.0
    %3022 = vmatprep.subr.mxu0 0.0
    %3023 = vmatpush1.xpose.msra.mxu0 0.0
    %3024 = vmatprep.subr.mxu0 0.0
    %3025 = vmatpush1.xpose.msra.mxu0 0.0
    %3026 = vmatprep.subr.mxu0 0.0
    %3027 = vmatpush1.xpose.msra.mxu0 0.0
    %3028 = vmatprep.subr.mxu0 0.0
    %3029 = vmatpush1.xpose.msra.mxu0 0.0
    %3030 = vmatprep.subr.mxu0 0.0
    %3031 = vmatpush1.xpose.msra.mxu0 0.0
    %3032 = vmatprep.subr.mxu0 0.0
    %3033 = vmatpush1.xpose.msra.mxu0 0.0
    %3034 = vmatprep.subr.mxu0 0.0
    %3035 = vmatpush1.xpose.msra.mxu0 0.0
    %3036 = vmatprep.subr.mxu0 0.0
    %3037 = vmatpush1.xpose.msra.mxu0 0.0
    %3038 = vmatprep.subr.mxu0 0.0
    %3039 = vmatpush1.xpose.msra.mxu0 0.0
    %3040 = vmatprep.subr.mxu0 0.0
    %3041 = vmatpush1.xpose.msra.mxu0 0.0
    %3042 = vmatprep.subr.mxu0 0.0
    %3043 = vmatpush1.xpose.msra.mxu0 0.0
    %3044 = vmatprep.subr.mxu0 0.0
    %3045 = vmatpush1.xpose.msra.mxu0 0.0
    %3046 = vmatprep.subr.mxu0 0.0
    %3047 = vmatpush1.xpose.msra.mxu0 0.0
    %3048 = vmatprep.subr.mxu0 0.0
    %3049 = vmatpush1.xpose.msra.mxu0 0.0
    %3050 = vmatprep.subr.mxu0 0.0
    %3051 = vmatpush1.xpose.msra.mxu0 0.0
    %3052 = vmatprep.subr.mxu0 0.0
    %3053 = vmatpush1.xpose.msra.mxu0 0.0
    %3054 = vmatprep.subr.mxu0 0.0
    %3055 = vmatpush1.xpose.msra.mxu0 0.0
    %3056 = vmatprep.subr.mxu0 0.0
    %3057 = vmatpush1.xpose.msra.mxu0 0.0
    %3058 = vmatprep.subr.mxu0 0.0
    %3059 = vmatpush1.xpose.msra.mxu0 0.0
    %3060 = vmatprep.subr.mxu0 0.0
    %3061 = vmatpush1.xpose.msra.mxu0 0.0
    %3062 = vmatprep.subr.mxu0 0.0
    %3063 = vmatpush1.xpose.msra.mxu0 0.0
    %3064 = vmatprep.mubr.f32.mxu0 0.0
    %3065 = vmatmul.mubr.f32.gmra.mrb[0].mxu0 %v2995
    %v3066 = vpop.f32.mrb[0].mxu0
    %v3067 = vadd.f32 0.0, %v3066
    %v3068 = vpop.f32.mrb[0].mxu0
    %3069 = vdwg.mxu0
    %v3071 = vsel %vm1059, %v2279, 0
    %v3074 = vsel %vm1059, %v2559, 0
    %3076 = vmatprep.subr.mxu0 0.0
    %3077 = vmatpush1.xpose.msra.mxu0 %v3074
    %3078 = vmatprep.subr.mxu0 0.0
    %3079 = vmatpush1.xpose.msra.mxu0 0.0
    %3080 = vmatprep.subr.mxu0 0.0
    %3081 = vmatpush1.xpose.msra.mxu0 0.0
    %3082 = vmatprep.subr.mxu0 0.0
    %3083 = vmatpush1.xpose.msra.mxu0 0.0
    %3084 = vmatprep.subr.mxu0 0.0
    %3085 = vmatpush1.xpose.msra.mxu0 0.0
    %3086 = vmatprep.subr.mxu0 0.0
    %3087 = vmatpush1.xpose.msra.mxu0 0.0
    %3088 = vmatprep.subr.mxu0 0.0
    %3089 = vmatpush1.xpose.msra.mxu0 0.0
    %3090 = vmatprep.subr.mxu0 0.0
    %3091 = vmatpush1.xpose.msra.mxu0 0.0
    %3092 = vmatprep.subr.mxu0 0.0
    %3093 = vmatpush1.xpose.msra.mxu0 0.0
    %3094 = vmatprep.subr.mxu0 0.0
    %3095 = vmatpush1.xpose.msra.mxu0 0.0
    %3096 = vmatprep.subr.mxu0 0.0
    %3097 = vmatpush1.xpose.msra.mxu0 0.0
    %3098 = vmatprep.subr.mxu0 0.0
    %3099 = vmatpush1.xpose.msra.mxu0 0.0
    %3100 = vmatprep.subr.mxu0 0.0
    %3101 = vmatpush1.xpose.msra.mxu0 0.0
    %3102 = vmatprep.subr.mxu0 0.0
    %3103 = vmatpush1.xpose.msra.mxu0 0.0
    %3104 = vmatprep.subr.mxu0 0.0
    %3105 = vmatpush1.xpose.msra.mxu0 0.0
    %3106 = vmatprep.subr.mxu0 0.0
    %3107 = vmatpush1.xpose.msra.mxu0 0.0
    %3108 = vmatprep.subr.mxu0 0.0
    %3109 = vmatpush1.xpose.msra.mxu0 0.0
    %3110 = vmatprep.subr.mxu0 0.0
    %3111 = vmatpush1.xpose.msra.mxu0 0.0
    %3112 = vmatprep.subr.mxu0 0.0
    %3113 = vmatpush1.xpose.msra.mxu0 0.0
    %3114 = vmatprep.subr.mxu0 0.0
    %3115 = vmatpush1.xpose.msra.mxu0 0.0
    %3116 = vmatprep.subr.mxu0 0.0
    %3117 = vmatpush1.xpose.msra.mxu0 0.0
    %3118 = vmatprep.subr.mxu0 0.0
    %3119 = vmatpush1.xpose.msra.mxu0 0.0
    %3120 = vmatprep.subr.mxu0 0.0
    %3121 = vmatpush1.xpose.msra.mxu0 0.0
    %3122 = vmatprep.subr.mxu0 0.0
    %3123 = vmatpush1.xpose.msra.mxu0 0.0
    %3124 = vmatprep.subr.mxu0 0.0
    %3125 = vmatpush1.xpose.msra.mxu0 0.0
    %3126 = vmatprep.subr.mxu0 0.0
    %3127 = vmatpush1.xpose.msra.mxu0 0.0
    %3128 = vmatprep.subr.mxu0 0.0
    %3129 = vmatpush1.xpose.msra.mxu0 0.0
    %3130 = vmatprep.subr.mxu0 0.0
    %3131 = vmatpush1.xpose.msra.mxu0 0.0
    %3132 = vmatprep.subr.mxu0 0.0
    %3133 = vmatpush1.xpose.msra.mxu0 0.0
    %3134 = vmatprep.subr.mxu0 0.0
    %3135 = vmatpush1.xpose.msra.mxu0 0.0
    %3136 = vmatprep.subr.mxu0 0.0
    %3137 = vmatpush1.xpose.msra.mxu0 0.0
    %3138 = vmatprep.subr.mxu0 0.0
    %3139 = vmatpush1.xpose.msra.mxu0 0.0
    %3140 = vmatprep.mubr.f32.mxu0 0.0
    %3141 = vmatmul.mubr.f32.gmra.mrb[0].mxu0 %v3071
    %v3142 = vpop.f32.mrb[0].mxu0
    %v3143 = vadd.f32 0.0, %v3142
    %v3144 = vpop.f32.mrb[0].mxu0
    %3145 = vdwg.mxu0
    %v3146 = vsel %vm1059, %v2915, -inf
    %3147 = vmax.xlane.f32.xlu0 %v3146
    %v3148 = vpop.xlane.xlu0 %3147
    %v3149 = vsel %vm1059, %v2991, -inf
    %3150 = vmax.xlane.f32.xlu0 %v3149
    %v3151 = vpop.xlane.xlu0 %3150
    %v3152 = vsel %vm1059, %v3067, -inf
    %3153 = vmax.xlane.f32.xlu0 %v3152
    %v3154 = vpop.xlane.xlu0 %3153
    %v3155 = vsel %vm1059, %v3143, -inf
    %3156 = vmax.xlane.f32.xlu0 %v3155
    %v3157 = vpop.xlane.xlu0 %3156
    %v3158 = vsub.f32 %v2915, %v3148
    %v3159 = vsub.f32 %v2991, %v3151
    %v3160 = vsub.f32 %v3067, %v3154
    %v3161 = vsub.f32 %v3143, %v3157
    %v3162 = vmul.f32 %v3158, 1.442695
    %v3163 = vpow.pop %v3162
    %v3164 = vmul.f32 %v3159, 1.442695
    %v3165 = vpow.pop %v3164
    %v3166 = vmul.f32 %v3160, 1.442695
    %v3167 = vpow.pop %v3166
    %v3168 = vmul.f32 %v3161, 1.442695
    %v3169 = vpow.pop %v3168
    %v3170 = vsel %vm1059, %v3163, 0.0
    %3171 = vadd.xlane.f32.xlu0 %v3170
    %v3172 = vpop.xlane.xlu0 %3171
    %v3173 = vsel %vm1059, %v3165, 0.0
    %3174 = vadd.xlane.f32.xlu0 %v3173
    %v3175 = vpop.xlane.xlu0 %3174
    %v3176 = vsel %vm1059, %v3167, 0.0
    %3177 = vadd.xlane.f32.xlu0 %v3176
    %v3178 = vpop.xlane.xlu0 %3177
    %v3179 = vsel %vm1059, %v3169, 0.0
    %3180 = vadd.xlane.f32.xlu0 %v3179
    %v3181 = vpop.xlane.xlu0 %3180
    %v3182 = vrcp.pop %v3172
    %v3183 = vrcp.pop %v3175
    %v3184 = vrcp.pop %v3178
    %v3185 = vrcp.pop %v3181
    %v3186 = vmul.f32 %v3163, %v3182
    %v3187 = vmul.f32 %v3165, %v3183
    %v3188 = vmul.f32 %v3167, %v3184
    %v3189 = vmul.f32 %v3169, %v3185
    %v3191 = vsel %vm1059, %v3186, 0
    %3193 = vmatprep.subr.mxu0 0.0
    %3194 = vmatpush1.msra.mxu0 %v2629
    %3195 = vmatprep.subr.mxu0 0.0
    %3196 = vmatpush1.msra.mxu0 0.0
    %3197 = vmatprep.subr.mxu0 0.0
    %3198 = vmatpush1.msra.mxu0 0.0
    %3199 = vmatprep.subr.mxu0 0.0
    %3200 = vmatpush1.msra.mxu0 0.0
    %3201 = vmatprep.subr.mxu0 0.0
    %3202 = vmatpush1.msra.mxu0 0.0
    %3203 = vmatprep.subr.mxu0 0.0
    %3204 = vmatpush1.msra.mxu0 0.0
    %3205 = vmatprep.subr.mxu0 0.0
    %3206 = vmatpush1.msra.mxu0 0.0
    %3207 = vmatprep.subr.mxu0 0.0
    %3208 = vmatpush1.msra.mxu0 0.0
    %3209 = vmatprep.subr.mxu0 0.0
    %3210 = vmatpush1.msra.mxu0 0.0
    %3211 = vmatprep.subr.mxu0 0.0
    %3212 = vmatpush1.msra.mxu0 0.0
    %3213 = vmatprep.subr.mxu0 0.0
    %3214 = vmatpush1.msra.mxu0 0.0
    %3215 = vmatprep.subr.mxu0 0.0
    %3216 = vmatpush1.msra.mxu0 0.0
    %3217 = vmatprep.subr.mxu0 0.0
    %3218 = vmatpush1.msra.mxu0 0.0
    %3219 = vmatprep.subr.mxu0 0.0
    %3220 = vmatpush1.msra.mxu0 0.0
    %3221 = vmatprep.subr.mxu0 0.0
    %3222 = vmatpush1.msra.mxu0 0.0
    %3223 = vmatprep.subr.mxu0 0.0
    %3224 = vmatpush1.msra.mxu0 0.0
    %3225 = vmatprep.subr.mxu0 0.0
    %3226 = vmatpush1.msra.mxu0 0.0
    %3227 = vmatprep.subr.mxu0 0.0
    %3228 = vmatpush1.msra.mxu0 0.0
    %3229 = vmatprep.subr.mxu0 0.0
    %3230 = vmatpush1.msra.mxu0 0.0
    %3231 = vmatprep.subr.mxu0 0.0
    %3232 = vmatpush1.msra.mxu0 0.0
    %3233 = vmatprep.subr.mxu0 0.0
    %3234 = vmatpush1.msra.mxu0 0.0
    %3235 = vmatprep.subr.mxu0 0.0
    %3236 = vmatpush1.msra.mxu0 0.0
    %3237 = vmatprep.subr.mxu0 0.0
    %3238 = vmatpush1.msra.mxu0 0.0
    %3239 = vmatprep.subr.mxu0 0.0
    %3240 = vmatpush1.msra.mxu0 0.0
    %3241 = vmatprep.subr.mxu0 0.0
    %3242 = vmatpush1.msra.mxu0 0.0
    %3243 = vmatprep.subr.mxu0 0.0
    %3244 = vmatpush1.msra.mxu0 0.0
    %3245 = vmatprep.subr.mxu0 0.0
    %3246 = vmatpush1.msra.mxu0 0.0
    %3247 = vmatprep.subr.mxu0 0.0
    %3248 = vmatpush1.msra.mxu0 0.0
    %3249 = vmatprep.subr.mxu0 0.0
    %3250 = vmatpush1.msra.mxu0 0.0
    %3251 = vmatprep.subr.mxu0 0.0
    %3252 = vmatpush1.msra.mxu0 0.0
    %3253 = vmatprep.subr.mxu0 0.0
    %3254 = vmatpush1.msra.mxu0 0.0
    %3255 = vmatprep.subr.mxu0 0.0
    %3256 = vmatpush1.msra.mxu0 0.0
    %3257 = vmatprep.mubr.f32.mxu0 0.0
    %3258 = vmatmul.mubr.f32.gmra.mrb[0].mxu0 %v3191
    %v3259 = vpop.f32.mrb[0].mxu0
    %v3260 = vadd.f32 0.0, %v3259
    %v3261 = vpop.f32.mrb[0].mxu0
    %3262 = vdwg.mxu0
    %v3264 = vsel %vm1059, %v3187, 0
    %3266 = vmatprep.subr.mxu0 0.0
    %3267 = vmatpush1.msra.mxu0 %v2699
    %3268 = vmatprep.subr.mxu0 0.0
    %3269 = vmatpush1.msra.mxu0 0.0
    %3270 = vmatprep.subr.mxu0 0.0
    %3271 = vmatpush1.msra.mxu0 0.0
    %3272 = vmatprep.subr.mxu0 0.0
    %3273 = vmatpush1.msra.mxu0 0.0
    %3274 = vmatprep.subr.mxu0 0.0
    %3275 = vmatpush1.msra.mxu0 0.0
    %3276 = vmatprep.subr.mxu0 0.0
    %3277 = vmatpush1.msra.mxu0 0.0
    %3278 = vmatprep.subr.mxu0 0.0
    %3279 = vmatpush1.msra.mxu0 0.0
    %3280 = vmatprep.subr.mxu0 0.0
    %3281 = vmatpush1.msra.mxu0 0.0
    %3282 = vmatprep.subr.mxu0 0.0
    %3283 = vmatpush1.msra.mxu0 0.0
    %3284 = vmatprep.subr.mxu0 0.0
    %3285 = vmatpush1.msra.mxu0 0.0
    %3286 = vmatprep.subr.mxu0 0.0
    %3287 = vmatpush1.msra.mxu0 0.0
    %3288 = vmatprep.subr.mxu0 0.0
    %3289 = vmatpush1.msra.mxu0 0.0
    %3290 = vmatprep.subr.mxu0 0.0
    %3291 = vmatpush1.msra.mxu0 0.0
    %3292 = vmatprep.subr.mxu0 0.0
    %3293 = vmatpush1.msra.mxu0 0.0
    %3294 = vmatprep.subr.mxu0 0.0
    %3295 = vmatpush1.msra.mxu0 0.0
    %3296 = vmatprep.subr.mxu0 0.0
    %3297 = vmatpush1.msra.mxu0 0.0
    %3298 = vmatprep.subr.mxu0 0.0
    %3299 = vmatpush1.msra.mxu0 0.0
    %3300 = vmatprep.subr.mxu0 0.0
    %3301 = vmatpush1.msra.mxu0 0.0
    %3302 = vmatprep.subr.mxu0 0.0
    %3303 = vmatpush1.msra.mxu0 0.0
    %3304 = vmatprep.subr.mxu0 0.0
    %3305 = vmatpush1.msra.mxu0 0.0
    %3306 = vmatprep.subr.mxu0 0.0
    %3307 = vmatpush1.msra.mxu0 0.0
    %3308 = vmatprep.subr.mxu0 0.0
    %3309 = vmatpush1.msra.mxu0 0.0
    %3310 = vmatprep.subr.mxu0 0.0
    %3311 = vmatpush1.msra.mxu0 0.0
    %3312 = vmatprep.subr.mxu0 0.0
    %3313 = vmatpush1.msra.mxu0 0.0
    %3314 = vmatprep.subr.mxu0 0.0
    %3315 = vmatpush1.msra.mxu0 0.0
    %3316 = vmatprep.subr.mxu0 0.0
    %3317 = vmatpush1.msra.mxu0 0.0
    %3318 = vmatprep.subr.mxu0 0.0
    %3319 = vmatpush1.msra.mxu0 0.0
    %3320 = vmatprep.subr.mxu0 0.0
    %3321 = vmatpush1.msra.mxu0 0.0
    %3322 = vmatprep.subr.mxu0 0.0
    %3323 = vmatpush1.msra.mxu0 0.0
    %3324 = vmatprep.subr.mxu0 0.0
    %3325 = vmatpush1.msra.mxu0 0.0
    %3326 = vmatprep.subr.mxu0 0.0
    %3327 = vmatpush1.msra.mxu0 0.0
    %3328 = vmatprep.subr.mxu0 0.0
    %3329 = vmatpush1.msra.mxu0 0.0
    %3330 = vmatprep.mubr.f32.mxu0 0.0
    %3331 = vmatmul.mubr.f32.gmra.mrb[0].mxu0 %v3264
    %v3332 = vpop.f32.mrb[0].mxu0
    %v3333 = vadd.f32 0.0, %v3332
    %v3334 = vpop.f32.mrb[0].mxu0
    %3335 = vdwg.mxu0
    %v3337 = vsel %vm1059, %v3188, 0
    %3339 = vmatprep.subr.mxu0 0.0
    %3340 = vmatpush1.msra.mxu0 %v2769
    %3341 = vmatprep.subr.mxu0 0.0
    %3342 = vmatpush1.msra.mxu0 0.0
    %3343 = vmatprep.subr.mxu0 0.0
    %3344 = vmatpush1.msra.mxu0 0.0
    %3345 = vmatprep.subr.mxu0 0.0
    %3346 = vmatpush1.msra.mxu0 0.0
    %3347 = vmatprep.subr.mxu0 0.0
    %3348 = vmatpush1.msra.mxu0 0.0
    %3349 = vmatprep.subr.mxu0 0.0
    %3350 = vmatpush1.msra.mxu0 0.0
    %3351 = vmatprep.subr.mxu0 0.0
    %3352 = vmatpush1.msra.mxu0 0.0
    %3353 = vmatprep.subr.mxu0 0.0
    %3354 = vmatpush1.msra.mxu0 0.0
    %3355 = vmatprep.subr.mxu0 0.0
    %3356 = vmatpush1.msra.mxu0 0.0
    %3357 = vmatprep.subr.mxu0 0.0
    %3358 = vmatpush1.msra.mxu0 0.0
    %3359 = vmatprep.subr.mxu0 0.0
    %3360 = vmatpush1.msra.mxu0 0.0
    %3361 = vmatprep.subr.mxu0 0.0
    %3362 = vmatpush1.msra.mxu0 0.0
    %3363 = vmatprep.subr.mxu0 0.0
    %3364 = vmatpush1.msra.mxu0 0.0
    %3365 = vmatprep.subr.mxu0 0.0
    %3366 = vmatpush1.msra.mxu0 0.0
    %3367 = vmatprep.subr.mxu0 0.0
    %3368 = vmatpush1.msra.mxu0 0.0
    %3369 = vmatprep.subr.mxu0 0.0
    %3370 = vmatpush1.msra.mxu0 0.0
    %3371 = vmatprep.subr.mxu0 0.0
    %3372 = vmatpush1.msra.mxu0 0.0
    %3373 = vmatprep.subr.mxu0 0.0
    %3374 = vmatpush1.msra.mxu0 0.0
    %3375 = vmatprep.subr.mxu0 0.0
    %3376 = vmatpush1.msra.mxu0 0.0
    %3377 = vmatprep.subr.mxu0 0.0
    %3378 = vmatpush1.msra.mxu0 0.0
    %3379 = vmatprep.subr.mxu0 0.0
    %3380 = vmatpush1.msra.mxu0 0.0
    %3381 = vmatprep.subr.mxu0 0.0
    %3382 = vmatpush1.msra.mxu0 0.0
    %3383 = vmatprep.subr.mxu0 0.0
    %3384 = vmatpush1.msra.mxu0 0.0
    %3385 = vmatprep.subr.mxu0 0.0
    %3386 = vmatpush1.msra.mxu0 0.0
    %3387 = vmatprep.subr.mxu0 0.0
    %3388 = vmatpush1.msra.mxu0 0.0
    %3389 = vmatprep.subr.mxu0 0.0
    %3390 = vmatpush1.msra.mxu0 0.0
    %3391 = vmatprep.subr.mxu0 0.0
    %3392 = vmatpush1.msra.mxu0 0.0
    %3393 = vmatprep.subr.mxu0 0.0
    %3394 = vmatpush1.msra.mxu0 0.0
    %3395 = vmatprep.subr.mxu0 0.0
    %3396 = vmatpush1.msra.mxu0 0.0
    %3397 = vmatprep.subr.mxu0 0.0
    %3398 = vmatpush1.msra.mxu0 0.0
    %3399 = vmatprep.subr.mxu0 0.0
    %3400 = vmatpush1.msra.mxu0 0.0
    %3401 = vmatprep.subr.mxu0 0.0
    %3402 = vmatpush1.msra.mxu0 0.0
    %3403 = vmatprep.mubr.f32.mxu0 0.0
    %3404 = vmatmul.mubr.f32.gmra.mrb[0].mxu0 %v3337
    %v3405 = vpop.f32.mrb[0].mxu0
    %v3406 = vadd.f32 0.0, %v3405
    %v3407 = vpop.f32.mrb[0].mxu0
    %3408 = vdwg.mxu0
    %v3410 = vsel %vm1059, %v3189, 0
    %3412 = vmatprep.subr.mxu0 0.0
    %3413 = vmatpush1.msra.mxu0 %v2839
    %3414 = vmatprep.subr.mxu0 0.0
    %3415 = vmatpush1.msra.mxu0 0.0
    %3416 = vmatprep.subr.mxu0 0.0
    %3417 = vmatpush1.msra.mxu0 0.0
    %3418 = vmatprep.subr.mxu0 0.0
    %3419 = vmatpush1.msra.mxu0 0.0
    %3420 = vmatprep.subr.mxu0 0.0
    %3421 = vmatpush1.msra.mxu0 0.0
    %3422 = vmatprep.subr.mxu0 0.0
    %3423 = vmatpush1.msra.mxu0 0.0
    %3424 = vmatprep.subr.mxu0 0.0
    %3425 = vmatpush1.msra.mxu0 0.0
    %3426 = vmatprep.subr.mxu0 0.0
    %3427 = vmatpush1.msra.mxu0 0.0
    %3428 = vmatprep.subr.mxu0 0.0
    %3429 = vmatpush1.msra.mxu0 0.0
    %3430 = vmatprep.subr.mxu0 0.0
    %3431 = vmatpush1.msra.mxu0 0.0
    %3432 = vmatprep.subr.mxu0 0.0
    %3433 = vmatpush1.msra.mxu0 0.0
    %3434 = vmatprep.subr.mxu0 0.0
    %3435 = vmatpush1.msra.mxu0 0.0
    %3436 = vmatprep.subr.mxu0 0.0
    %3437 = vmatpush1.msra.mxu0 0.0
    %3438 = vmatprep.subr.mxu0 0.0
    %3439 = vmatpush1.msra.mxu0 0.0
    %3440 = vmatprep.subr.mxu0 0.0
    %3441 = vmatpush1.msra.mxu0 0.0
    %3442 = vmatprep.subr.mxu0 0.0
    %3443 = vmatpush1.msra.mxu0 0.0
    %3444 = vmatprep.subr.mxu0 0.0
    %3445 = vmatpush1.msra.mxu0 0.0
    %3446 = vmatprep.subr.mxu0 0.0
    %3447 = vmatpush1.msra.mxu0 0.0
    %3448 = vmatprep.subr.mxu0 0.0
    %3449 = vmatpush1.msra.mxu0 0.0
    %3450 = vmatprep.subr.mxu0 0.0
    %3451 = vmatpush1.msra.mxu0 0.0
    %3452 = vmatprep.subr.mxu0 0.0
    %3453 = vmatpush1.msra.mxu0 0.0
    %3454 = vmatprep.subr.mxu0 0.0
    %3455 = vmatpush1.msra.mxu0 0.0
    %3456 = vmatprep.subr.mxu0 0.0
    %3457 = vmatpush1.msra.mxu0 0.0
    %3458 = vmatprep.subr.mxu0 0.0
    %3459 = vmatpush1.msra.mxu0 0.0
    %3460 = vmatprep.subr.mxu0 0.0
    %3461 = vmatpush1.msra.mxu0 0.0
    %3462 = vmatprep.subr.mxu0 0.0
    %3463 = vmatpush1.msra.mxu0 0.0
    %3464 = vmatprep.subr.mxu0 0.0
    %3465 = vmatpush1.msra.mxu0 0.0
    %3466 = vmatprep.subr.mxu0 0.0
    %3467 = vmatpush1.msra.mxu0 0.0
    %3468 = vmatprep.subr.mxu0 0.0
    %3469 = vmatpush1.msra.mxu0 0.0
    %3470 = vmatprep.subr.mxu0 0.0
    %3471 = vmatpush1.msra.mxu0 0.0
    %3472 = vmatprep.subr.mxu0 0.0
    %3473 = vmatpush1.msra.mxu0 0.0
    %3474 = vmatprep.subr.mxu0 0.0
    %3475 = vmatpush1.msra.mxu0 0.0
    %3476 = vmatprep.mubr.f32.mxu0 0.0
    %3477 = vmatmul.mubr.f32.gmra.mrb[0].mxu0 %v3410
    %v3478 = vpop.f32.mrb[0].mxu0
    %v3479 = vadd.f32 0.0, %v3478
    %v3480 = vpop.f32.mrb[0].mxu0
    %3481 = vdwg.mxu0
    %v3483 = vsel %vm1059, %v3260, 0
    %3485 = vmatprep.subr.mxu0 0.0
    %3486 = vmatpush1.msra.mxu0 %v140
    %3487 = vmatprep.subr.mxu0 0.0
    %3488 = vmatpush1.msra.mxu0 0.0
    %3489 = vmatprep.subr.mxu0 0.0
    %3490 = vmatpush1.msra.mxu0 0.0
    %3491 = vmatprep.subr.mxu0 0.0
    %3492 = vmatpush1.msra.mxu0 0.0
    %3493 = vmatprep.subr.mxu0 0.0
    %3494 = vmatpush1.msra.mxu0 0.0
    %3495 = vmatprep.subr.mxu0 0.0
    %3496 = vmatpush1.msra.mxu0 0.0
    %3497 = vmatprep.subr.mxu0 0.0
    %3498 = vmatpush1.msra.mxu0 0.0
    %3499 = vmatprep.subr.mxu0 0.0
    %3500 = vmatpush1.msra.mxu0 0.0
    %3501 = vmatprep.subr.mxu0 0.0
    %3502 = vmatpush1.msra.mxu0 0.0
    %3503 = vmatprep.subr.mxu0 0.0
    %3504 = vmatpush1.msra.mxu0 0.0
    %3505 = vmatprep.subr.mxu0 0.0
    %3506 = vmatpush1.msra.mxu0 0.0
    %3507 = vmatprep.subr.mxu0 0.0
    %3508 = vmatpush1.msra.mxu0 0.0
    %3509 = vmatprep.subr.mxu0 0.0
    %3510 = vmatpush1.msra.mxu0 0.0
    %3511 = vmatprep.subr.mxu0 0.0
    %3512 = vmatpush1.msra.mxu0 0.0
    %3513 = vmatprep.subr.mxu0 0.0
    %3514 = vmatpush1.msra.mxu0 0.0
    %3515 = vmatprep.subr.mxu0 0.0
    %3516 = vmatpush1.msra.mxu0 0.0
    %3517 = vmatprep.subr.mxu0 0.0
    %3518 = vmatpush1.msra.mxu0 0.0
    %3519 = vmatprep.subr.mxu0 0.0
    %3520 = vmatpush1.msra.mxu0 0.0
    %3521 = vmatprep.subr.mxu0 0.0
    %3522 = vmatpush1.msra.mxu0 0.0
    %3523 = vmatprep.subr.mxu0 0.0
    %3524 = vmatpush1.msra.mxu0 0.0
    %3525 = vmatprep.subr.mxu0 0.0
    %3526 = vmatpush1.msra.mxu0 0.0
    %3527 = vmatprep.subr.mxu0 0.0
    %3528 = vmatpush1.msra.mxu0 0.0
    %3529 = vmatprep.subr.mxu0 0.0
    %3530 = vmatpush1.msra.mxu0 0.0
    %3531 = vmatprep.subr.mxu0 0.0
    %3532 = vmatpush1.msra.mxu0 0.0
    %3533 = vmatprep.subr.mxu0 0.0
    %3534 = vmatpush1.msra.mxu0 0.0
    %3535 = vmatprep.subr.mxu0 0.0
    %3536 = vmatpush1.msra.mxu0 0.0
    %3537 = vmatprep.subr.mxu0 0.0
    %3538 = vmatpush1.msra.mxu0 0.0
    %3539 = vmatprep.subr.mxu0 0.0
    %3540 = vmatpush1.msra.mxu0 0.0
    %3541 = vmatprep.subr.mxu0 0.0
    %3542 = vmatpush1.msra.mxu0 0.0
    %3543 = vmatprep.subr.mxu0 0.0
    %3544 = vmatpush1.msra.mxu0 0.0
    %3545 = vmatprep.subr.mxu0 0.0
    %3546 = vmatpush1.msra.mxu0 0.0
    %3547 = vmatprep.subr.mxu0 0.0
    %3548 = vmatpush1.msra.mxu0 0.0
    %3549 = vmatprep.mubr.f32.mxu0 0.0
    %3550 = vmatmul.mubr.f32.gmra.mrb[0].mxu0 %v3483
    %v3551 = vpop.f32.mrb[0].mxu0
    %v3552 = vadd.f32 0.0, %v3551
    %v3553 = vpop.f32.mrb[0].mxu0
    %3554 = vdwg.mxu0
    %v3556 = vsel %vm1059, %v3333, 0
    %3558 = vmatprep.subr.mxu0 0.0
    %3559 = vmatpush1.msra.mxu0 %v141
    %3560 = vmatprep.subr.mxu0 0.0
    %3561 = vmatpush1.msra.mxu0 0.0
    %3562 = vmatprep.subr.mxu0 0.0
    %3563 = vmatpush1.msra.mxu0 0.0
    %3564 = vmatprep.subr.mxu0 0.0
    %3565 = vmatpush1.msra.mxu0 0.0
    %3566 = vmatprep.subr.mxu0 0.0
    %3567 = vmatpush1.msra.mxu0 0.0
    %3568 = vmatprep.subr.mxu0 0.0
    %3569 = vmatpush1.msra.mxu0 0.0
    %3570 = vmatprep.subr.mxu0 0.0
    %3571 = vmatpush1.msra.mxu0 0.0
    %3572 = vmatprep.subr.mxu0 0.0
    %3573 = vmatpush1.msra.mxu0 0.0
    %3574 = vmatprep.subr.mxu0 0.0
    %3575 = vmatpush1.msra.mxu0 0.0
    %3576 = vmatprep.subr.mxu0 0.0
    %3577 = vmatpush1.msra.mxu0 0.0
    %3578 = vmatprep.subr.mxu0 0.0
    %3579 = vmatpush1.msra.mxu0 0.0
    %3580 = vmatprep.subr.mxu0 0.0
    %3581 = vmatpush1.msra.mxu0 0.0
    %3582 = vmatprep.subr.mxu0 0.0
    %3583 = vmatpush1.msra.mxu0 0.0
    %3584 = vmatprep.subr.mxu0 0.0
    %3585 = vmatpush1.msra.mxu0 0.0
    %3586 = vmatprep.subr.mxu0 0.0
    %3587 = vmatpush1.msra.mxu0 0.0
    %3588 = vmatprep.subr.mxu0 0.0
    %3589 = vmatpush1.msra.mxu0 0.0
    %3590 = vmatprep.subr.mxu0 0.0
    %3591 = vmatpush1.msra.mxu0 0.0
    %3592 = vmatprep.subr.mxu0 0.0
    %3593 = vmatpush1.msra.mxu0 0.0
    %3594 = vmatprep.subr.mxu0 0.0
    %3595 = vmatpush1.msra.mxu0 0.0
    %3596 = vmatprep.subr.mxu0 0.0
    %3597 = vmatpush1.msra.mxu0 0.0
    %3598 = vmatprep.subr.mxu0 0.0
    %3599 = vmatpush1.msra.mxu0 0.0
    %3600 = vmatprep.subr.mxu0 0.0
    %3601 = vmatpush1.msra.mxu0 0.0
    %3602 = vmatprep.subr.mxu0 0.0
    %3603 = vmatpush1.msra.mxu0 0.0
    %3604 = vmatprep.subr.mxu0 0.0
    %3605 = vmatpush1.msra.mxu0 0.0
    %3606 = vmatprep.subr.mxu0 0.0
    %3607 = vmatpush1.msra.mxu0 0.0
    %3608 = vmatprep.subr.mxu0 0.0
    %3609 = vmatpush1.msra.mxu0 0.0
    %3610 = vmatprep.subr.mxu0 0.0
    %3611 = vmatpush1.msra.mxu0 0.0
    %3612 = vmatprep.subr.mxu0 0.0
    %3613 = vmatpush1.msra.mxu0 0.0
    %3614 = vmatprep.subr.mxu0 0.0
    %3615 = vmatpush1.msra.mxu0 0.0
    %3616 = vmatprep.subr.mxu0 0.0
    %3617 = vmatpush1.msra.mxu0 0.0
    %3618 = vmatprep.subr.mxu0 0.0
    %3619 = vmatpush1.msra.mxu0 0.0
    %3620 = vmatprep.subr.mxu0 0.0
    %3621 = vmatpush1.msra.mxu0 0.0
    %3622 = vmatprep.mubr.f32.mxu0 0.0
    %3623 = vmatmul.mubr.f32.gmra.mrb[0].mxu0 %v3556
    %v3624 = vpop.f32.mrb[0].mxu0
    %v3625 = vadd.f32 0.0, %v3624
    %v3626 = vpop.f32.mrb[0].mxu0
    %3627 = vdwg.mxu0
    %v3629 = vsel %vm1059, %v3406, 0
    %3631 = vmatprep.subr.mxu0 0.0
    %3632 = vmatpush1.msra.mxu0 %v142
    %3633 = vmatprep.subr.mxu0 0.0
    %3634 = vmatpush1.msra.mxu0 0.0
    %3635 = vmatprep.subr.mxu0 0.0
    %3636 = vmatpush1.msra.mxu0 0.0
    %3637 = vmatprep.subr.mxu0 0.0
    %3638 = vmatpush1.msra.mxu0 0.0
    %3639 = vmatprep.subr.mxu0 0.0
    %3640 = vmatpush1.msra.mxu0 0.0
    %3641 = vmatprep.subr.mxu0 0.0
    %3642 = vmatpush1.msra.mxu0 0.0
    %3643 = vmatprep.subr.mxu0 0.0
    %3644 = vmatpush1.msra.mxu0 0.0
    %3645 = vmatprep.subr.mxu0 0.0
    %3646 = vmatpush1.msra.mxu0 0.0
    %3647 = vmatprep.subr.mxu0 0.0
    %3648 = vmatpush1.msra.mxu0 0.0
    %3649 = vmatprep.subr.mxu0 0.0
    %3650 = vmatpush1.msra.mxu0 0.0
    %3651 = vmatprep.subr.mxu0 0.0
    %3652 = vmatpush1.msra.mxu0 0.0
    %3653 = vmatprep.subr.mxu0 0.0
    %3654 = vmatpush1.msra.mxu0 0.0
    %3655 = vmatprep.subr.mxu0 0.0
    %3656 = vmatpush1.msra.mxu0 0.0
    %3657 = vmatprep.subr.mxu0 0.0
    %3658 = vmatpush1.msra.mxu0 0.0
    %3659 = vmatprep.subr.mxu0 0.0
    %3660 = vmatpush1.msra.mxu0 0.0
    %3661 = vmatprep.subr.mxu0 0.0
    %3662 = vmatpush1.msra.mxu0 0.0
    %3663 = vmatprep.subr.mxu0 0.0
    %3664 = vmatpush1.msra.mxu0 0.0
    %3665 = vmatprep.subr.mxu0 0.0
    %3666 = vmatpush1.msra.mxu0 0.0
    %3667 = vmatprep.subr.mxu0 0.0
    %3668 = vmatpush1.msra.mxu0 0.0
    %3669 = vmatprep.subr.mxu0 0.0
    %3670 = vmatpush1.msra.mxu0 0.0
    %3671 = vmatprep.subr.mxu0 0.0
    %3672 = vmatpush1.msra.mxu0 0.0
    %3673 = vmatprep.subr.mxu0 0.0
    %3674 = vmatpush1.msra.mxu0 0.0
    %3675 = vmatprep.subr.mxu0 0.0
    %3676 = vmatpush1.msra.mxu0 0.0
    %3677 = vmatprep.subr.mxu0 0.0
    %3678 = vmatpush1.msra.mxu0 0.0
    %3679 = vmatprep.subr.mxu0 0.0
    %3680 = vmatpush1.msra.mxu0 0.0
    %3681 = vmatprep.subr.mxu0 0.0
    %3682 = vmatpush1.msra.mxu0 0.0
    %3683 = vmatprep.subr.mxu0 0.0
    %3684 = vmatpush1.msra.mxu0 0.0
    %3685 = vmatprep.subr.mxu0 0.0
    %3686 = vmatpush1.msra.mxu0 0.0
    %3687 = vmatprep.subr.mxu0 0.0
    %3688 = vmatpush1.msra.mxu0 0.0
    %3689 = vmatprep.subr.mxu0 0.0
    %3690 = vmatpush1.msra.mxu0 0.0
    %3691 = vmatprep.subr.mxu0 0.0
    %3692 = vmatpush1.msra.mxu0 0.0
    %3693 = vmatprep.subr.mxu0 0.0
    %3694 = vmatpush1.msra.mxu0 0.0
    %3695 = vmatprep.mubr.f32.mxu0 0.0
    %3696 = vmatmul.mubr.f32.gmra.mrb[0].mxu0 %v3629
    %v3697 = vpop.f32.mrb[0].mxu0
    %v3698 = vadd.f32 0.0, %v3697
    %v3699 = vpop.f32.mrb[0].mxu0
    %3700 = vdwg.mxu0
    %v3702 = vsel %vm1059, %v3479, 0
    %3704 = vmatprep.subr.mxu0 0.0
    %3705 = vmatpush1.msra.mxu0 %v143
    %3706 = vmatprep.subr.mxu0 0.0
    %3707 = vmatpush1.msra.mxu0 0.0
    %3708 = vmatprep.subr.mxu0 0.0
    %3709 = vmatpush1.msra.mxu0 0.0
    %3710 = vmatprep.subr.mxu0 0.0
    %3711 = vmatpush1.msra.mxu0 0.0
    %3712 = vmatprep.subr.mxu0 0.0
    %3713 = vmatpush1.msra.mxu0 0.0
    %3714 = vmatprep.subr.mxu0 0.0
    %3715 = vmatpush1.msra.mxu0 0.0
    %3716 = vmatprep.subr.mxu0 0.0
    %3717 = vmatpush1.msra.mxu0 0.0
    %3718 = vmatprep.subr.mxu0 0.0
    %3719 = vmatpush1.msra.mxu0 0.0
    %3720 = vmatprep.subr.mxu0 0.0
    %3721 = vmatpush1.msra.mxu0 0.0
    %3722 = vmatprep.subr.mxu0 0.0
    %3723 = vmatpush1.msra.mxu0 0.0
    %3724 = vmatprep.subr.mxu0 0.0
    %3725 = vmatpush1.msra.mxu0 0.0
    %3726 = vmatprep.subr.mxu0 0.0
    %3727 = vmatpush1.msra.mxu0 0.0
    %3728 = vmatprep.subr.mxu0 0.0
    %3729 = vmatpush1.msra.mxu0 0.0
    %3730 = vmatprep.subr.mxu0 0.0
    %3731 = vmatpush1.msra.mxu0 0.0
    %3732 = vmatprep.subr.mxu0 0.0
    %3733 = vmatpush1.msra.mxu0 0.0
    %3734 = vmatprep.subr.mxu0 0.0
    %3735 = vmatpush1.msra.mxu0 0.0
    %3736 = vmatprep.subr.mxu0 0.0
    %3737 = vmatpush1.msra.mxu0 0.0
    %3738 = vmatprep.subr.mxu0 0.0
    %3739 = vmatpush1.msra.mxu0 0.0
    %3740 = vmatprep.subr.mxu0 0.0
    %3741 = vmatpush1.msra.mxu0 0.0
    %3742 = vmatprep.subr.mxu0 0.0
    %3743 = vmatpush1.msra.mxu0 0.0
    %3744 = vmatprep.subr.mxu0 0.0
    %3745 = vmatpush1.msra.mxu0 0.0
    %3746 = vmatprep.subr.mxu0 0.0
    %3747 = vmatpush1.msra.mxu0 0.0
    %3748 = vmatprep.subr.mxu0 0.0
    %3749 = vmatpush1.msra.mxu0 0.0
    %3750 = vmatprep.subr.mxu0 0.0
    %3751 = vmatpush1.msra.mxu0 0.0
    %3752 = vmatprep.subr.mxu0 0.0
    %3753 = vmatpush1.msra.mxu0 0.0
    %3754 = vmatprep.subr.mxu0 0.0
    %3755 = vmatpush1.msra.mxu0 0.0
    %3756 = vmatprep.subr.mxu0 0.0
    %3757 = vmatpush1.msra.mxu0 0.0
    %3758 = vmatprep.subr.mxu0 0.0
    %3759 = vmatpush1.msra.mxu0 0.0
    %3760 = vmatprep.subr.mxu0 0.0
    %3761 = vmatpush1.msra.mxu0 0.0
    %3762 = vmatprep.subr.mxu0 0.0
    %3763 = vmatpush1.msra.mxu0 0.0
    %3764 = vmatprep.subr.mxu0 0.0
    %3765 = vmatpush1.msra.mxu0 0.0
    %3766 = vmatprep.subr.mxu0 0.0
    %3767 = vmatpush1.msra.mxu0 0.0
    %3768 = vmatprep.mubr.f32.mxu0 0.0
    %3769 = vmatmul.mubr.f32.gmra.mrb[0].mxu0 %v3702
    %v3770 = vpop.f32.mrb[0].mxu0
    %v3771 = vadd.f32 0.0, %v3770
    %v3772 = vpop.f32.mrb[0].mxu0
    %3773 = vdwg.mxu0
    %v3774 = vsel %vm36, %v3552, 0.0
    %v3775 = vsel %vm36, %v3625, 0.0
    %v3776 = vadd.f32 %v3774, %v3775
    %v3777 = vsel %vm36, %v3698, 0.0
    %v3778 = vadd.f32 %v3776, %v3777
    %v3779 = vsel %vm36, %v3771, 0.0
    %v3780 = vadd.f32 %v3778, %v3779
    %v3781 = vlaneseq
    %v3782 = vshrl.u32 %v3781, 7
    %v3783 = vsub.s32 0, %v3782
    %v3784 = vrot.slane %v31, %v3783
    %v3785 = vadd.f32 %v1998, %v3784
    %v3786 = vadd.f32 %v3780, %v3784
    %v3787 = vadd.f32 %v27, %v3785
    %v3788 = vadd.f32 %v28, %v3786
    %v3789 = vsel %vm36, %v3787, 0.0
    %3790 = vadd.xlane.f32.xlu0 %v3789
    %v3791 = vpop.xlane.xlu0 %3790
    %v3792 = vsel %vm36, %v3788, 0.0
    %3793 = vadd.xlane.f32.xlu0 %v3792
    %v3794 = vpop.xlane.xlu0 %3793
    %v3795 = vmul.f32 %v3791, %v43
    %v3796 = vmul.f32 %v3794, %v43
    %v3797 = vsub.f32 %v3787, %v3795
    %v3798 = vsub.f32 %v3788, %v3796
    %v3799 = vmul.f32 %v3797, %v3797
    %v3800 = vmul.f32 %v3798, %v3798
    %v3801 = vsel %vm36, %v3799, 0.0
    %3802 = vadd.xlane.f32.xlu0 %v3801
    %v3803 = vpop.xlane.xlu0 %3802
    %v3804 = vsel %vm36, %v3800, 0.0
    %3805 = vadd.xlane.f32.xlu0 %v3804
    %v3806 = vpop.xlane.xlu0 %3805
    %v3807 = vmul.f32 %v3803, %v43
    %v3808 = vmul.f32 %v3806, %v43
    %v3809 = vadd.f32 %v3807, 1e-05
    %v3810 = vadd.f32 %v3808, 1e-05
    %v3811 = vrsqrt.pop %v3809
    %v3812 = vrsqrt.pop %v3810
    %v3813 = vmul.f32 %v3797, %v3811
    %v3814 = vmul.f32 %v3798, %v3812
    %v3815 = vlaneseq
    %v3816 = vshrl.u32 %v3815, 7
    %v3817 = vsub.s32 0, %v3816
    %v3818 = vrot.slane %v32, %v3817
    %v3819 = vmul.f32 %v3813, %v3818
    %v3820 = vmul.f32 %v3814, %v3818
    %v3821 = vlaneseq
    %v3822 = vshrl.u32 %v3821, 7
    %v3823 = vsub.s32 0, %v3822
    %v3824 = vrot.slane %v33, %v3823
    %v3825 = vadd.f32 %v3819, %v3824
    %v3826 = vadd.f32 %v3820, %v3824
    %v3827 = vld [vmem:[%s4] sm:$0xff]
    %v3828 = vld [vmem:[%s4 + $0x8] sm:$0xff]
    %v3829 = vld [vmem:[%s4 + $0x10] sm:$0xff]
    %v3830 = vld [vmem:[%s4 + $0x18] sm:$0xff]
    %v3831 = vlaneseq
    %v3832 = vshrl.u32 %v3831, 7
    %v3833 = vsub.s32 0, %v3832
    %v3834 = vrot.slane %v34, %v3833
    %v3836 = vsel %vm36, %v3825, 0
    %v3839 = vsel %vm36, %v3826, 0
    %3841 = vmatprep.subr.mxu0 0.0
    %3842 = vmatpush1.msra.mxu0 %v3827
    %3843 = vmatprep.subr.mxu0 0.0
    %3844 = vmatpush1.msra.mxu0 %v3828
    %3845 = vmatprep.subr.mxu0 0.0
    %3846 = vmatpush1.msra.mxu0 %v3829
    %3847 = vmatprep.subr.mxu0 0.0
    %3848 = vmatpush1.msra.mxu0 %v3830
    %3849 = vmatprep.subr.mxu0 0.0
    %3850 = vmatpush1.msra.mxu0 0.0
    %3851 = vmatprep.subr.mxu0 0.0
    %3852 = vmatpush1.msra.mxu0 0.0
    %3853 = vmatprep.subr.mxu0 0.0
    %3854 = vmatpush1.msra.mxu0 0.0
    %3855 = vmatprep.subr.mxu0 0.0
    %3856 = vmatpush1.msra.mxu0 0.0
    %3857 = vmatprep.subr.mxu0 0.0
    %3858 = vmatpush1.msra.mxu0 0.0
    %3859 = vmatprep.subr.mxu0 0.0
    %3860 = vmatpush1.msra.mxu0 0.0
    %3861 = vmatprep.subr.mxu0 0.0
    %3862 = vmatpush1.msra.mxu0 0.0
    %3863 = vmatprep.subr.mxu0 0.0
    %3864 = vmatpush1.msra.mxu0 0.0
    %3865 = vmatprep.subr.mxu0 0.0
    %3866 = vmatpush1.msra.mxu0 0.0
    %3867 = vmatprep.subr.mxu0 0.0
    %3868 = vmatpush1.msra.mxu0 0.0
    %3869 = vmatprep.subr.mxu0 0.0
    %3870 = vmatpush1.msra.mxu0 0.0
    %3871 = vmatprep.subr.mxu0 0.0
    %3872 = vmatpush1.msra.mxu0 0.0
    %3873 = vmatprep.subr.mxu0 0.0
    %3874 = vmatpush1.msra.mxu0 0.0
    %3875 = vmatprep.subr.mxu0 0.0
    %3876 = vmatpush1.msra.mxu0 0.0
    %3877 = vmatprep.subr.mxu0 0.0
    %3878 = vmatpush1.msra.mxu0 0.0
    %3879 = vmatprep.subr.mxu0 0.0
    %3880 = vmatpush1.msra.mxu0 0.0
    %3881 = vmatprep.subr.mxu0 0.0
    %3882 = vmatpush1.msra.mxu0 0.0
    %3883 = vmatprep.subr.mxu0 0.0
    %3884 = vmatpush1.msra.mxu0 0.0
    %3885 = vmatprep.subr.mxu0 0.0
    %3886 = vmatpush1.msra.mxu0 0.0
    %3887 = vmatprep.subr.mxu0 0.0
    %3888 = vmatpush1.msra.mxu0 0.0
    %3889 = vmatprep.subr.mxu0 0.0
    %3890 = vmatpush1.msra.mxu0 0.0
    %3891 = vmatprep.subr.mxu0 0.0
    %3892 = vmatpush1.msra.mxu0 0.0
    %3893 = vmatprep.subr.mxu0 0.0
    %3894 = vmatpush1.msra.mxu0 0.0
    %3895 = vmatprep.subr.mxu0 0.0
    %3896 = vmatpush1.msra.mxu0 0.0
    %3897 = vmatprep.subr.mxu0 0.0
    %3898 = vmatpush1.msra.mxu0 0.0
    %3899 = vmatprep.subr.mxu0 0.0
    %3900 = vmatpush1.msra.mxu0 0.0
    %3901 = vmatprep.subr.mxu0 0.0
    %3902 = vmatpush1.msra.mxu0 0.0
    %3903 = vmatprep.subr.mxu0 0.0
    %3904 = vmatpush1.msra.mxu0 0.0
    %3905 = vmatprep.mubr.f32.mxu0 0.0
    %3906 = vmatmul.mubr.f32.gmra.mrb[0].mxu0 %v3836
    %v3907 = vpop.f32.mrb[0].mxu0
    %v3908 = vadd.f32 %v3834, %v3907
    %v3909 = vpop.f32.mrb[0].mxu0
    %3910 = vmatprep.mubr.f32.mxu0 0.0
    %3911 = vmatmul.mubr.f32.gmra.mrb[0].mxu0 %v3839
    %v3912 = vpop.f32.mrb[0].mxu0
    %v3913 = vadd.f32 %v3834, %v3912
    %v3914 = vpop.f32.mrb[0].mxu0
    %3915 = vdwg.mxu0
    %v3916 = vmul.f32 %v3908, 0.5
    %v3917 = vmul.f32 %v3913, 0.5
    %v3918 = vmul.f32 %v3908, 0.044715
    %v3919 = vmul.f32 %v3913, 0.044715
    %v3920 = vmul.f32 %v3918, %v3908
    %v3921 = vmul.f32 %v3919, %v3913
    %v3922 = vmul.f32 %v3920, %v3908
    %v3923 = vmul.f32 %v3921, %v3913
    %v3924 = vadd.f32 %v3908, %v3922
    %v3925 = vadd.f32 %v3913, %v3923
    %v3926 = vmul.f32 %v3924, 0.7978846
    %v3927 = vmul.f32 %v3925, 0.7978846
    %v3928 = vtanh.pop %v3926
    %v3929 = vtanh.pop %v3927
    %v3930 = vadd.f32 %v3928, 1.0
    %v3931 = vadd.f32 %v3929, 1.0
    %v3932 = vmul.f32 %v3916, %v3930
    %v3933 = vmul.f32 %v3917, %v3931
    %v3934 = vld [vmem:[%s5] sm:$0xff]
    %v3935 = vld [vmem:[%s5 + $0x8] sm:$0xff]
    %v3936 = vld [vmem:[%s5 + $0x10] sm:$0xff]
    %v3937 = vld [vmem:[%s5 + $0x18] sm:$0xff]
    %v3938 = vld [vmem:[%s5 + $0x20] sm:$0xff]
    %v3939 = vld [vmem:[%s5 + $0x28] sm:$0xff]
    %v3940 = vld [vmem:[%s5 + $0x30] sm:$0xff]
    %v3941 = vld [vmem:[%s5 + $0x38] sm:$0xff]
    %v3942 = vlaneseq
    %v3943 = vshrl.u32 %v3942, 7
    %v3944 = vsub.s32 0, %v3943
    %v3945 = vrot.slane %v35, %v3944
    %vm3946 = vcmask 523264
    %v3948 = vsel %vm3946, %v3932, 0
    %v3951 = vsel %vm3946, %v3933, 0
    %3953 = vmatprep.subr.mxu0 0.0
    %3954 = vmatpush1.msra.mxu0 %v3934
    %3955 = vmatprep.subr.mxu0 0.0
    %3956 = vmatpush1.msra.mxu0 %v3935
    %3957 = vmatprep.subr.mxu0 0.0
    %3958 = vmatpush1.msra.mxu0 %v3936
    %3959 = vmatprep.subr.mxu0 0.0
    %3960 = vmatpush1.msra.mxu0 %v3937
    %3961 = vmatprep.subr.mxu0 0.0
    %3962 = vmatpush1.msra.mxu0 %v3938
    %3963 = vmatprep.subr.mxu0 0.0
    %3964 = vmatpush1.msra.mxu0 %v3939
    %3965 = vmatprep.subr.mxu0 0.0
    %3966 = vmatpush1.msra.mxu0 %v3940
    %3967 = vmatprep.subr.mxu0 0.0
    %3968 = vmatpush1.msra.mxu0 %v3941
    %3969 = vmatprep.subr.mxu0 0.0
    %3970 = vmatpush1.msra.mxu0 0.0
    %3971 = vmatprep.subr.mxu0 0.0
    %3972 = vmatpush1.msra.mxu0 0.0
    %3973 = vmatprep.subr.mxu0 0.0
    %3974 = vmatpush1.msra.mxu0 0.0
    %3975 = vmatprep.subr.mxu0 0.0
    %3976 = vmatpush1.msra.mxu0 0.0
    %3977 = vmatprep.subr.mxu0 0.0
    %3978 = vmatpush1.msra.mxu0 0.0
    %3979 = vmatprep.subr.mxu0 0.0
    %3980 = vmatpush1.msra.mxu0 0.0
    %3981 = vmatprep.subr.mxu0 0.0
    %3982 = vmatpush1.msra.mxu0 0.0
    %3983 = vmatprep.subr.mxu0 0.0
    %3984 = vmatpush1.msra.mxu0 0.0
    %3985 = vmatprep.subr.mxu0 0.0
    %3986 = vmatpush1.msra.mxu0 0.0
    %3987 = vmatprep.subr.mxu0 0.0
    %3988 = vmatpush1.msra.mxu0 0.0
    %3989 = vmatprep.subr.mxu0 0.0
    %3990 = vmatpush1.msra.mxu0 0.0
    %3991 = vmatprep.subr.mxu0 0.0
    %3992 = vmatpush1.msra.mxu0 0.0
    %3993 = vmatprep.subr.mxu0 0.0
    %3994 = vmatpush1.msra.mxu0 0.0
    %3995 = vmatprep.subr.mxu0 0.0
    %3996 = vmatpush1.msra.mxu0 0.0
    %3997 = vmatprep.subr.mxu0 0.0
    %3998 = vmatpush1.msra.mxu0 0.0
    %3999 = vmatprep.subr.mxu0 0.0
    %4000 = vmatpush1.msra.mxu0 0.0
    %4001 = vmatprep.subr.mxu0 0.0
    %4002 = vmatpush1.msra.mxu0 0.0
    %4003 = vmatprep.subr.mxu0 0.0
    %4004 = vmatpush1.msra.mxu0 0.0
    %4005 = vmatprep.subr.mxu0 0.0
    %4006 = vmatpush1.msra.mxu0 0.0
    %4007 = vmatprep.subr.mxu0 0.0
    %4008 = vmatpush1.msra.mxu0 0.0
    %4009 = vmatprep.subr.mxu0 0.0
    %4010 = vmatpush1.msra.mxu0 0.0
    %4011 = vmatprep.subr.mxu0 0.0
    %4012 = vmatpush1.msra.mxu0 0.0
    %4013 = vmatprep.subr.mxu0 0.0
    %4014 = vmatpush1.msra.mxu0 0.0
    %4015 = vmatprep.subr.mxu0 0.0
    %4016 = vmatpush1.msra.mxu0 0.0
    %4017 = vmatprep.mubr.f32.mxu0 0.0
    %4018 = vmatmul.mubr.f32.gmra.mrb[0].mxu0 %v3948
    %v4019 = vpop.f32.mrb[0].mxu0
    %v4020 = vadd.f32 %v3945, %v4019
    %v4021 = vpop.f32.mrb[0].mxu0
    %4022 = vmatprep.mubr.f32.mxu0 0.0
    %4023 = vmatmul.mubr.f32.gmra.mrb[0].mxu0 %v3951
    %v4024 = vpop.f32.mrb[0].mxu0
    %v4025 = vadd.f32 %v3945, %v4024
    %v4026 = vpop.f32.mrb[0].mxu0
    %4027 = vdwg.mxu0
    %v4028 = vadd.f32 %v3787, %v4020
    %v4029 = vadd.f32 %v3788, %v4025
    %4030 = vst.msk [vmem:[#allocation2] sm:$0xff] %vm36, %v4028
    %4031 = vst.msk [vmem:[#allocation2 + $0x8] sm:$0xff] %vm36, %v4029
    // Predicated region
    $region30: #{encoder_block.1} parent=1 // pred_check
      _
    $region31: #{encoder_block.1} parent=1 // pred_check_branch
      %4033 = sbr.rel (0) target = $region33
    $region32: #{encoder_block.1} parent=1 // pred_region
      %s4035 = ssub.s32 256, 256
      %4036 = vsyncadd [#allocation3], %s4035
      %s4037 = sshll.u32 [#allocation2], 4
      %s4038 = int_to_ptr.vmem [resolvable:$true] %s4037
      %4043 = dma.vmem_to_hbm [thread:$0]  %s4038, 256, %s7, [#allocation3], 128, 128, 8
    $region33: #{encoder_block.1} parent=1 // pred_fallthru
      _
    // Predicated region
    $region34: #{encoder_block.1} parent=1 // pred_check
      _
    $region35: #{encoder_block.1} parent=1 // pred_check_branch
      %4045 = sbr.rel (0) target = $region37
    $region36: #{encoder_block.1} parent=1 // pred_region
      %4046 = dma.done [#allocation3], 256
    $region37: #{encoder_block.1} parent=1 // pred_fallthru
      _
    %4047 = vsyncpa [#allocation3], 1

</llo_original>
